<compile_context>
chip_gen: v6e
topology: v6e:2x2x1
jax: 0.10.0
libtpu: 0.0.40
codegen_flags: <defaults>
</compile_context>

<pallas_src>
import jax
import jax.numpy as jnp
import numpy as np
from jax.experimental import pallas as pl
from jax.experimental.pallas import tpu as pltpu

_INV_SQRT2 = 0.7071067811865476


def _erf(x):
    # Abramowitz & Stegun 7.1.26 polynomial, |abs err| < 1.5e-7 (exact divide).
    # TODO(synk): switch to lax.erf if/when a Mosaic lowering is guaranteed.
    a1, a2, a3, a4, a5 = (0.254829592, -0.284496736, 1.421413741,
                          -1.453152027, 1.061405429)
    p = 0.3275911
    s = jnp.where(x >= 0.0, 1.0, -1.0)
    ax = jnp.abs(x)
    t = 1.0 / (1.0 + p * ax)
    poly = ((((a5 * t + a4) * t + a3) * t + a2) * t + a1) * t
    return s * (1.0 - poly * jnp.exp(-ax * ax))


def _gelu_exact(x):
    # nn.GELU() default (erf-based, not the tanh approximation).
    return 0.5 * x * (1.0 + _erf(x * _INV_SQRT2))


def _dft_kron(H, W):
    """Real / 'minus-imag' parts of kron(D_H, D_W), D = (cos - i*sin)/sqrt(n)."""
    def mats(n):
        k = np.arange(n)
        ang = 2.0 * np.pi * np.outer(k, k) / n
        return np.cos(ang) / np.sqrt(n), np.sin(ang) / np.sqrt(n)
    cH, sH = mats(H)
    cW, sW = mats(W)
    KR = np.kron(cH, cW) - np.kron(sH, sW)
    KI = np.kron(cH, sW) + np.kron(sH, cW)   # kron(D_H, D_W) = KR - i*KI
    return jnp.asarray(KR, jnp.float32), jnp.asarray(KI, jnp.float32)


def _pick_block_n(N, C, min_rows=128, max_rows=512):
    """Largest sublane-legal batch block with C*Bn in the MXU sweet spot.

    Legal Bn: divides N and is a multiple of 8 (sublane tile) or equals N
    (full-dim blocks are always legal).  Caps C*Bn at `max_rows` (the MXU is
    saturated well before that, and it bounds the per-step VMEM working set).
    Prefers >= 2 grid steps -- v7x has two TensorCores and the 'parallel' grid
    axis shards across them -- as long as that still leaves >= `min_rows`
    matmul rows per step (128 for v5e's 128x128 MXU; v6e/v7x like 256+).
    """
    cands = [bn for bn in range(1, N + 1)
             if N % bn == 0 and (bn % 8 == 0 or bn == N)]
    capped = [bn for bn in cands if bn * C <= max_rows] or [min(cands)]
    multi = [bn for bn in capped if N // bn >= 2 and bn * C >= min_rows]
    return max(multi) if multi else max(capped)


def _make_kernel(C, Bn, HW):
    C2 = 2 * C
    f32 = jnp.float32
    bf16 = jnp.bfloat16

    def kernel(alphas_ref, w1_ref, b1_ref, w2_ref, b2_ref, w3_ref, b3_ref,
               kr_ref, ki_ref, krb_ref, kib_ref, x_ref, out_ref):
        al = alphas_ref[0]          # alpha_low
        ah = alphas_ref[1]          # alpha_high

        # ---- fft2(norm='ortho') as one batched MXU matmul per real/imag part.
        # Kept in f32: the magnitude masks below are step functions and bf16
        # here can flip borderline bins relative to the fp32 fft2 reference.
        x2 = x_ref[...].astype(f32)                               # (C*Bn, HW)
        fr = jnp.dot(x2, kr_ref[...], preferred_element_type=f32)
        fi = -jnp.dot(x2, ki_ref[...], preferred_element_type=f32)

        # ---- magnitude masks + modulation; mean is per (n, c) == per row.
        m = jnp.sqrt(fr * fr + fi * fi)
        mm = jnp.mean(m, axis=-1, keepdims=True)                  # (C*Bn, 1)
        scale = jnp.where(m > mm, 1.0 + ah,
                          jnp.where(m <= 0.5 * mm, 1.0 + al, 1.0))
        fr = fr * scale
        fi = fi * scale

        # Per-channel (Bn, HW) views.  Input-channel order matches
        # torch.cat([real, imag], dim=1): [real_0..real_{C-1}, imag_0..imag_{C-1}].
        chans = ([fr[c * Bn:(c + 1) * Bn, :] for c in range(C)]
                 + [fi[c * Bn:(c + 1) * Bn, :] for c in range(C)])

        def mix(w_ref, b_ref, ins, o):
            # One output channel of a 1x1 conv: broadcast-FMAs on the VPU with
            # scalar weights from SMEM (C is tiny; a block-diagonal MXU matmul
            # would waste a (Bn-1)/Bn fraction of its FLOPs).
            acc = w_ref[o, 0] * ins[0]
            for ci in range(1, len(ins)):
                acc = acc + w_ref[o, ci] * ins[ci]
            return acc + b_ref[o]

        # ---- freq_conv1 (1x1) + exact GELU.
        g = [_gelu_exact(mix(w1_ref, b1_ref, chans, o)) for o in range(C2)]

        # ---- freq_conv2 (1x1), assembled straight into real/imag slabs
        # (no cat/chunk round-trip through a (2*C*Bn, HW) buffer).
        zr = jnp.concatenate([mix(w2_ref, b2_ref, g, o) for o in range(C)],
                             axis=0)                               # (C*Bn, HW)
        zi = jnp.concatenate([mix(w2_ref, b2_ref, g, o) for o in range(C, C2)],
                             axis=0)

        # ---- ifft2(norm='ortho'), real part: bf16 operands, f32 accumulation.
        y = (jnp.dot(zr.astype(bf16), krb_ref[...], preferred_element_type=f32)
             - jnp.dot(zi.astype(bf16), kib_ref[...], preferred_element_type=f32))
        ys = [y[c * Bn:(c + 1) * Bn, :] for c in range(C)]

        # ---- spatial 1x1 conv -> sigmoid gate -> modulate the (re-read) input.
        for o in range(C):
            pre = mix(w3_ref, b3_ref, ys, o)
            gate = 1.0 / (1.0 + jnp.exp(-pre))
            xo = x_ref[pl.ds(o * Bn, Bn), :].astype(f32)   # re-read VMEM block
            out_ref[pl.ds(o * Bn, Bn), :] = (xo * gate).astype(out_ref.dtype)

    return kernel


def frequency_domain_modulator(x, params, block_n=None):
    """x: (N, C, H, W) float32.  params: (alphas, w1, b1, w2, b2, w3, b3)."""
    alphas, w1, b1, w2, b2, w3, b3 = params
    N, C, H, W = x.shape
    HW = H * W

    Bn = _pick_block_n(N, C) if block_n is None else block_n
    assert N % Bn == 0
    G = N // Bn
    BC = C * Bn

    KR, KI = _dft_kron(H, W)                       # f32 copies (forward DFT)
    KRb = KR.astype(jnp.bfloat16)                  # bf16 copies (inverse DFT)
    KIb = KI.astype(jnp.bfloat16)

    # Host-side layout plumbing: grid-major / channel-major / sample-minor rows
    # so each grid step reads one contiguous lane-dense (C*Bn, HW) slab and the
    # per-channel row groups inside it are contiguous.
    xs = (x.reshape(G, Bn, C, HW)
           .transpose(0, 2, 1, 3)
           .reshape(G * BC, HW))

    smem = pl.BlockSpec(memory_space=pltpu.MemorySpace.SMEM)
    dft_spec = pl.BlockSpec((HW, HW), lambda g: (0, 0))   # grid-invariant
    x_spec = pl.BlockSpec((BC, HW), lambda g: (g, 0))

    out2 = pl.pallas_call(
        _make_kernel(C, Bn, HW),
        out_shape=jax.ShapeDtypeStruct((G * BC, HW), x.dtype),
        grid=(G,),
        in_specs=[smem, smem, smem, smem, smem, smem, smem,
                  dft_spec, dft_spec, dft_spec, dft_spec,
                  x_spec],
        out_specs=pl.BlockSpec((BC, HW), lambda g: (g, 0)),
        compiler_params=pltpu.CompilerParams(
            dimension_semantics=("parallel",),       # disjoint output blocks per g
            vmem_limit_bytes=32 * 1024 * 1024),
    )(jnp.asarray(alphas, jnp.float32),
      jnp.asarray(w1, jnp.float32), jnp.asarray(b1, jnp.float32),
      jnp.asarray(w2, jnp.float32), jnp.asarray(b2, jnp.float32),
      jnp.asarray(w3, jnp.float32), jnp.asarray(b3, jnp.float32),
      KR, KI, KRb, KIb, xs)

    return (out2.reshape(G, C, Bn, HW)
                .transpose(0, 2, 1, 3)
                .reshape(N, C, H, W))


def _reference(x, params):
    """Pure-JAX mirror of the PyTorch forward (uses jnp.fft + exact erf)."""
    alphas, w1, b1, w2, b2, w3, b3 = params
    al, ah = alphas[0], alphas[1]
    f = jnp.fft.fft2(x, norm='ortho')
    m = jnp.abs(f)
    mm = m.mean(axis=(-2, -1), keepdims=True)
    mask_high = (m > mm).astype(m.dtype)
    mask_low = (m <= 0.5 * mm).astype(m.dtype)
    scale = 1.0 + al * mask_low + ah * mask_high
    f2 = f * scale
    freq_in = jnp.concatenate([f2.real, f2.imag], axis=1)
    z = jnp.einsum('oi,nihw->nohw', w1, freq_in) + b1[None, :, None, None]
    z = 0.5 * z * (1.0 + jax.scipy.special.erf(z / jnp.sqrt(2.0)))
    z = jnp.einsum('oi,nihw->nohw', w2, z) + b2[None, :, None, None]
    rz, iz = jnp.split(z, 2, axis=1)
    y = jnp.fft.ifft2(rz + 1j * iz, norm='ortho').real
    gate = jax.nn.sigmoid(
        jnp.einsum('oi,nihw->nohw', w3, y) + b3[None, :, None, None])
    return x * gate


if __name__ == "__main__":
    N, C, H, W = 2, 4, 16, 16
    C2 = 2 * C

    key = jax.random.PRNGKey(0)
    kx, k1, k2, k3 = jax.random.split(key, 4)
    x = jax.random.normal(kx, (N, C, H, W), jnp.float32)

    # Deterministic parameter init mirroring __init__:
    #   kaiming_normal_(fan_in) for 1x1 conv weights, zero biases, alphas = 0.5
    w1 = jax.random.normal(k1, (C2, C2), jnp.float32) * np.sqrt(2.0 / C2)
    w2 = jax.random.normal(k2, (C2, C2), jnp.float32) * np.sqrt(2.0 / C2)
    w3 = jax.random.normal(k3, (C, C), jnp.float32) * np.sqrt(2.0 / C)
    b1 = jnp.zeros((C2,), jnp.float32)
    b2 = jnp.zeros((C2,), jnp.float32)
    b3 = jnp.zeros((C,), jnp.float32)
    alphas = jnp.array([0.5, 0.5], jnp.float32)  # [alpha_low, alpha_high]
    params = (alphas, w1, b1, w2, b2, w3, b3)

    out = frequency_domain_modulator(x, params)
    out = jax.block_until_ready(out)

    ref = _reference(x, params)
    np.testing.assert_allclose(np.asarray(out), np.asarray(ref),
                               atol=2e-2, rtol=0.0)
    print("KERNEL_OK")
</pallas_src>

<mosaic_0001>
module attributes {stable_mosaic.version = 11 : i64} {
  func.func @kernel(%arg0: i32, %arg1: memref<2xf32, #tpu.memory_space<smem>>, %arg2: memref<8x8xf32, #tpu.memory_space<smem>>, %arg3: memref<8xf32, #tpu.memory_space<smem>>, %arg4: memref<8x8xf32, #tpu.memory_space<smem>>, %arg5: memref<8xf32, #tpu.memory_space<smem>>, %arg6: memref<4x4xf32, #tpu.memory_space<smem>>, %arg7: memref<4xf32, #tpu.memory_space<smem>>, %arg8: memref<256x256xf32, #tpu.memory_space<vmem>>, %arg9: memref<256x256xf32, #tpu.memory_space<vmem>>, %arg10: memref<256x256xbf16, #tpu.memory_space<vmem>>, %arg11: memref<256x256xbf16, #tpu.memory_space<vmem>>, %arg12: memref<8x256xf32, #tpu.memory_space<vmem>>, %arg13: memref<8x256xf32, #tpu.memory_space<vmem>>) attributes {dimension_semantics = [#tpu.dimension_semantics<parallel>], iteration_bounds = array<i64: 1>, scalar_prefetch = 0 : i64, scratch_operands = 0 : i64, tpu.core_type = #tpu.core_type<tc>, window_params = [{transform_indices = @transform_0, window_bounds = array<i64: 2>}, {transform_indices = @transform_1, window_bounds = array<i64: 8, 8>}, {transform_indices = @transform_2, window_bounds = array<i64: 8>}, {transform_indices = @transform_3, window_bounds = array<i64: 8, 8>}, {transform_indices = @transform_4, window_bounds = array<i64: 8>}, {transform_indices = @transform_5, window_bounds = array<i64: 4, 4>}, {transform_indices = @transform_6, window_bounds = array<i64: 4>}, {pipeline_mode = #tpu.pipeline_mode<synchronous>, transform_indices = @transform_7, window_bounds = array<i64: 256, 256>}, {pipeline_mode = #tpu.pipeline_mode<synchronous>, transform_indices = @transform_8, window_bounds = array<i64: 256, 256>}, {pipeline_mode = #tpu.pipeline_mode<synchronous>, transform_indices = @transform_9, window_bounds = array<i64: 256, 256>}, {pipeline_mode = #tpu.pipeline_mode<synchronous>, transform_indices = @transform_10, window_bounds = array<i64: 256, 256>}, {transform_indices = @transform_11, window_bounds = array<i64: 8, 256>}, {transform_indices = @transform_12, window_bounds = array<i64: 8, 256>}]} {
    %c0 = arith.constant 0 : index
    %0 = memref.load %arg1[%c0] : memref<2xf32, #tpu.memory_space<smem>>
    %c1 = arith.constant 1 : index
    %1 = memref.load %arg1[%c1] : memref<2xf32, #tpu.memory_space<smem>>
    %c0_0 = arith.constant 0 : index
    %c0_1 = arith.constant 0 : index
    %2 = vector.load %arg12[%c0_0, %c0_1] : memref<8x256xf32, #tpu.memory_space<vmem>>, vector<8x256xf32>
    %c0_2 = arith.constant 0 : index
    %c0_3 = arith.constant 0 : index
    %3 = vector.load %arg8[%c0_2, %c0_3] : memref<256x256xf32, #tpu.memory_space<vmem>>, vector<256x256xf32>
    %cst = arith.constant dense<0.000000e+00> : vector<8x256xf32>
    %4 = tpu.matmul %2, %3, %cst {dimension_numbers = #tpu.dot_dimension_numbers<[1], [0], [0], [1], [0, 0, 1, 1], [], []>} : vector<8x256xf32>, vector<256x256xf32>, vector<8x256xf32> -> vector<8x256xf32>
    %c0_4 = arith.constant 0 : index
    %c0_5 = arith.constant 0 : index
    %5 = vector.load %arg9[%c0_4, %c0_5] : memref<256x256xf32, #tpu.memory_space<vmem>>, vector<256x256xf32>
    %cst_6 = arith.constant dense<0.000000e+00> : vector<8x256xf32>
    %6 = tpu.matmul %2, %5, %cst_6 {dimension_numbers = #tpu.dot_dimension_numbers<[1], [0], [0], [1], [0, 0, 1, 1], [], []>} : vector<8x256xf32>, vector<256x256xf32>, vector<8x256xf32> -> vector<8x256xf32>
    %cst_7 = arith.constant 0.000000e+00 : f32
    %7 = vector.broadcast %cst_7 : f32 to vector<8x256xf32>
    %8 = arith.subf %7, %6 : vector<8x256xf32>
    %9 = arith.mulf %4, %4 : vector<8x256xf32>
    %10 = arith.mulf %8, %8 : vector<8x256xf32>
    %11 = arith.addf %9, %10 : vector<8x256xf32>
    %12 = math.sqrt %11 : vector<8x256xf32>
    %cst_8 = arith.constant dense<0.000000e+00> : vector<8xf32>
    %13 = vector.multi_reduction <add>, %12, %cst_8 [1] : vector<8x256xf32> to vector<8xf32>
    %14 = vector.shape_cast %13 : vector<8xf32> to vector<8x1xf32>
    %cst_9 = arith.constant 2.560000e+02 : f32
    %15 = vector.broadcast %cst_9 : f32 to vector<8x1xf32>
    %16 = arith.divf %14, %15 : vector<8x1xf32>
    %17 = vector.broadcast %16 : vector<8x1xf32> to vector<8x256xf32>
    %18 = arith.cmpf ogt, %12, %17 : vector<8x256xf32>
    %cst_10 = arith.constant 1.000000e+00 : f32
    %19 = arith.addf %cst_10, %1 : f32
    %cst_11 = arith.constant 5.000000e-01 : f32
    %20 = vector.broadcast %cst_11 : f32 to vector<8x1xf32>
    %21 = arith.mulf %20, %16 : vector<8x1xf32>
    %22 = vector.broadcast %21 : vector<8x1xf32> to vector<8x256xf32>
    %23 = arith.cmpf ole, %12, %22 : vector<8x256xf32>
    %cst_12 = arith.constant 1.000000e+00 : f32
    %24 = arith.addf %cst_12, %0 : f32
    %cst_13 = arith.constant 1.000000e+00 : f32
    %25 = vector.broadcast %24 : f32 to vector<8x256xf32>
    %26 = vector.broadcast %cst_13 : f32 to vector<8x256xf32>
    %27 = arith.select %23, %25, %26 : vector<8x256xi1>, vector<8x256xf32>
    %28 = vector.broadcast %19 : f32 to vector<8x256xf32>
    %29 = arith.select %18, %28, %27 : vector<8x256xi1>, vector<8x256xf32>
    %30 = arith.mulf %4, %29 : vector<8x256xf32>
    %31 = arith.mulf %8, %29 : vector<8x256xf32>
    %32 = vector.extract_strided_slice %30 {offsets = [0, 0], sizes = [2, 256], strides = [1, 1]} : vector<8x256xf32> to vector<2x256xf32>
    %33 = vector.extract_strided_slice %30 {offsets = [2, 0], sizes = [2, 256], strides = [1, 1]} : vector<8x256xf32> to vector<2x256xf32>
    %34 = vector.extract_strided_slice %30 {offsets = [4, 0], sizes = [2, 256], strides = [1, 1]} : vector<8x256xf32> to vector<2x256xf32>
    %35 = vector.extract_strided_slice %30 {offsets = [6, 0], sizes = [2, 256], strides = [1, 1]} : vector<8x256xf32> to vector<2x256xf32>
    %36 = vector.extract_strided_slice %31 {offsets = [0, 0], sizes = [2, 256], strides = [1, 1]} : vector<8x256xf32> to vector<2x256xf32>
    %37 = vector.extract_strided_slice %31 {offsets = [2, 0], sizes = [2, 256], strides = [1, 1]} : vector<8x256xf32> to vector<2x256xf32>
    %38 = vector.extract_strided_slice %31 {offsets = [4, 0], sizes = [2, 256], strides = [1, 1]} : vector<8x256xf32> to vector<2x256xf32>
    %39 = vector.extract_strided_slice %31 {offsets = [6, 0], sizes = [2, 256], strides = [1, 1]} : vector<8x256xf32> to vector<2x256xf32>
    %c0_14 = arith.constant 0 : index
    %c0_15 = arith.constant 0 : index
    %40 = memref.load %arg2[%c0_14, %c0_15] : memref<8x8xf32, #tpu.memory_space<smem>>
    %41 = vector.broadcast %40 : f32 to vector<2x256xf32>
    %42 = arith.mulf %41, %32 : vector<2x256xf32>
    %c0_16 = arith.constant 0 : index
    %c1_17 = arith.constant 1 : index
    %43 = memref.load %arg2[%c0_16, %c1_17] : memref<8x8xf32, #tpu.memory_space<smem>>
    %44 = vector.broadcast %43 : f32 to vector<2x256xf32>
    %45 = arith.mulf %44, %33 : vector<2x256xf32>
    %46 = arith.addf %42, %45 : vector<2x256xf32>
    %c0_18 = arith.constant 0 : index
    %c2 = arith.constant 2 : index
    %47 = memref.load %arg2[%c0_18, %c2] : memref<8x8xf32, #tpu.memory_space<smem>>
    %48 = vector.broadcast %47 : f32 to vector<2x256xf32>
    %49 = arith.mulf %48, %34 : vector<2x256xf32>
    %50 = arith.addf %46, %49 : vector<2x256xf32>
    %c0_19 = arith.constant 0 : index
    %c3 = arith.constant 3 : index
    %51 = memref.load %arg2[%c0_19, %c3] : memref<8x8xf32, #tpu.memory_space<smem>>
    %52 = vector.broadcast %51 : f32 to vector<2x256xf32>
    %53 = arith.mulf %52, %35 : vector<2x256xf32>
    %54 = arith.addf %50, %53 : vector<2x256xf32>
    %c0_20 = arith.constant 0 : index
    %c4 = arith.constant 4 : index
    %55 = memref.load %arg2[%c0_20, %c4] : memref<8x8xf32, #tpu.memory_space<smem>>
    %56 = vector.broadcast %55 : f32 to vector<2x256xf32>
    %57 = arith.mulf %56, %36 : vector<2x256xf32>
    %58 = arith.addf %54, %57 : vector<2x256xf32>
    %c0_21 = arith.constant 0 : index
    %c5 = arith.constant 5 : index
    %59 = memref.load %arg2[%c0_21, %c5] : memref<8x8xf32, #tpu.memory_space<smem>>
    %60 = vector.broadcast %59 : f32 to vector<2x256xf32>
    %61 = arith.mulf %60, %37 : vector<2x256xf32>
    %62 = arith.addf %58, %61 : vector<2x256xf32>
    %c0_22 = arith.constant 0 : index
    %c6 = arith.constant 6 : index
    %63 = memref.load %arg2[%c0_22, %c6] : memref<8x8xf32, #tpu.memory_space<smem>>
    %64 = vector.broadcast %63 : f32 to vector<2x256xf32>
    %65 = arith.mulf %64, %38 : vector<2x256xf32>
    %66 = arith.addf %62, %65 : vector<2x256xf32>
    %c0_23 = arith.constant 0 : index
    %c7 = arith.constant 7 : index
    %67 = memref.load %arg2[%c0_23, %c7] : memref<8x8xf32, #tpu.memory_space<smem>>
    %68 = vector.broadcast %67 : f32 to vector<2x256xf32>
    %69 = arith.mulf %68, %39 : vector<2x256xf32>
    %70 = arith.addf %66, %69 : vector<2x256xf32>
    %c0_24 = arith.constant 0 : index
    %71 = memref.load %arg3[%c0_24] : memref<8xf32, #tpu.memory_space<smem>>
    %72 = vector.broadcast %71 : f32 to vector<2x256xf32>
    %73 = arith.addf %70, %72 : vector<2x256xf32>
    %cst_25 = arith.constant 5.000000e-01 : f32
    %74 = vector.broadcast %cst_25 : f32 to vector<2x256xf32>
    %75 = arith.mulf %74, %73 : vector<2x256xf32>
    %cst_26 = arith.constant 0.707106769 : f32
    %76 = vector.broadcast %cst_26 : f32 to vector<2x256xf32>
    %77 = arith.mulf %73, %76 : vector<2x256xf32>
    %cst_27 = arith.constant 0.000000e+00 : f32
    %78 = vector.broadcast %cst_27 : f32 to vector<2x256xf32>
    %79 = arith.cmpf oge, %77, %78 : vector<2x256xf32>
    %cst_28 = arith.constant 1.000000e+00 : f32
    %cst_29 = arith.constant -1.000000e+00 : f32
    %80 = vector.broadcast %cst_28 : f32 to vector<2x256xf32>
    %81 = vector.broadcast %cst_29 : f32 to vector<2x256xf32>
    %82 = arith.select %79, %80, %81 : vector<2x256xi1>, vector<2x256xf32>
    %83 = math.absf %77 : vector<2x256xf32>
    %cst_30 = arith.constant 0.327591091 : f32
    %84 = vector.broadcast %cst_30 : f32 to vector<2x256xf32>
    %85 = arith.mulf %84, %83 : vector<2x256xf32>
    %cst_31 = arith.constant 1.000000e+00 : f32
    %86 = vector.broadcast %cst_31 : f32 to vector<2x256xf32>
    %87 = arith.addf %86, %85 : vector<2x256xf32>
    %cst_32 = arith.constant 1.000000e+00 : f32
    %88 = vector.broadcast %cst_32 : f32 to vector<2x256xf32>
    %89 = arith.divf %88, %87 : vector<2x256xf32>
    %cst_33 = arith.constant 1.06140542 : f32
    %90 = vector.broadcast %cst_33 : f32 to vector<2x256xf32>
    %91 = arith.mulf %90, %89 : vector<2x256xf32>
    %cst_34 = arith.constant -1.45315206 : f32
    %92 = vector.broadcast %cst_34 : f32 to vector<2x256xf32>
    %93 = arith.addf %91, %92 : vector<2x256xf32>
    %94 = arith.mulf %93, %89 : vector<2x256xf32>
    %cst_35 = arith.constant 1.42141378 : f32
    %95 = vector.broadcast %cst_35 : f32 to vector<2x256xf32>
    %96 = arith.addf %94, %95 : vector<2x256xf32>
    %97 = arith.mulf %96, %89 : vector<2x256xf32>
    %cst_36 = arith.constant -0.284496725 : f32
    %98 = vector.broadcast %cst_36 : f32 to vector<2x256xf32>
    %99 = arith.addf %97, %98 : vector<2x256xf32>
    %100 = arith.mulf %99, %89 : vector<2x256xf32>
    %cst_37 = arith.constant 0.254829586 : f32
    %101 = vector.broadcast %cst_37 : f32 to vector<2x256xf32>
    %102 = arith.addf %100, %101 : vector<2x256xf32>
    %103 = arith.mulf %102, %89 : vector<2x256xf32>
    %cst_38 = arith.constant 0.000000e+00 : f32
    %104 = vector.broadcast %cst_38 : f32 to vector<2x256xf32>
    %105 = arith.subf %104, %83 : vector<2x256xf32>
    %106 = arith.mulf %105, %83 : vector<2x256xf32>
    %107 = math.exp %106 : vector<2x256xf32>
    %108 = arith.mulf %103, %107 : vector<2x256xf32>
    %cst_39 = arith.constant 1.000000e+00 : f32
    %109 = vector.broadcast %cst_39 : f32 to vector<2x256xf32>
    %110 = arith.subf %109, %108 : vector<2x256xf32>
    %111 = arith.mulf %82, %110 : vector<2x256xf32>
    %cst_40 = arith.constant 1.000000e+00 : f32
    %112 = vector.broadcast %cst_40 : f32 to vector<2x256xf32>
    %113 = arith.addf %112, %111 : vector<2x256xf32>
    %114 = arith.mulf %75, %113 : vector<2x256xf32>
    %c1_41 = arith.constant 1 : index
    %c0_42 = arith.constant 0 : index
    %115 = memref.load %arg2[%c1_41, %c0_42] : memref<8x8xf32, #tpu.memory_space<smem>>
    %116 = vector.broadcast %115 : f32 to vector<2x256xf32>
    %117 = arith.mulf %116, %32 : vector<2x256xf32>
    %c1_43 = arith.constant 1 : index
    %c1_44 = arith.constant 1 : index
    %118 = memref.load %arg2[%c1_43, %c1_44] : memref<8x8xf32, #tpu.memory_space<smem>>
    %119 = vector.broadcast %118 : f32 to vector<2x256xf32>
    %120 = arith.mulf %119, %33 : vector<2x256xf32>
    %121 = arith.addf %117, %120 : vector<2x256xf32>
    %c1_45 = arith.constant 1 : index
    %c2_46 = arith.constant 2 : index
    %122 = memref.load %arg2[%c1_45, %c2_46] : memref<8x8xf32, #tpu.memory_space<smem>>
    %123 = vector.broadcast %122 : f32 to vector<2x256xf32>
    %124 = arith.mulf %123, %34 : vector<2x256xf32>
    %125 = arith.addf %121, %124 : vector<2x256xf32>
    %c1_47 = arith.constant 1 : index
    %c3_48 = arith.constant 3 : index
    %126 = memref.load %arg2[%c1_47, %c3_48] : memref<8x8xf32, #tpu.memory_space<smem>>
    %127 = vector.broadcast %126 : f32 to vector<2x256xf32>
    %128 = arith.mulf %127, %35 : vector<2x256xf32>
    %129 = arith.addf %125, %128 : vector<2x256xf32>
    %c1_49 = arith.constant 1 : index
    %c4_50 = arith.constant 4 : index
    %130 = memref.load %arg2[%c1_49, %c4_50] : memref<8x8xf32, #tpu.memory_space<smem>>
    %131 = vector.broadcast %130 : f32 to vector<2x256xf32>
    %132 = arith.mulf %131, %36 : vector<2x256xf32>
    %133 = arith.addf %129, %132 : vector<2x256xf32>
    %c1_51 = arith.constant 1 : index
    %c5_52 = arith.constant 5 : index
    %134 = memref.load %arg2[%c1_51, %c5_52] : memref<8x8xf32, #tpu.memory_space<smem>>
    %135 = vector.broadcast %134 : f32 to vector<2x256xf32>
    %136 = arith.mulf %135, %37 : vector<2x256xf32>
    %137 = arith.addf %133, %136 : vector<2x256xf32>
    %c1_53 = arith.constant 1 : index
    %c6_54 = arith.constant 6 : index
    %138 = memref.load %arg2[%c1_53, %c6_54] : memref<8x8xf32, #tpu.memory_space<smem>>
    %139 = vector.broadcast %138 : f32 to vector<2x256xf32>
    %140 = arith.mulf %139, %38 : vector<2x256xf32>
    %141 = arith.addf %137, %140 : vector<2x256xf32>
    %c1_55 = arith.constant 1 : index
    %c7_56 = arith.constant 7 : index
    %142 = memref.load %arg2[%c1_55, %c7_56] : memref<8x8xf32, #tpu.memory_space<smem>>
    %143 = vector.broadcast %142 : f32 to vector<2x256xf32>
    %144 = arith.mulf %143, %39 : vector<2x256xf32>
    %145 = arith.addf %141, %144 : vector<2x256xf32>
    %c1_57 = arith.constant 1 : index
    %146 = memref.load %arg3[%c1_57] : memref<8xf32, #tpu.memory_space<smem>>
    %147 = vector.broadcast %146 : f32 to vector<2x256xf32>
    %148 = arith.addf %145, %147 : vector<2x256xf32>
    %cst_58 = arith.constant 5.000000e-01 : f32
    %149 = vector.broadcast %cst_58 : f32 to vector<2x256xf32>
    %150 = arith.mulf %149, %148 : vector<2x256xf32>
    %cst_59 = arith.constant 0.707106769 : f32
    %151 = vector.broadcast %cst_59 : f32 to vector<2x256xf32>
    %152 = arith.mulf %148, %151 : vector<2x256xf32>
    %cst_60 = arith.constant 0.000000e+00 : f32
    %153 = vector.broadcast %cst_60 : f32 to vector<2x256xf32>
    %154 = arith.cmpf oge, %152, %153 : vector<2x256xf32>
    %cst_61 = arith.constant 1.000000e+00 : f32
    %cst_62 = arith.constant -1.000000e+00 : f32
    %155 = vector.broadcast %cst_61 : f32 to vector<2x256xf32>
    %156 = vector.broadcast %cst_62 : f32 to vector<2x256xf32>
    %157 = arith.select %154, %155, %156 : vector<2x256xi1>, vector<2x256xf32>
    %158 = math.absf %152 : vector<2x256xf32>
    %cst_63 = arith.constant 0.327591091 : f32
    %159 = vector.broadcast %cst_63 : f32 to vector<2x256xf32>
    %160 = arith.mulf %159, %158 : vector<2x256xf32>
    %cst_64 = arith.constant 1.000000e+00 : f32
    %161 = vector.broadcast %cst_64 : f32 to vector<2x256xf32>
    %162 = arith.addf %161, %160 : vector<2x256xf32>
    %cst_65 = arith.constant 1.000000e+00 : f32
    %163 = vector.broadcast %cst_65 : f32 to vector<2x256xf32>
    %164 = arith.divf %163, %162 : vector<2x256xf32>
    %cst_66 = arith.constant 1.06140542 : f32
    %165 = vector.broadcast %cst_66 : f32 to vector<2x256xf32>
    %166 = arith.mulf %165, %164 : vector<2x256xf32>
    %cst_67 = arith.constant -1.45315206 : f32
    %167 = vector.broadcast %cst_67 : f32 to vector<2x256xf32>
    %168 = arith.addf %166, %167 : vector<2x256xf32>
    %169 = arith.mulf %168, %164 : vector<2x256xf32>
    %cst_68 = arith.constant 1.42141378 : f32
    %170 = vector.broadcast %cst_68 : f32 to vector<2x256xf32>
    %171 = arith.addf %169, %170 : vector<2x256xf32>
    %172 = arith.mulf %171, %164 : vector<2x256xf32>
    %cst_69 = arith.constant -0.284496725 : f32
    %173 = vector.broadcast %cst_69 : f32 to vector<2x256xf32>
    %174 = arith.addf %172, %173 : vector<2x256xf32>
    %175 = arith.mulf %174, %164 : vector<2x256xf32>
    %cst_70 = arith.constant 0.254829586 : f32
    %176 = vector.broadcast %cst_70 : f32 to vector<2x256xf32>
    %177 = arith.addf %175, %176 : vector<2x256xf32>
    %178 = arith.mulf %177, %164 : vector<2x256xf32>
    %cst_71 = arith.constant 0.000000e+00 : f32
    %179 = vector.broadcast %cst_71 : f32 to vector<2x256xf32>
    %180 = arith.subf %179, %158 : vector<2x256xf32>
    %181 = arith.mulf %180, %158 : vector<2x256xf32>
    %182 = math.exp %181 : vector<2x256xf32>
    %183 = arith.mulf %178, %182 : vector<2x256xf32>
    %cst_72 = arith.constant 1.000000e+00 : f32
    %184 = vector.broadcast %cst_72 : f32 to vector<2x256xf32>
    %185 = arith.subf %184, %183 : vector<2x256xf32>
    %186 = arith.mulf %157, %185 : vector<2x256xf32>
    %cst_73 = arith.constant 1.000000e+00 : f32
    %187 = vector.broadcast %cst_73 : f32 to vector<2x256xf32>
    %188 = arith.addf %187, %186 : vector<2x256xf32>
    %189 = arith.mulf %150, %188 : vector<2x256xf32>
    %c2_74 = arith.constant 2 : index
    %c0_75 = arith.constant 0 : index
    %190 = memref.load %arg2[%c2_74, %c0_75] : memref<8x8xf32, #tpu.memory_space<smem>>
    %191 = vector.broadcast %190 : f32 to vector<2x256xf32>
    %192 = arith.mulf %191, %32 : vector<2x256xf32>
    %c2_76 = arith.constant 2 : index
    %c1_77 = arith.constant 1 : index
    %193 = memref.load %arg2[%c2_76, %c1_77] : memref<8x8xf32, #tpu.memory_space<smem>>
    %194 = vector.broadcast %193 : f32 to vector<2x256xf32>
    %195 = arith.mulf %194, %33 : vector<2x256xf32>
    %196 = arith.addf %192, %195 : vector<2x256xf32>
    %c2_78 = arith.constant 2 : index
    %c2_79 = arith.constant 2 : index
    %197 = memref.load %arg2[%c2_78, %c2_79] : memref<8x8xf32, #tpu.memory_space<smem>>
    %198 = vector.broadcast %197 : f32 to vector<2x256xf32>
    %199 = arith.mulf %198, %34 : vector<2x256xf32>
    %200 = arith.addf %196, %199 : vector<2x256xf32>
    %c2_80 = arith.constant 2 : index
    %c3_81 = arith.constant 3 : index
    %201 = memref.load %arg2[%c2_80, %c3_81] : memref<8x8xf32, #tpu.memory_space<smem>>
    %202 = vector.broadcast %201 : f32 to vector<2x256xf32>
    %203 = arith.mulf %202, %35 : vector<2x256xf32>
    %204 = arith.addf %200, %203 : vector<2x256xf32>
    %c2_82 = arith.constant 2 : index
    %c4_83 = arith.constant 4 : index
    %205 = memref.load %arg2[%c2_82, %c4_83] : memref<8x8xf32, #tpu.memory_space<smem>>
    %206 = vector.broadcast %205 : f32 to vector<2x256xf32>
    %207 = arith.mulf %206, %36 : vector<2x256xf32>
    %208 = arith.addf %204, %207 : vector<2x256xf32>
    %c2_84 = arith.constant 2 : index
    %c5_85 = arith.constant 5 : index
    %209 = memref.load %arg2[%c2_84, %c5_85] : memref<8x8xf32, #tpu.memory_space<smem>>
    %210 = vector.broadcast %209 : f32 to vector<2x256xf32>
    %211 = arith.mulf %210, %37 : vector<2x256xf32>
    %212 = arith.addf %208, %211 : vector<2x256xf32>
    %c2_86 = arith.constant 2 : index
    %c6_87 = arith.constant 6 : index
    %213 = memref.load %arg2[%c2_86, %c6_87] : memref<8x8xf32, #tpu.memory_space<smem>>
    %214 = vector.broadcast %213 : f32 to vector<2x256xf32>
    %215 = arith.mulf %214, %38 : vector<2x256xf32>
    %216 = arith.addf %212, %215 : vector<2x256xf32>
    %c2_88 = arith.constant 2 : index
    %c7_89 = arith.constant 7 : index
    %217 = memref.load %arg2[%c2_88, %c7_89] : memref<8x8xf32, #tpu.memory_space<smem>>
    %218 = vector.broadcast %217 : f32 to vector<2x256xf32>
    %219 = arith.mulf %218, %39 : vector<2x256xf32>
    %220 = arith.addf %216, %219 : vector<2x256xf32>
    %c2_90 = arith.constant 2 : index
    %221 = memref.load %arg3[%c2_90] : memref<8xf32, #tpu.memory_space<smem>>
    %222 = vector.broadcast %221 : f32 to vector<2x256xf32>
    %223 = arith.addf %220, %222 : vector<2x256xf32>
    %cst_91 = arith.constant 5.000000e-01 : f32
    %224 = vector.broadcast %cst_91 : f32 to vector<2x256xf32>
    %225 = arith.mulf %224, %223 : vector<2x256xf32>
    %cst_92 = arith.constant 0.707106769 : f32
    %226 = vector.broadcast %cst_92 : f32 to vector<2x256xf32>
    %227 = arith.mulf %223, %226 : vector<2x256xf32>
    %cst_93 = arith.constant 0.000000e+00 : f32
    %228 = vector.broadcast %cst_93 : f32 to vector<2x256xf32>
    %229 = arith.cmpf oge, %227, %228 : vector<2x256xf32>
    %cst_94 = arith.constant 1.000000e+00 : f32
    %cst_95 = arith.constant -1.000000e+00 : f32
    %230 = vector.broadcast %cst_94 : f32 to vector<2x256xf32>
    %231 = vector.broadcast %cst_95 : f32 to vector<2x256xf32>
    %232 = arith.select %229, %230, %231 : vector<2x256xi1>, vector<2x256xf32>
    %233 = math.absf %227 : vector<2x256xf32>
    %cst_96 = arith.constant 0.327591091 : f32
    %234 = vector.broadcast %cst_96 : f32 to vector<2x256xf32>
    %235 = arith.mulf %234, %233 : vector<2x256xf32>
    %cst_97 = arith.constant 1.000000e+00 : f32
    %236 = vector.broadcast %cst_97 : f32 to vector<2x256xf32>
    %237 = arith.addf %236, %235 : vector<2x256xf32>
    %cst_98 = arith.constant 1.000000e+00 : f32
    %238 = vector.broadcast %cst_98 : f32 to vector<2x256xf32>
    %239 = arith.divf %238, %237 : vector<2x256xf32>
    %cst_99 = arith.constant 1.06140542 : f32
    %240 = vector.broadcast %cst_99 : f32 to vector<2x256xf32>
    %241 = arith.mulf %240, %239 : vector<2x256xf32>
    %cst_100 = arith.constant -1.45315206 : f32
    %242 = vector.broadcast %cst_100 : f32 to vector<2x256xf32>
    %243 = arith.addf %241, %242 : vector<2x256xf32>
    %244 = arith.mulf %243, %239 : vector<2x256xf32>
    %cst_101 = arith.constant 1.42141378 : f32
    %245 = vector.broadcast %cst_101 : f32 to vector<2x256xf32>
    %246 = arith.addf %244, %245 : vector<2x256xf32>
    %247 = arith.mulf %246, %239 : vector<2x256xf32>
    %cst_102 = arith.constant -0.284496725 : f32
    %248 = vector.broadcast %cst_102 : f32 to vector<2x256xf32>
    %249 = arith.addf %247, %248 : vector<2x256xf32>
    %250 = arith.mulf %249, %239 : vector<2x256xf32>
    %cst_103 = arith.constant 0.254829586 : f32
    %251 = vector.broadcast %cst_103 : f32 to vector<2x256xf32>
    %252 = arith.addf %250, %251 : vector<2x256xf32>
    %253 = arith.mulf %252, %239 : vector<2x256xf32>
    %cst_104 = arith.constant 0.000000e+00 : f32
    %254 = vector.broadcast %cst_104 : f32 to vector<2x256xf32>
    %255 = arith.subf %254, %233 : vector<2x256xf32>
    %256 = arith.mulf %255, %233 : vector<2x256xf32>
    %257 = math.exp %256 : vector<2x256xf32>
    %258 = arith.mulf %253, %257 : vector<2x256xf32>
    %cst_105 = arith.constant 1.000000e+00 : f32
    %259 = vector.broadcast %cst_105 : f32 to vector<2x256xf32>
    %260 = arith.subf %259, %258 : vector<2x256xf32>
    %261 = arith.mulf %232, %260 : vector<2x256xf32>
    %cst_106 = arith.constant 1.000000e+00 : f32
    %262 = vector.broadcast %cst_106 : f32 to vector<2x256xf32>
    %263 = arith.addf %262, %261 : vector<2x256xf32>
    %264 = arith.mulf %225, %263 : vector<2x256xf32>
    %c3_107 = arith.constant 3 : index
    %c0_108 = arith.constant 0 : index
    %265 = memref.load %arg2[%c3_107, %c0_108] : memref<8x8xf32, #tpu.memory_space<smem>>
    %266 = vector.broadcast %265 : f32 to vector<2x256xf32>
    %267 = arith.mulf %266, %32 : vector<2x256xf32>
    %c3_109 = arith.constant 3 : index
    %c1_110 = arith.constant 1 : index
    %268 = memref.load %arg2[%c3_109, %c1_110] : memref<8x8xf32, #tpu.memory_space<smem>>
    %269 = vector.broadcast %268 : f32 to vector<2x256xf32>
    %270 = arith.mulf %269, %33 : vector<2x256xf32>
    %271 = arith.addf %267, %270 : vector<2x256xf32>
    %c3_111 = arith.constant 3 : index
    %c2_112 = arith.constant 2 : index
    %272 = memref.load %arg2[%c3_111, %c2_112] : memref<8x8xf32, #tpu.memory_space<smem>>
    %273 = vector.broadcast %272 : f32 to vector<2x256xf32>
    %274 = arith.mulf %273, %34 : vector<2x256xf32>
    %275 = arith.addf %271, %274 : vector<2x256xf32>
    %c3_113 = arith.constant 3 : index
    %c3_114 = arith.constant 3 : index
    %276 = memref.load %arg2[%c3_113, %c3_114] : memref<8x8xf32, #tpu.memory_space<smem>>
    %277 = vector.broadcast %276 : f32 to vector<2x256xf32>
    %278 = arith.mulf %277, %35 : vector<2x256xf32>
    %279 = arith.addf %275, %278 : vector<2x256xf32>
    %c3_115 = arith.constant 3 : index
    %c4_116 = arith.constant 4 : index
    %280 = memref.load %arg2[%c3_115, %c4_116] : memref<8x8xf32, #tpu.memory_space<smem>>
    %281 = vector.broadcast %280 : f32 to vector<2x256xf32>
    %282 = arith.mulf %281, %36 : vector<2x256xf32>
    %283 = arith.addf %279, %282 : vector<2x256xf32>
    %c3_117 = arith.constant 3 : index
    %c5_118 = arith.constant 5 : index
    %284 = memref.load %arg2[%c3_117, %c5_118] : memref<8x8xf32, #tpu.memory_space<smem>>
    %285 = vector.broadcast %284 : f32 to vector<2x256xf32>
    %286 = arith.mulf %285, %37 : vector<2x256xf32>
    %287 = arith.addf %283, %286 : vector<2x256xf32>
    %c3_119 = arith.constant 3 : index
    %c6_120 = arith.constant 6 : index
    %288 = memref.load %arg2[%c3_119, %c6_120] : memref<8x8xf32, #tpu.memory_space<smem>>
    %289 = vector.broadcast %288 : f32 to vector<2x256xf32>
    %290 = arith.mulf %289, %38 : vector<2x256xf32>
    %291 = arith.addf %287, %290 : vector<2x256xf32>
    %c3_121 = arith.constant 3 : index
    %c7_122 = arith.constant 7 : index
    %292 = memref.load %arg2[%c3_121, %c7_122] : memref<8x8xf32, #tpu.memory_space<smem>>
    %293 = vector.broadcast %292 : f32 to vector<2x256xf32>
    %294 = arith.mulf %293, %39 : vector<2x256xf32>
    %295 = arith.addf %291, %294 : vector<2x256xf32>
    %c3_123 = arith.constant 3 : index
    %296 = memref.load %arg3[%c3_123] : memref<8xf32, #tpu.memory_space<smem>>
    %297 = vector.broadcast %296 : f32 to vector<2x256xf32>
    %298 = arith.addf %295, %297 : vector<2x256xf32>
    %cst_124 = arith.constant 5.000000e-01 : f32
    %299 = vector.broadcast %cst_124 : f32 to vector<2x256xf32>
    %300 = arith.mulf %299, %298 : vector<2x256xf32>
    %cst_125 = arith.constant 0.707106769 : f32
    %301 = vector.broadcast %cst_125 : f32 to vector<2x256xf32>
    %302 = arith.mulf %298, %301 : vector<2x256xf32>
    %cst_126 = arith.constant 0.000000e+00 : f32
    %303 = vector.broadcast %cst_126 : f32 to vector<2x256xf32>
    %304 = arith.cmpf oge, %302, %303 : vector<2x256xf32>
    %cst_127 = arith.constant 1.000000e+00 : f32
    %cst_128 = arith.constant -1.000000e+00 : f32
    %305 = vector.broadcast %cst_127 : f32 to vector<2x256xf32>
    %306 = vector.broadcast %cst_128 : f32 to vector<2x256xf32>
    %307 = arith.select %304, %305, %306 : vector<2x256xi1>, vector<2x256xf32>
    %308 = math.absf %302 : vector<2x256xf32>
    %cst_129 = arith.constant 0.327591091 : f32
    %309 = vector.broadcast %cst_129 : f32 to vector<2x256xf32>
    %310 = arith.mulf %309, %308 : vector<2x256xf32>
    %cst_130 = arith.constant 1.000000e+00 : f32
    %311 = vector.broadcast %cst_130 : f32 to vector<2x256xf32>
    %312 = arith.addf %311, %310 : vector<2x256xf32>
    %cst_131 = arith.constant 1.000000e+00 : f32
    %313 = vector.broadcast %cst_131 : f32 to vector<2x256xf32>
    %314 = arith.divf %313, %312 : vector<2x256xf32>
    %cst_132 = arith.constant 1.06140542 : f32
    %315 = vector.broadcast %cst_132 : f32 to vector<2x256xf32>
    %316 = arith.mulf %315, %314 : vector<2x256xf32>
    %cst_133 = arith.constant -1.45315206 : f32
    %317 = vector.broadcast %cst_133 : f32 to vector<2x256xf32>
    %318 = arith.addf %316, %317 : vector<2x256xf32>
    %319 = arith.mulf %318, %314 : vector<2x256xf32>
    %cst_134 = arith.constant 1.42141378 : f32
    %320 = vector.broadcast %cst_134 : f32 to vector<2x256xf32>
    %321 = arith.addf %319, %320 : vector<2x256xf32>
    %322 = arith.mulf %321, %314 : vector<2x256xf32>
    %cst_135 = arith.constant -0.284496725 : f32
    %323 = vector.broadcast %cst_135 : f32 to vector<2x256xf32>
    %324 = arith.addf %322, %323 : vector<2x256xf32>
    %325 = arith.mulf %324, %314 : vector<2x256xf32>
    %cst_136 = arith.constant 0.254829586 : f32
    %326 = vector.broadcast %cst_136 : f32 to vector<2x256xf32>
    %327 = arith.addf %325, %326 : vector<2x256xf32>
    %328 = arith.mulf %327, %314 : vector<2x256xf32>
    %cst_137 = arith.constant 0.000000e+00 : f32
    %329 = vector.broadcast %cst_137 : f32 to vector<2x256xf32>
    %330 = arith.subf %329, %308 : vector<2x256xf32>
    %331 = arith.mulf %330, %308 : vector<2x256xf32>
    %332 = math.exp %331 : vector<2x256xf32>
    %333 = arith.mulf %328, %332 : vector<2x256xf32>
    %cst_138 = arith.constant 1.000000e+00 : f32
    %334 = vector.broadcast %cst_138 : f32 to vector<2x256xf32>
    %335 = arith.subf %334, %333 : vector<2x256xf32>
    %336 = arith.mulf %307, %335 : vector<2x256xf32>
    %cst_139 = arith.constant 1.000000e+00 : f32
    %337 = vector.broadcast %cst_139 : f32 to vector<2x256xf32>
    %338 = arith.addf %337, %336 : vector<2x256xf32>
    %339 = arith.mulf %300, %338 : vector<2x256xf32>
    %c4_140 = arith.constant 4 : index
    %c0_141 = arith.constant 0 : index
    %340 = memref.load %arg2[%c4_140, %c0_141] : memref<8x8xf32, #tpu.memory_space<smem>>
    %341 = vector.broadcast %340 : f32 to vector<2x256xf32>
    %342 = arith.mulf %341, %32 : vector<2x256xf32>
    %c4_142 = arith.constant 4 : index
    %c1_143 = arith.constant 1 : index
    %343 = memref.load %arg2[%c4_142, %c1_143] : memref<8x8xf32, #tpu.memory_space<smem>>
    %344 = vector.broadcast %343 : f32 to vector<2x256xf32>
    %345 = arith.mulf %344, %33 : vector<2x256xf32>
    %346 = arith.addf %342, %345 : vector<2x256xf32>
    %c4_144 = arith.constant 4 : index
    %c2_145 = arith.constant 2 : index
    %347 = memref.load %arg2[%c4_144, %c2_145] : memref<8x8xf32, #tpu.memory_space<smem>>
    %348 = vector.broadcast %347 : f32 to vector<2x256xf32>
    %349 = arith.mulf %348, %34 : vector<2x256xf32>
    %350 = arith.addf %346, %349 : vector<2x256xf32>
    %c4_146 = arith.constant 4 : index
    %c3_147 = arith.constant 3 : index
    %351 = memref.load %arg2[%c4_146, %c3_147] : memref<8x8xf32, #tpu.memory_space<smem>>
    %352 = vector.broadcast %351 : f32 to vector<2x256xf32>
    %353 = arith.mulf %352, %35 : vector<2x256xf32>
    %354 = arith.addf %350, %353 : vector<2x256xf32>
    %c4_148 = arith.constant 4 : index
    %c4_149 = arith.constant 4 : index
    %355 = memref.load %arg2[%c4_148, %c4_149] : memref<8x8xf32, #tpu.memory_space<smem>>
    %356 = vector.broadcast %355 : f32 to vector<2x256xf32>
    %357 = arith.mulf %356, %36 : vector<2x256xf32>
    %358 = arith.addf %354, %357 : vector<2x256xf32>
    %c4_150 = arith.constant 4 : index
    %c5_151 = arith.constant 5 : index
    %359 = memref.load %arg2[%c4_150, %c5_151] : memref<8x8xf32, #tpu.memory_space<smem>>
    %360 = vector.broadcast %359 : f32 to vector<2x256xf32>
    %361 = arith.mulf %360, %37 : vector<2x256xf32>
    %362 = arith.addf %358, %361 : vector<2x256xf32>
    %c4_152 = arith.constant 4 : index
    %c6_153 = arith.constant 6 : index
    %363 = memref.load %arg2[%c4_152, %c6_153] : memref<8x8xf32, #tpu.memory_space<smem>>
    %364 = vector.broadcast %363 : f32 to vector<2x256xf32>
    %365 = arith.mulf %364, %38 : vector<2x256xf32>
    %366 = arith.addf %362, %365 : vector<2x256xf32>
    %c4_154 = arith.constant 4 : index
    %c7_155 = arith.constant 7 : index
    %367 = memref.load %arg2[%c4_154, %c7_155] : memref<8x8xf32, #tpu.memory_space<smem>>
    %368 = vector.broadcast %367 : f32 to vector<2x256xf32>
    %369 = arith.mulf %368, %39 : vector<2x256xf32>
    %370 = arith.addf %366, %369 : vector<2x256xf32>
    %c4_156 = arith.constant 4 : index
    %371 = memref.load %arg3[%c4_156] : memref<8xf32, #tpu.memory_space<smem>>
    %372 = vector.broadcast %371 : f32 to vector<2x256xf32>
    %373 = arith.addf %370, %372 : vector<2x256xf32>
    %cst_157 = arith.constant 5.000000e-01 : f32
    %374 = vector.broadcast %cst_157 : f32 to vector<2x256xf32>
    %375 = arith.mulf %374, %373 : vector<2x256xf32>
    %cst_158 = arith.constant 0.707106769 : f32
    %376 = vector.broadcast %cst_158 : f32 to vector<2x256xf32>
    %377 = arith.mulf %373, %376 : vector<2x256xf32>
    %cst_159 = arith.constant 0.000000e+00 : f32
    %378 = vector.broadcast %cst_159 : f32 to vector<2x256xf32>
    %379 = arith.cmpf oge, %377, %378 : vector<2x256xf32>
    %cst_160 = arith.constant 1.000000e+00 : f32
    %cst_161 = arith.constant -1.000000e+00 : f32
    %380 = vector.broadcast %cst_160 : f32 to vector<2x256xf32>
    %381 = vector.broadcast %cst_161 : f32 to vector<2x256xf32>
    %382 = arith.select %379, %380, %381 : vector<2x256xi1>, vector<2x256xf32>
    %383 = math.absf %377 : vector<2x256xf32>
    %cst_162 = arith.constant 0.327591091 : f32
    %384 = vector.broadcast %cst_162 : f32 to vector<2x256xf32>
    %385 = arith.mulf %384, %383 : vector<2x256xf32>
    %cst_163 = arith.constant 1.000000e+00 : f32
    %386 = vector.broadcast %cst_163 : f32 to vector<2x256xf32>
    %387 = arith.addf %386, %385 : vector<2x256xf32>
    %cst_164 = arith.constant 1.000000e+00 : f32
    %388 = vector.broadcast %cst_164 : f32 to vector<2x256xf32>
    %389 = arith.divf %388, %387 : vector<2x256xf32>
    %cst_165 = arith.constant 1.06140542 : f32
    %390 = vector.broadcast %cst_165 : f32 to vector<2x256xf32>
    %391 = arith.mulf %390, %389 : vector<2x256xf32>
    %cst_166 = arith.constant -1.45315206 : f32
    %392 = vector.broadcast %cst_166 : f32 to vector<2x256xf32>
    %393 = arith.addf %391, %392 : vector<2x256xf32>
    %394 = arith.mulf %393, %389 : vector<2x256xf32>
    %cst_167 = arith.constant 1.42141378 : f32
    %395 = vector.broadcast %cst_167 : f32 to vector<2x256xf32>
    %396 = arith.addf %394, %395 : vector<2x256xf32>
    %397 = arith.mulf %396, %389 : vector<2x256xf32>
    %cst_168 = arith.constant -0.284496725 : f32
    %398 = vector.broadcast %cst_168 : f32 to vector<2x256xf32>
    %399 = arith.addf %397, %398 : vector<2x256xf32>
    %400 = arith.mulf %399, %389 : vector<2x256xf32>
    %cst_169 = arith.constant 0.254829586 : f32
    %401 = vector.broadcast %cst_169 : f32 to vector<2x256xf32>
    %402 = arith.addf %400, %401 : vector<2x256xf32>
    %403 = arith.mulf %402, %389 : vector<2x256xf32>
    %cst_170 = arith.constant 0.000000e+00 : f32
    %404 = vector.broadcast %cst_170 : f32 to vector<2x256xf32>
    %405 = arith.subf %404, %383 : vector<2x256xf32>
    %406 = arith.mulf %405, %383 : vector<2x256xf32>
    %407 = math.exp %406 : vector<2x256xf32>
    %408 = arith.mulf %403, %407 : vector<2x256xf32>
    %cst_171 = arith.constant 1.000000e+00 : f32
    %409 = vector.broadcast %cst_171 : f32 to vector<2x256xf32>
    %410 = arith.subf %409, %408 : vector<2x256xf32>
    %411 = arith.mulf %382, %410 : vector<2x256xf32>
    %cst_172 = arith.constant 1.000000e+00 : f32
    %412 = vector.broadcast %cst_172 : f32 to vector<2x256xf32>
    %413 = arith.addf %412, %411 : vector<2x256xf32>
    %414 = arith.mulf %375, %413 : vector<2x256xf32>
    %c5_173 = arith.constant 5 : index
    %c0_174 = arith.constant 0 : index
    %415 = memref.load %arg2[%c5_173, %c0_174] : memref<8x8xf32, #tpu.memory_space<smem>>
    %416 = vector.broadcast %415 : f32 to vector<2x256xf32>
    %417 = arith.mulf %416, %32 : vector<2x256xf32>
    %c5_175 = arith.constant 5 : index
    %c1_176 = arith.constant 1 : index
    %418 = memref.load %arg2[%c5_175, %c1_176] : memref<8x8xf32, #tpu.memory_space<smem>>
    %419 = vector.broadcast %418 : f32 to vector<2x256xf32>
    %420 = arith.mulf %419, %33 : vector<2x256xf32>
    %421 = arith.addf %417, %420 : vector<2x256xf32>
    %c5_177 = arith.constant 5 : index
    %c2_178 = arith.constant 2 : index
    %422 = memref.load %arg2[%c5_177, %c2_178] : memref<8x8xf32, #tpu.memory_space<smem>>
    %423 = vector.broadcast %422 : f32 to vector<2x256xf32>
    %424 = arith.mulf %423, %34 : vector<2x256xf32>
    %425 = arith.addf %421, %424 : vector<2x256xf32>
    %c5_179 = arith.constant 5 : index
    %c3_180 = arith.constant 3 : index
    %426 = memref.load %arg2[%c5_179, %c3_180] : memref<8x8xf32, #tpu.memory_space<smem>>
    %427 = vector.broadcast %426 : f32 to vector<2x256xf32>
    %428 = arith.mulf %427, %35 : vector<2x256xf32>
    %429 = arith.addf %425, %428 : vector<2x256xf32>
    %c5_181 = arith.constant 5 : index
    %c4_182 = arith.constant 4 : index
    %430 = memref.load %arg2[%c5_181, %c4_182] : memref<8x8xf32, #tpu.memory_space<smem>>
    %431 = vector.broadcast %430 : f32 to vector<2x256xf32>
    %432 = arith.mulf %431, %36 : vector<2x256xf32>
    %433 = arith.addf %429, %432 : vector<2x256xf32>
    %c5_183 = arith.constant 5 : index
    %c5_184 = arith.constant 5 : index
    %434 = memref.load %arg2[%c5_183, %c5_184] : memref<8x8xf32, #tpu.memory_space<smem>>
    %435 = vector.broadcast %434 : f32 to vector<2x256xf32>
    %436 = arith.mulf %435, %37 : vector<2x256xf32>
    %437 = arith.addf %433, %436 : vector<2x256xf32>
    %c5_185 = arith.constant 5 : index
    %c6_186 = arith.constant 6 : index
    %438 = memref.load %arg2[%c5_185, %c6_186] : memref<8x8xf32, #tpu.memory_space<smem>>
    %439 = vector.broadcast %438 : f32 to vector<2x256xf32>
    %440 = arith.mulf %439, %38 : vector<2x256xf32>
    %441 = arith.addf %437, %440 : vector<2x256xf32>
    %c5_187 = arith.constant 5 : index
    %c7_188 = arith.constant 7 : index
    %442 = memref.load %arg2[%c5_187, %c7_188] : memref<8x8xf32, #tpu.memory_space<smem>>
    %443 = vector.broadcast %442 : f32 to vector<2x256xf32>
    %444 = arith.mulf %443, %39 : vector<2x256xf32>
    %445 = arith.addf %441, %444 : vector<2x256xf32>
    %c5_189 = arith.constant 5 : index
    %446 = memref.load %arg3[%c5_189] : memref<8xf32, #tpu.memory_space<smem>>
    %447 = vector.broadcast %446 : f32 to vector<2x256xf32>
    %448 = arith.addf %445, %447 : vector<2x256xf32>
    %cst_190 = arith.constant 5.000000e-01 : f32
    %449 = vector.broadcast %cst_190 : f32 to vector<2x256xf32>
    %450 = arith.mulf %449, %448 : vector<2x256xf32>
    %cst_191 = arith.constant 0.707106769 : f32
    %451 = vector.broadcast %cst_191 : f32 to vector<2x256xf32>
    %452 = arith.mulf %448, %451 : vector<2x256xf32>
    %cst_192 = arith.constant 0.000000e+00 : f32
    %453 = vector.broadcast %cst_192 : f32 to vector<2x256xf32>
    %454 = arith.cmpf oge, %452, %453 : vector<2x256xf32>
    %cst_193 = arith.constant 1.000000e+00 : f32
    %cst_194 = arith.constant -1.000000e+00 : f32
    %455 = vector.broadcast %cst_193 : f32 to vector<2x256xf32>
    %456 = vector.broadcast %cst_194 : f32 to vector<2x256xf32>
    %457 = arith.select %454, %455, %456 : vector<2x256xi1>, vector<2x256xf32>
    %458 = math.absf %452 : vector<2x256xf32>
    %cst_195 = arith.constant 0.327591091 : f32
    %459 = vector.broadcast %cst_195 : f32 to vector<2x256xf32>
    %460 = arith.mulf %459, %458 : vector<2x256xf32>
    %cst_196 = arith.constant 1.000000e+00 : f32
    %461 = vector.broadcast %cst_196 : f32 to vector<2x256xf32>
    %462 = arith.addf %461, %460 : vector<2x256xf32>
    %cst_197 = arith.constant 1.000000e+00 : f32
    %463 = vector.broadcast %cst_197 : f32 to vector<2x256xf32>
    %464 = arith.divf %463, %462 : vector<2x256xf32>
    %cst_198 = arith.constant 1.06140542 : f32
    %465 = vector.broadcast %cst_198 : f32 to vector<2x256xf32>
    %466 = arith.mulf %465, %464 : vector<2x256xf32>
    %cst_199 = arith.constant -1.45315206 : f32
    %467 = vector.broadcast %cst_199 : f32 to vector<2x256xf32>
    %468 = arith.addf %466, %467 : vector<2x256xf32>
    %469 = arith.mulf %468, %464 : vector<2x256xf32>
    %cst_200 = arith.constant 1.42141378 : f32
    %470 = vector.broadcast %cst_200 : f32 to vector<2x256xf32>
    %471 = arith.addf %469, %470 : vector<2x256xf32>
    %472 = arith.mulf %471, %464 : vector<2x256xf32>
    %cst_201 = arith.constant -0.284496725 : f32
    %473 = vector.broadcast %cst_201 : f32 to vector<2x256xf32>
    %474 = arith.addf %472, %473 : vector<2x256xf32>
    %475 = arith.mulf %474, %464 : vector<2x256xf32>
    %cst_202 = arith.constant 0.254829586 : f32
    %476 = vector.broadcast %cst_202 : f32 to vector<2x256xf32>
    %477 = arith.addf %475, %476 : vector<2x256xf32>
    %478 = arith.mulf %477, %464 : vector<2x256xf32>
    %cst_203 = arith.constant 0.000000e+00 : f32
    %479 = vector.broadcast %cst_203 : f32 to vector<2x256xf32>
    %480 = arith.subf %479, %458 : vector<2x256xf32>
    %481 = arith.mulf %480, %458 : vector<2x256xf32>
    %482 = math.exp %481 : vector<2x256xf32>
    %483 = arith.mulf %478, %482 : vector<2x256xf32>
    %cst_204 = arith.constant 1.000000e+00 : f32
    %484 = vector.broadcast %cst_204 : f32 to vector<2x256xf32>
    %485 = arith.subf %484, %483 : vector<2x256xf32>
    %486 = arith.mulf %457, %485 : vector<2x256xf32>
    %cst_205 = arith.constant 1.000000e+00 : f32
    %487 = vector.broadcast %cst_205 : f32 to vector<2x256xf32>
    %488 = arith.addf %487, %486 : vector<2x256xf32>
    %489 = arith.mulf %450, %488 : vector<2x256xf32>
    %c6_206 = arith.constant 6 : index
    %c0_207 = arith.constant 0 : index
    %490 = memref.load %arg2[%c6_206, %c0_207] : memref<8x8xf32, #tpu.memory_space<smem>>
    %491 = vector.broadcast %490 : f32 to vector<2x256xf32>
    %492 = arith.mulf %491, %32 : vector<2x256xf32>
    %c6_208 = arith.constant 6 : index
    %c1_209 = arith.constant 1 : index
    %493 = memref.load %arg2[%c6_208, %c1_209] : memref<8x8xf32, #tpu.memory_space<smem>>
    %494 = vector.broadcast %493 : f32 to vector<2x256xf32>
    %495 = arith.mulf %494, %33 : vector<2x256xf32>
    %496 = arith.addf %492, %495 : vector<2x256xf32>
    %c6_210 = arith.constant 6 : index
    %c2_211 = arith.constant 2 : index
    %497 = memref.load %arg2[%c6_210, %c2_211] : memref<8x8xf32, #tpu.memory_space<smem>>
    %498 = vector.broadcast %497 : f32 to vector<2x256xf32>
    %499 = arith.mulf %498, %34 : vector<2x256xf32>
    %500 = arith.addf %496, %499 : vector<2x256xf32>
    %c6_212 = arith.constant 6 : index
    %c3_213 = arith.constant 3 : index
    %501 = memref.load %arg2[%c6_212, %c3_213] : memref<8x8xf32, #tpu.memory_space<smem>>
    %502 = vector.broadcast %501 : f32 to vector<2x256xf32>
    %503 = arith.mulf %502, %35 : vector<2x256xf32>
    %504 = arith.addf %500, %503 : vector<2x256xf32>
    %c6_214 = arith.constant 6 : index
    %c4_215 = arith.constant 4 : index
    %505 = memref.load %arg2[%c6_214, %c4_215] : memref<8x8xf32, #tpu.memory_space<smem>>
    %506 = vector.broadcast %505 : f32 to vector<2x256xf32>
    %507 = arith.mulf %506, %36 : vector<2x256xf32>
    %508 = arith.addf %504, %507 : vector<2x256xf32>
    %c6_216 = arith.constant 6 : index
    %c5_217 = arith.constant 5 : index
    %509 = memref.load %arg2[%c6_216, %c5_217] : memref<8x8xf32, #tpu.memory_space<smem>>
    %510 = vector.broadcast %509 : f32 to vector<2x256xf32>
    %511 = arith.mulf %510, %37 : vector<2x256xf32>
    %512 = arith.addf %508, %511 : vector<2x256xf32>
    %c6_218 = arith.constant 6 : index
    %c6_219 = arith.constant 6 : index
    %513 = memref.load %arg2[%c6_218, %c6_219] : memref<8x8xf32, #tpu.memory_space<smem>>
    %514 = vector.broadcast %513 : f32 to vector<2x256xf32>
    %515 = arith.mulf %514, %38 : vector<2x256xf32>
    %516 = arith.addf %512, %515 : vector<2x256xf32>
    %c6_220 = arith.constant 6 : index
    %c7_221 = arith.constant 7 : index
    %517 = memref.load %arg2[%c6_220, %c7_221] : memref<8x8xf32, #tpu.memory_space<smem>>
    %518 = vector.broadcast %517 : f32 to vector<2x256xf32>
    %519 = arith.mulf %518, %39 : vector<2x256xf32>
    %520 = arith.addf %516, %519 : vector<2x256xf32>
    %c6_222 = arith.constant 6 : index
    %521 = memref.load %arg3[%c6_222] : memref<8xf32, #tpu.memory_space<smem>>
    %522 = vector.broadcast %521 : f32 to vector<2x256xf32>
    %523 = arith.addf %520, %522 : vector<2x256xf32>
    %cst_223 = arith.constant 5.000000e-01 : f32
    %524 = vector.broadcast %cst_223 : f32 to vector<2x256xf32>
    %525 = arith.mulf %524, %523 : vector<2x256xf32>
    %cst_224 = arith.constant 0.707106769 : f32
    %526 = vector.broadcast %cst_224 : f32 to vector<2x256xf32>
    %527 = arith.mulf %523, %526 : vector<2x256xf32>
    %cst_225 = arith.constant 0.000000e+00 : f32
    %528 = vector.broadcast %cst_225 : f32 to vector<2x256xf32>
    %529 = arith.cmpf oge, %527, %528 : vector<2x256xf32>
    %cst_226 = arith.constant 1.000000e+00 : f32
    %cst_227 = arith.constant -1.000000e+00 : f32
    %530 = vector.broadcast %cst_226 : f32 to vector<2x256xf32>
    %531 = vector.broadcast %cst_227 : f32 to vector<2x256xf32>
    %532 = arith.select %529, %530, %531 : vector<2x256xi1>, vector<2x256xf32>
    %533 = math.absf %527 : vector<2x256xf32>
    %cst_228 = arith.constant 0.327591091 : f32
    %534 = vector.broadcast %cst_228 : f32 to vector<2x256xf32>
    %535 = arith.mulf %534, %533 : vector<2x256xf32>
    %cst_229 = arith.constant 1.000000e+00 : f32
    %536 = vector.broadcast %cst_229 : f32 to vector<2x256xf32>
    %537 = arith.addf %536, %535 : vector<2x256xf32>
    %cst_230 = arith.constant 1.000000e+00 : f32
    %538 = vector.broadcast %cst_230 : f32 to vector<2x256xf32>
    %539 = arith.divf %538, %537 : vector<2x256xf32>
    %cst_231 = arith.constant 1.06140542 : f32
    %540 = vector.broadcast %cst_231 : f32 to vector<2x256xf32>
    %541 = arith.mulf %540, %539 : vector<2x256xf32>
    %cst_232 = arith.constant -1.45315206 : f32
    %542 = vector.broadcast %cst_232 : f32 to vector<2x256xf32>
    %543 = arith.addf %541, %542 : vector<2x256xf32>
    %544 = arith.mulf %543, %539 : vector<2x256xf32>
    %cst_233 = arith.constant 1.42141378 : f32
    %545 = vector.broadcast %cst_233 : f32 to vector<2x256xf32>
    %546 = arith.addf %544, %545 : vector<2x256xf32>
    %547 = arith.mulf %546, %539 : vector<2x256xf32>
    %cst_234 = arith.constant -0.284496725 : f32
    %548 = vector.broadcast %cst_234 : f32 to vector<2x256xf32>
    %549 = arith.addf %547, %548 : vector<2x256xf32>
    %550 = arith.mulf %549, %539 : vector<2x256xf32>
    %cst_235 = arith.constant 0.254829586 : f32
    %551 = vector.broadcast %cst_235 : f32 to vector<2x256xf32>
    %552 = arith.addf %550, %551 : vector<2x256xf32>
    %553 = arith.mulf %552, %539 : vector<2x256xf32>
    %cst_236 = arith.constant 0.000000e+00 : f32
    %554 = vector.broadcast %cst_236 : f32 to vector<2x256xf32>
    %555 = arith.subf %554, %533 : vector<2x256xf32>
    %556 = arith.mulf %555, %533 : vector<2x256xf32>
    %557 = math.exp %556 : vector<2x256xf32>
    %558 = arith.mulf %553, %557 : vector<2x256xf32>
    %cst_237 = arith.constant 1.000000e+00 : f32
    %559 = vector.broadcast %cst_237 : f32 to vector<2x256xf32>
    %560 = arith.subf %559, %558 : vector<2x256xf32>
    %561 = arith.mulf %532, %560 : vector<2x256xf32>
    %cst_238 = arith.constant 1.000000e+00 : f32
    %562 = vector.broadcast %cst_238 : f32 to vector<2x256xf32>
    %563 = arith.addf %562, %561 : vector<2x256xf32>
    %564 = arith.mulf %525, %563 : vector<2x256xf32>
    %c7_239 = arith.constant 7 : index
    %c0_240 = arith.constant 0 : index
    %565 = memref.load %arg2[%c7_239, %c0_240] : memref<8x8xf32, #tpu.memory_space<smem>>
    %566 = vector.broadcast %565 : f32 to vector<2x256xf32>
    %567 = arith.mulf %566, %32 : vector<2x256xf32>
    %c7_241 = arith.constant 7 : index
    %c1_242 = arith.constant 1 : index
    %568 = memref.load %arg2[%c7_241, %c1_242] : memref<8x8xf32, #tpu.memory_space<smem>>
    %569 = vector.broadcast %568 : f32 to vector<2x256xf32>
    %570 = arith.mulf %569, %33 : vector<2x256xf32>
    %571 = arith.addf %567, %570 : vector<2x256xf32>
    %c7_243 = arith.constant 7 : index
    %c2_244 = arith.constant 2 : index
    %572 = memref.load %arg2[%c7_243, %c2_244] : memref<8x8xf32, #tpu.memory_space<smem>>
    %573 = vector.broadcast %572 : f32 to vector<2x256xf32>
    %574 = arith.mulf %573, %34 : vector<2x256xf32>
    %575 = arith.addf %571, %574 : vector<2x256xf32>
    %c7_245 = arith.constant 7 : index
    %c3_246 = arith.constant 3 : index
    %576 = memref.load %arg2[%c7_245, %c3_246] : memref<8x8xf32, #tpu.memory_space<smem>>
    %577 = vector.broadcast %576 : f32 to vector<2x256xf32>
    %578 = arith.mulf %577, %35 : vector<2x256xf32>
    %579 = arith.addf %575, %578 : vector<2x256xf32>
    %c7_247 = arith.constant 7 : index
    %c4_248 = arith.constant 4 : index
    %580 = memref.load %arg2[%c7_247, %c4_248] : memref<8x8xf32, #tpu.memory_space<smem>>
    %581 = vector.broadcast %580 : f32 to vector<2x256xf32>
    %582 = arith.mulf %581, %36 : vector<2x256xf32>
    %583 = arith.addf %579, %582 : vector<2x256xf32>
    %c7_249 = arith.constant 7 : index
    %c5_250 = arith.constant 5 : index
    %584 = memref.load %arg2[%c7_249, %c5_250] : memref<8x8xf32, #tpu.memory_space<smem>>
    %585 = vector.broadcast %584 : f32 to vector<2x256xf32>
    %586 = arith.mulf %585, %37 : vector<2x256xf32>
    %587 = arith.addf %583, %586 : vector<2x256xf32>
    %c7_251 = arith.constant 7 : index
    %c6_252 = arith.constant 6 : index
    %588 = memref.load %arg2[%c7_251, %c6_252] : memref<8x8xf32, #tpu.memory_space<smem>>
    %589 = vector.broadcast %588 : f32 to vector<2x256xf32>
    %590 = arith.mulf %589, %38 : vector<2x256xf32>
    %591 = arith.addf %587, %590 : vector<2x256xf32>
    %c7_253 = arith.constant 7 : index
    %c7_254 = arith.constant 7 : index
    %592 = memref.load %arg2[%c7_253, %c7_254] : memref<8x8xf32, #tpu.memory_space<smem>>
    %593 = vector.broadcast %592 : f32 to vector<2x256xf32>
    %594 = arith.mulf %593, %39 : vector<2x256xf32>
    %595 = arith.addf %591, %594 : vector<2x256xf32>
    %c7_255 = arith.constant 7 : index
    %596 = memref.load %arg3[%c7_255] : memref<8xf32, #tpu.memory_space<smem>>
    %597 = vector.broadcast %596 : f32 to vector<2x256xf32>
    %598 = arith.addf %595, %597 : vector<2x256xf32>
    %cst_256 = arith.constant 5.000000e-01 : f32
    %599 = vector.broadcast %cst_256 : f32 to vector<2x256xf32>
    %600 = arith.mulf %599, %598 : vector<2x256xf32>
    %cst_257 = arith.constant 0.707106769 : f32
    %601 = vector.broadcast %cst_257 : f32 to vector<2x256xf32>
    %602 = arith.mulf %598, %601 : vector<2x256xf32>
    %cst_258 = arith.constant 0.000000e+00 : f32
    %603 = vector.broadcast %cst_258 : f32 to vector<2x256xf32>
    %604 = arith.cmpf oge, %602, %603 : vector<2x256xf32>
    %cst_259 = arith.constant 1.000000e+00 : f32
    %cst_260 = arith.constant -1.000000e+00 : f32
    %605 = vector.broadcast %cst_259 : f32 to vector<2x256xf32>
    %606 = vector.broadcast %cst_260 : f32 to vector<2x256xf32>
    %607 = arith.select %604, %605, %606 : vector<2x256xi1>, vector<2x256xf32>
    %608 = math.absf %602 : vector<2x256xf32>
    %cst_261 = arith.constant 0.327591091 : f32
    %609 = vector.broadcast %cst_261 : f32 to vector<2x256xf32>
    %610 = arith.mulf %609, %608 : vector<2x256xf32>
    %cst_262 = arith.constant 1.000000e+00 : f32
    %611 = vector.broadcast %cst_262 : f32 to vector<2x256xf32>
    %612 = arith.addf %611, %610 : vector<2x256xf32>
    %cst_263 = arith.constant 1.000000e+00 : f32
    %613 = vector.broadcast %cst_263 : f32 to vector<2x256xf32>
    %614 = arith.divf %613, %612 : vector<2x256xf32>
    %cst_264 = arith.constant 1.06140542 : f32
    %615 = vector.broadcast %cst_264 : f32 to vector<2x256xf32>
    %616 = arith.mulf %615, %614 : vector<2x256xf32>
    %cst_265 = arith.constant -1.45315206 : f32
    %617 = vector.broadcast %cst_265 : f32 to vector<2x256xf32>
    %618 = arith.addf %616, %617 : vector<2x256xf32>
    %619 = arith.mulf %618, %614 : vector<2x256xf32>
    %cst_266 = arith.constant 1.42141378 : f32
    %620 = vector.broadcast %cst_266 : f32 to vector<2x256xf32>
    %621 = arith.addf %619, %620 : vector<2x256xf32>
    %622 = arith.mulf %621, %614 : vector<2x256xf32>
    %cst_267 = arith.constant -0.284496725 : f32
    %623 = vector.broadcast %cst_267 : f32 to vector<2x256xf32>
    %624 = arith.addf %622, %623 : vector<2x256xf32>
    %625 = arith.mulf %624, %614 : vector<2x256xf32>
    %cst_268 = arith.constant 0.254829586 : f32
    %626 = vector.broadcast %cst_268 : f32 to vector<2x256xf32>
    %627 = arith.addf %625, %626 : vector<2x256xf32>
    %628 = arith.mulf %627, %614 : vector<2x256xf32>
    %cst_269 = arith.constant 0.000000e+00 : f32
    %629 = vector.broadcast %cst_269 : f32 to vector<2x256xf32>
    %630 = arith.subf %629, %608 : vector<2x256xf32>
    %631 = arith.mulf %630, %608 : vector<2x256xf32>
    %632 = math.exp %631 : vector<2x256xf32>
    %633 = arith.mulf %628, %632 : vector<2x256xf32>
    %cst_270 = arith.constant 1.000000e+00 : f32
    %634 = vector.broadcast %cst_270 : f32 to vector<2x256xf32>
    %635 = arith.subf %634, %633 : vector<2x256xf32>
    %636 = arith.mulf %607, %635 : vector<2x256xf32>
    %cst_271 = arith.constant 1.000000e+00 : f32
    %637 = vector.broadcast %cst_271 : f32 to vector<2x256xf32>
    %638 = arith.addf %637, %636 : vector<2x256xf32>
    %639 = arith.mulf %600, %638 : vector<2x256xf32>
    %c0_272 = arith.constant 0 : index
    %c0_273 = arith.constant 0 : index
    %640 = memref.load %arg4[%c0_272, %c0_273] : memref<8x8xf32, #tpu.memory_space<smem>>
    %641 = vector.broadcast %640 : f32 to vector<2x256xf32>
    %642 = arith.mulf %641, %114 : vector<2x256xf32>
    %c0_274 = arith.constant 0 : index
    %c1_275 = arith.constant 1 : index
    %643 = memref.load %arg4[%c0_274, %c1_275] : memref<8x8xf32, #tpu.memory_space<smem>>
    %644 = vector.broadcast %643 : f32 to vector<2x256xf32>
    %645 = arith.mulf %644, %189 : vector<2x256xf32>
    %646 = arith.addf %642, %645 : vector<2x256xf32>
    %c0_276 = arith.constant 0 : index
    %c2_277 = arith.constant 2 : index
    %647 = memref.load %arg4[%c0_276, %c2_277] : memref<8x8xf32, #tpu.memory_space<smem>>
    %648 = vector.broadcast %647 : f32 to vector<2x256xf32>
    %649 = arith.mulf %648, %264 : vector<2x256xf32>
    %650 = arith.addf %646, %649 : vector<2x256xf32>
    %c0_278 = arith.constant 0 : index
    %c3_279 = arith.constant 3 : index
    %651 = memref.load %arg4[%c0_278, %c3_279] : memref<8x8xf32, #tpu.memory_space<smem>>
    %652 = vector.broadcast %651 : f32 to vector<2x256xf32>
    %653 = arith.mulf %652, %339 : vector<2x256xf32>
    %654 = arith.addf %650, %653 : vector<2x256xf32>
    %c0_280 = arith.constant 0 : index
    %c4_281 = arith.constant 4 : index
    %655 = memref.load %arg4[%c0_280, %c4_281] : memref<8x8xf32, #tpu.memory_space<smem>>
    %656 = vector.broadcast %655 : f32 to vector<2x256xf32>
    %657 = arith.mulf %656, %414 : vector<2x256xf32>
    %658 = arith.addf %654, %657 : vector<2x256xf32>
    %c0_282 = arith.constant 0 : index
    %c5_283 = arith.constant 5 : index
    %659 = memref.load %arg4[%c0_282, %c5_283] : memref<8x8xf32, #tpu.memory_space<smem>>
    %660 = vector.broadcast %659 : f32 to vector<2x256xf32>
    %661 = arith.mulf %660, %489 : vector<2x256xf32>
    %662 = arith.addf %658, %661 : vector<2x256xf32>
    %c0_284 = arith.constant 0 : index
    %c6_285 = arith.constant 6 : index
    %663 = memref.load %arg4[%c0_284, %c6_285] : memref<8x8xf32, #tpu.memory_space<smem>>
    %664 = vector.broadcast %663 : f32 to vector<2x256xf32>
    %665 = arith.mulf %664, %564 : vector<2x256xf32>
    %666 = arith.addf %662, %665 : vector<2x256xf32>
    %c0_286 = arith.constant 0 : index
    %c7_287 = arith.constant 7 : index
    %667 = memref.load %arg4[%c0_286, %c7_287] : memref<8x8xf32, #tpu.memory_space<smem>>
    %668 = vector.broadcast %667 : f32 to vector<2x256xf32>
    %669 = arith.mulf %668, %639 : vector<2x256xf32>
    %670 = arith.addf %666, %669 : vector<2x256xf32>
    %c0_288 = arith.constant 0 : index
    %671 = memref.load %arg5[%c0_288] : memref<8xf32, #tpu.memory_space<smem>>
    %672 = vector.broadcast %671 : f32 to vector<2x256xf32>
    %673 = arith.addf %670, %672 : vector<2x256xf32>
    %c1_289 = arith.constant 1 : index
    %c0_290 = arith.constant 0 : index
    %674 = memref.load %arg4[%c1_289, %c0_290] : memref<8x8xf32, #tpu.memory_space<smem>>
    %675 = vector.broadcast %674 : f32 to vector<2x256xf32>
    %676 = arith.mulf %675, %114 : vector<2x256xf32>
    %c1_291 = arith.constant 1 : index
    %c1_292 = arith.constant 1 : index
    %677 = memref.load %arg4[%c1_291, %c1_292] : memref<8x8xf32, #tpu.memory_space<smem>>
    %678 = vector.broadcast %677 : f32 to vector<2x256xf32>
    %679 = arith.mulf %678, %189 : vector<2x256xf32>
    %680 = arith.addf %676, %679 : vector<2x256xf32>
    %c1_293 = arith.constant 1 : index
    %c2_294 = arith.constant 2 : index
    %681 = memref.load %arg4[%c1_293, %c2_294] : memref<8x8xf32, #tpu.memory_space<smem>>
    %682 = vector.broadcast %681 : f32 to vector<2x256xf32>
    %683 = arith.mulf %682, %264 : vector<2x256xf32>
    %684 = arith.addf %680, %683 : vector<2x256xf32>
    %c1_295 = arith.constant 1 : index
    %c3_296 = arith.constant 3 : index
    %685 = memref.load %arg4[%c1_295, %c3_296] : memref<8x8xf32, #tpu.memory_space<smem>>
    %686 = vector.broadcast %685 : f32 to vector<2x256xf32>
    %687 = arith.mulf %686, %339 : vector<2x256xf32>
    %688 = arith.addf %684, %687 : vector<2x256xf32>
    %c1_297 = arith.constant 1 : index
    %c4_298 = arith.constant 4 : index
    %689 = memref.load %arg4[%c1_297, %c4_298] : memref<8x8xf32, #tpu.memory_space<smem>>
    %690 = vector.broadcast %689 : f32 to vector<2x256xf32>
    %691 = arith.mulf %690, %414 : vector<2x256xf32>
    %692 = arith.addf %688, %691 : vector<2x256xf32>
    %c1_299 = arith.constant 1 : index
    %c5_300 = arith.constant 5 : index
    %693 = memref.load %arg4[%c1_299, %c5_300] : memref<8x8xf32, #tpu.memory_space<smem>>
    %694 = vector.broadcast %693 : f32 to vector<2x256xf32>
    %695 = arith.mulf %694, %489 : vector<2x256xf32>
    %696 = arith.addf %692, %695 : vector<2x256xf32>
    %c1_301 = arith.constant 1 : index
    %c6_302 = arith.constant 6 : index
    %697 = memref.load %arg4[%c1_301, %c6_302] : memref<8x8xf32, #tpu.memory_space<smem>>
    %698 = vector.broadcast %697 : f32 to vector<2x256xf32>
    %699 = arith.mulf %698, %564 : vector<2x256xf32>
    %700 = arith.addf %696, %699 : vector<2x256xf32>
    %c1_303 = arith.constant 1 : index
    %c7_304 = arith.constant 7 : index
    %701 = memref.load %arg4[%c1_303, %c7_304] : memref<8x8xf32, #tpu.memory_space<smem>>
    %702 = vector.broadcast %701 : f32 to vector<2x256xf32>
    %703 = arith.mulf %702, %639 : vector<2x256xf32>
    %704 = arith.addf %700, %703 : vector<2x256xf32>
    %c1_305 = arith.constant 1 : index
    %705 = memref.load %arg5[%c1_305] : memref<8xf32, #tpu.memory_space<smem>>
    %706 = vector.broadcast %705 : f32 to vector<2x256xf32>
    %707 = arith.addf %704, %706 : vector<2x256xf32>
    %c2_306 = arith.constant 2 : index
    %c0_307 = arith.constant 0 : index
    %708 = memref.load %arg4[%c2_306, %c0_307] : memref<8x8xf32, #tpu.memory_space<smem>>
    %709 = vector.broadcast %708 : f32 to vector<2x256xf32>
    %710 = arith.mulf %709, %114 : vector<2x256xf32>
    %c2_308 = arith.constant 2 : index
    %c1_309 = arith.constant 1 : index
    %711 = memref.load %arg4[%c2_308, %c1_309] : memref<8x8xf32, #tpu.memory_space<smem>>
    %712 = vector.broadcast %711 : f32 to vector<2x256xf32>
    %713 = arith.mulf %712, %189 : vector<2x256xf32>
    %714 = arith.addf %710, %713 : vector<2x256xf32>
    %c2_310 = arith.constant 2 : index
    %c2_311 = arith.constant 2 : index
    %715 = memref.load %arg4[%c2_310, %c2_311] : memref<8x8xf32, #tpu.memory_space<smem>>
    %716 = vector.broadcast %715 : f32 to vector<2x256xf32>
    %717 = arith.mulf %716, %264 : vector<2x256xf32>
    %718 = arith.addf %714, %717 : vector<2x256xf32>
    %c2_312 = arith.constant 2 : index
    %c3_313 = arith.constant 3 : index
    %719 = memref.load %arg4[%c2_312, %c3_313] : memref<8x8xf32, #tpu.memory_space<smem>>
    %720 = vector.broadcast %719 : f32 to vector<2x256xf32>
    %721 = arith.mulf %720, %339 : vector<2x256xf32>
    %722 = arith.addf %718, %721 : vector<2x256xf32>
    %c2_314 = arith.constant 2 : index
    %c4_315 = arith.constant 4 : index
    %723 = memref.load %arg4[%c2_314, %c4_315] : memref<8x8xf32, #tpu.memory_space<smem>>
    %724 = vector.broadcast %723 : f32 to vector<2x256xf32>
    %725 = arith.mulf %724, %414 : vector<2x256xf32>
    %726 = arith.addf %722, %725 : vector<2x256xf32>
    %c2_316 = arith.constant 2 : index
    %c5_317 = arith.constant 5 : index
    %727 = memref.load %arg4[%c2_316, %c5_317] : memref<8x8xf32, #tpu.memory_space<smem>>
    %728 = vector.broadcast %727 : f32 to vector<2x256xf32>
    %729 = arith.mulf %728, %489 : vector<2x256xf32>
    %730 = arith.addf %726, %729 : vector<2x256xf32>
    %c2_318 = arith.constant 2 : index
    %c6_319 = arith.constant 6 : index
    %731 = memref.load %arg4[%c2_318, %c6_319] : memref<8x8xf32, #tpu.memory_space<smem>>
    %732 = vector.broadcast %731 : f32 to vector<2x256xf32>
    %733 = arith.mulf %732, %564 : vector<2x256xf32>
    %734 = arith.addf %730, %733 : vector<2x256xf32>
    %c2_320 = arith.constant 2 : index
    %c7_321 = arith.constant 7 : index
    %735 = memref.load %arg4[%c2_320, %c7_321] : memref<8x8xf32, #tpu.memory_space<smem>>
    %736 = vector.broadcast %735 : f32 to vector<2x256xf32>
    %737 = arith.mulf %736, %639 : vector<2x256xf32>
    %738 = arith.addf %734, %737 : vector<2x256xf32>
    %c2_322 = arith.constant 2 : index
    %739 = memref.load %arg5[%c2_322] : memref<8xf32, #tpu.memory_space<smem>>
    %740 = vector.broadcast %739 : f32 to vector<2x256xf32>
    %741 = arith.addf %738, %740 : vector<2x256xf32>
    %c3_323 = arith.constant 3 : index
    %c0_324 = arith.constant 0 : index
    %742 = memref.load %arg4[%c3_323, %c0_324] : memref<8x8xf32, #tpu.memory_space<smem>>
    %743 = vector.broadcast %742 : f32 to vector<2x256xf32>
    %744 = arith.mulf %743, %114 : vector<2x256xf32>
    %c3_325 = arith.constant 3 : index
    %c1_326 = arith.constant 1 : index
    %745 = memref.load %arg4[%c3_325, %c1_326] : memref<8x8xf32, #tpu.memory_space<smem>>
    %746 = vector.broadcast %745 : f32 to vector<2x256xf32>
    %747 = arith.mulf %746, %189 : vector<2x256xf32>
    %748 = arith.addf %744, %747 : vector<2x256xf32>
    %c3_327 = arith.constant 3 : index
    %c2_328 = arith.constant 2 : index
    %749 = memref.load %arg4[%c3_327, %c2_328] : memref<8x8xf32, #tpu.memory_space<smem>>
    %750 = vector.broadcast %749 : f32 to vector<2x256xf32>
    %751 = arith.mulf %750, %264 : vector<2x256xf32>
    %752 = arith.addf %748, %751 : vector<2x256xf32>
    %c3_329 = arith.constant 3 : index
    %c3_330 = arith.constant 3 : index
    %753 = memref.load %arg4[%c3_329, %c3_330] : memref<8x8xf32, #tpu.memory_space<smem>>
    %754 = vector.broadcast %753 : f32 to vector<2x256xf32>
    %755 = arith.mulf %754, %339 : vector<2x256xf32>
    %756 = arith.addf %752, %755 : vector<2x256xf32>
    %c3_331 = arith.constant 3 : index
    %c4_332 = arith.constant 4 : index
    %757 = memref.load %arg4[%c3_331, %c4_332] : memref<8x8xf32, #tpu.memory_space<smem>>
    %758 = vector.broadcast %757 : f32 to vector<2x256xf32>
    %759 = arith.mulf %758, %414 : vector<2x256xf32>
    %760 = arith.addf %756, %759 : vector<2x256xf32>
    %c3_333 = arith.constant 3 : index
    %c5_334 = arith.constant 5 : index
    %761 = memref.load %arg4[%c3_333, %c5_334] : memref<8x8xf32, #tpu.memory_space<smem>>
    %762 = vector.broadcast %761 : f32 to vector<2x256xf32>
    %763 = arith.mulf %762, %489 : vector<2x256xf32>
    %764 = arith.addf %760, %763 : vector<2x256xf32>
    %c3_335 = arith.constant 3 : index
    %c6_336 = arith.constant 6 : index
    %765 = memref.load %arg4[%c3_335, %c6_336] : memref<8x8xf32, #tpu.memory_space<smem>>
    %766 = vector.broadcast %765 : f32 to vector<2x256xf32>
    %767 = arith.mulf %766, %564 : vector<2x256xf32>
    %768 = arith.addf %764, %767 : vector<2x256xf32>
    %c3_337 = arith.constant 3 : index
    %c7_338 = arith.constant 7 : index
    %769 = memref.load %arg4[%c3_337, %c7_338] : memref<8x8xf32, #tpu.memory_space<smem>>
    %770 = vector.broadcast %769 : f32 to vector<2x256xf32>
    %771 = arith.mulf %770, %639 : vector<2x256xf32>
    %772 = arith.addf %768, %771 : vector<2x256xf32>
    %c3_339 = arith.constant 3 : index
    %773 = memref.load %arg5[%c3_339] : memref<8xf32, #tpu.memory_space<smem>>
    %774 = vector.broadcast %773 : f32 to vector<2x256xf32>
    %775 = arith.addf %772, %774 : vector<2x256xf32>
    %776 = tpu.concatenate %673, %707, %741, %775 in 0 : vector<2x256xf32>, vector<2x256xf32>, vector<2x256xf32>, vector<2x256xf32> -> vector<8x256xf32>
    %c4_340 = arith.constant 4 : index
    %c0_341 = arith.constant 0 : index
    %777 = memref.load %arg4[%c4_340, %c0_341] : memref<8x8xf32, #tpu.memory_space<smem>>
    %778 = vector.broadcast %777 : f32 to vector<2x256xf32>
    %779 = arith.mulf %778, %114 : vector<2x256xf32>
    %c4_342 = arith.constant 4 : index
    %c1_343 = arith.constant 1 : index
    %780 = memref.load %arg4[%c4_342, %c1_343] : memref<8x8xf32, #tpu.memory_space<smem>>
    %781 = vector.broadcast %780 : f32 to vector<2x256xf32>
    %782 = arith.mulf %781, %189 : vector<2x256xf32>
    %783 = arith.addf %779, %782 : vector<2x256xf32>
    %c4_344 = arith.constant 4 : index
    %c2_345 = arith.constant 2 : index
    %784 = memref.load %arg4[%c4_344, %c2_345] : memref<8x8xf32, #tpu.memory_space<smem>>
    %785 = vector.broadcast %784 : f32 to vector<2x256xf32>
    %786 = arith.mulf %785, %264 : vector<2x256xf32>
    %787 = arith.addf %783, %786 : vector<2x256xf32>
    %c4_346 = arith.constant 4 : index
    %c3_347 = arith.constant 3 : index
    %788 = memref.load %arg4[%c4_346, %c3_347] : memref<8x8xf32, #tpu.memory_space<smem>>
    %789 = vector.broadcast %788 : f32 to vector<2x256xf32>
    %790 = arith.mulf %789, %339 : vector<2x256xf32>
    %791 = arith.addf %787, %790 : vector<2x256xf32>
    %c4_348 = arith.constant 4 : index
    %c4_349 = arith.constant 4 : index
    %792 = memref.load %arg4[%c4_348, %c4_349] : memref<8x8xf32, #tpu.memory_space<smem>>
    %793 = vector.broadcast %792 : f32 to vector<2x256xf32>
    %794 = arith.mulf %793, %414 : vector<2x256xf32>
    %795 = arith.addf %791, %794 : vector<2x256xf32>
    %c4_350 = arith.constant 4 : index
    %c5_351 = arith.constant 5 : index
    %796 = memref.load %arg4[%c4_350, %c5_351] : memref<8x8xf32, #tpu.memory_space<smem>>
    %797 = vector.broadcast %796 : f32 to vector<2x256xf32>
    %798 = arith.mulf %797, %489 : vector<2x256xf32>
    %799 = arith.addf %795, %798 : vector<2x256xf32>
    %c4_352 = arith.constant 4 : index
    %c6_353 = arith.constant 6 : index
    %800 = memref.load %arg4[%c4_352, %c6_353] : memref<8x8xf32, #tpu.memory_space<smem>>
    %801 = vector.broadcast %800 : f32 to vector<2x256xf32>
    %802 = arith.mulf %801, %564 : vector<2x256xf32>
    %803 = arith.addf %799, %802 : vector<2x256xf32>
    %c4_354 = arith.constant 4 : index
    %c7_355 = arith.constant 7 : index
    %804 = memref.load %arg4[%c4_354, %c7_355] : memref<8x8xf32, #tpu.memory_space<smem>>
    %805 = vector.broadcast %804 : f32 to vector<2x256xf32>
    %806 = arith.mulf %805, %639 : vector<2x256xf32>
    %807 = arith.addf %803, %806 : vector<2x256xf32>
    %c4_356 = arith.constant 4 : index
    %808 = memref.load %arg5[%c4_356] : memref<8xf32, #tpu.memory_space<smem>>
    %809 = vector.broadcast %808 : f32 to vector<2x256xf32>
    %810 = arith.addf %807, %809 : vector<2x256xf32>
    %c5_357 = arith.constant 5 : index
    %c0_358 = arith.constant 0 : index
    %811 = memref.load %arg4[%c5_357, %c0_358] : memref<8x8xf32, #tpu.memory_space<smem>>
    %812 = vector.broadcast %811 : f32 to vector<2x256xf32>
    %813 = arith.mulf %812, %114 : vector<2x256xf32>
    %c5_359 = arith.constant 5 : index
    %c1_360 = arith.constant 1 : index
    %814 = memref.load %arg4[%c5_359, %c1_360] : memref<8x8xf32, #tpu.memory_space<smem>>
    %815 = vector.broadcast %814 : f32 to vector<2x256xf32>
    %816 = arith.mulf %815, %189 : vector<2x256xf32>
    %817 = arith.addf %813, %816 : vector<2x256xf32>
    %c5_361 = arith.constant 5 : index
    %c2_362 = arith.constant 2 : index
    %818 = memref.load %arg4[%c5_361, %c2_362] : memref<8x8xf32, #tpu.memory_space<smem>>
    %819 = vector.broadcast %818 : f32 to vector<2x256xf32>
    %820 = arith.mulf %819, %264 : vector<2x256xf32>
    %821 = arith.addf %817, %820 : vector<2x256xf32>
    %c5_363 = arith.constant 5 : index
    %c3_364 = arith.constant 3 : index
    %822 = memref.load %arg4[%c5_363, %c3_364] : memref<8x8xf32, #tpu.memory_space<smem>>
    %823 = vector.broadcast %822 : f32 to vector<2x256xf32>
    %824 = arith.mulf %823, %339 : vector<2x256xf32>
    %825 = arith.addf %821, %824 : vector<2x256xf32>
    %c5_365 = arith.constant 5 : index
    %c4_366 = arith.constant 4 : index
    %826 = memref.load %arg4[%c5_365, %c4_366] : memref<8x8xf32, #tpu.memory_space<smem>>
    %827 = vector.broadcast %826 : f32 to vector<2x256xf32>
    %828 = arith.mulf %827, %414 : vector<2x256xf32>
    %829 = arith.addf %825, %828 : vector<2x256xf32>
    %c5_367 = arith.constant 5 : index
    %c5_368 = arith.constant 5 : index
    %830 = memref.load %arg4[%c5_367, %c5_368] : memref<8x8xf32, #tpu.memory_space<smem>>
    %831 = vector.broadcast %830 : f32 to vector<2x256xf32>
    %832 = arith.mulf %831, %489 : vector<2x256xf32>
    %833 = arith.addf %829, %832 : vector<2x256xf32>
    %c5_369 = arith.constant 5 : index
    %c6_370 = arith.constant 6 : index
    %834 = memref.load %arg4[%c5_369, %c6_370] : memref<8x8xf32, #tpu.memory_space<smem>>
    %835 = vector.broadcast %834 : f32 to vector<2x256xf32>
    %836 = arith.mulf %835, %564 : vector<2x256xf32>
    %837 = arith.addf %833, %836 : vector<2x256xf32>
    %c5_371 = arith.constant 5 : index
    %c7_372 = arith.constant 7 : index
    %838 = memref.load %arg4[%c5_371, %c7_372] : memref<8x8xf32, #tpu.memory_space<smem>>
    %839 = vector.broadcast %838 : f32 to vector<2x256xf32>
    %840 = arith.mulf %839, %639 : vector<2x256xf32>
    %841 = arith.addf %837, %840 : vector<2x256xf32>
    %c5_373 = arith.constant 5 : index
    %842 = memref.load %arg5[%c5_373] : memref<8xf32, #tpu.memory_space<smem>>
    %843 = vector.broadcast %842 : f32 to vector<2x256xf32>
    %844 = arith.addf %841, %843 : vector<2x256xf32>
    %c6_374 = arith.constant 6 : index
    %c0_375 = arith.constant 0 : index
    %845 = memref.load %arg4[%c6_374, %c0_375] : memref<8x8xf32, #tpu.memory_space<smem>>
    %846 = vector.broadcast %845 : f32 to vector<2x256xf32>
    %847 = arith.mulf %846, %114 : vector<2x256xf32>
    %c6_376 = arith.constant 6 : index
    %c1_377 = arith.constant 1 : index
    %848 = memref.load %arg4[%c6_376, %c1_377] : memref<8x8xf32, #tpu.memory_space<smem>>
    %849 = vector.broadcast %848 : f32 to vector<2x256xf32>
    %850 = arith.mulf %849, %189 : vector<2x256xf32>
    %851 = arith.addf %847, %850 : vector<2x256xf32>
    %c6_378 = arith.constant 6 : index
    %c2_379 = arith.constant 2 : index
    %852 = memref.load %arg4[%c6_378, %c2_379] : memref<8x8xf32, #tpu.memory_space<smem>>
    %853 = vector.broadcast %852 : f32 to vector<2x256xf32>
    %854 = arith.mulf %853, %264 : vector<2x256xf32>
    %855 = arith.addf %851, %854 : vector<2x256xf32>
    %c6_380 = arith.constant 6 : index
    %c3_381 = arith.constant 3 : index
    %856 = memref.load %arg4[%c6_380, %c3_381] : memref<8x8xf32, #tpu.memory_space<smem>>
    %857 = vector.broadcast %856 : f32 to vector<2x256xf32>
    %858 = arith.mulf %857, %339 : vector<2x256xf32>
    %859 = arith.addf %855, %858 : vector<2x256xf32>
    %c6_382 = arith.constant 6 : index
    %c4_383 = arith.constant 4 : index
    %860 = memref.load %arg4[%c6_382, %c4_383] : memref<8x8xf32, #tpu.memory_space<smem>>
    %861 = vector.broadcast %860 : f32 to vector<2x256xf32>
    %862 = arith.mulf %861, %414 : vector<2x256xf32>
    %863 = arith.addf %859, %862 : vector<2x256xf32>
    %c6_384 = arith.constant 6 : index
    %c5_385 = arith.constant 5 : index
    %864 = memref.load %arg4[%c6_384, %c5_385] : memref<8x8xf32, #tpu.memory_space<smem>>
    %865 = vector.broadcast %864 : f32 to vector<2x256xf32>
    %866 = arith.mulf %865, %489 : vector<2x256xf32>
    %867 = arith.addf %863, %866 : vector<2x256xf32>
    %c6_386 = arith.constant 6 : index
    %c6_387 = arith.constant 6 : index
    %868 = memref.load %arg4[%c6_386, %c6_387] : memref<8x8xf32, #tpu.memory_space<smem>>
    %869 = vector.broadcast %868 : f32 to vector<2x256xf32>
    %870 = arith.mulf %869, %564 : vector<2x256xf32>
    %871 = arith.addf %867, %870 : vector<2x256xf32>
    %c6_388 = arith.constant 6 : index
    %c7_389 = arith.constant 7 : index
    %872 = memref.load %arg4[%c6_388, %c7_389] : memref<8x8xf32, #tpu.memory_space<smem>>
    %873 = vector.broadcast %872 : f32 to vector<2x256xf32>
    %874 = arith.mulf %873, %639 : vector<2x256xf32>
    %875 = arith.addf %871, %874 : vector<2x256xf32>
    %c6_390 = arith.constant 6 : index
    %876 = memref.load %arg5[%c6_390] : memref<8xf32, #tpu.memory_space<smem>>
    %877 = vector.broadcast %876 : f32 to vector<2x256xf32>
    %878 = arith.addf %875, %877 : vector<2x256xf32>
    %c7_391 = arith.constant 7 : index
    %c0_392 = arith.constant 0 : index
    %879 = memref.load %arg4[%c7_391, %c0_392] : memref<8x8xf32, #tpu.memory_space<smem>>
    %880 = vector.broadcast %879 : f32 to vector<2x256xf32>
    %881 = arith.mulf %880, %114 : vector<2x256xf32>
    %c7_393 = arith.constant 7 : index
    %c1_394 = arith.constant 1 : index
    %882 = memref.load %arg4[%c7_393, %c1_394] : memref<8x8xf32, #tpu.memory_space<smem>>
    %883 = vector.broadcast %882 : f32 to vector<2x256xf32>
    %884 = arith.mulf %883, %189 : vector<2x256xf32>
    %885 = arith.addf %881, %884 : vector<2x256xf32>
    %c7_395 = arith.constant 7 : index
    %c2_396 = arith.constant 2 : index
    %886 = memref.load %arg4[%c7_395, %c2_396] : memref<8x8xf32, #tpu.memory_space<smem>>
    %887 = vector.broadcast %886 : f32 to vector<2x256xf32>
    %888 = arith.mulf %887, %264 : vector<2x256xf32>
    %889 = arith.addf %885, %888 : vector<2x256xf32>
    %c7_397 = arith.constant 7 : index
    %c3_398 = arith.constant 3 : index
    %890 = memref.load %arg4[%c7_397, %c3_398] : memref<8x8xf32, #tpu.memory_space<smem>>
    %891 = vector.broadcast %890 : f32 to vector<2x256xf32>
    %892 = arith.mulf %891, %339 : vector<2x256xf32>
    %893 = arith.addf %889, %892 : vector<2x256xf32>
    %c7_399 = arith.constant 7 : index
    %c4_400 = arith.constant 4 : index
    %894 = memref.load %arg4[%c7_399, %c4_400] : memref<8x8xf32, #tpu.memory_space<smem>>
    %895 = vector.broadcast %894 : f32 to vector<2x256xf32>
    %896 = arith.mulf %895, %414 : vector<2x256xf32>
    %897 = arith.addf %893, %896 : vector<2x256xf32>
    %c7_401 = arith.constant 7 : index
    %c5_402 = arith.constant 5 : index
    %898 = memref.load %arg4[%c7_401, %c5_402] : memref<8x8xf32, #tpu.memory_space<smem>>
    %899 = vector.broadcast %898 : f32 to vector<2x256xf32>
    %900 = arith.mulf %899, %489 : vector<2x256xf32>
    %901 = arith.addf %897, %900 : vector<2x256xf32>
    %c7_403 = arith.constant 7 : index
    %c6_404 = arith.constant 6 : index
    %902 = memref.load %arg4[%c7_403, %c6_404] : memref<8x8xf32, #tpu.memory_space<smem>>
    %903 = vector.broadcast %902 : f32 to vector<2x256xf32>
    %904 = arith.mulf %903, %564 : vector<2x256xf32>
    %905 = arith.addf %901, %904 : vector<2x256xf32>
    %c7_405 = arith.constant 7 : index
    %c7_406 = arith.constant 7 : index
    %906 = memref.load %arg4[%c7_405, %c7_406] : memref<8x8xf32, #tpu.memory_space<smem>>
    %907 = vector.broadcast %906 : f32 to vector<2x256xf32>
    %908 = arith.mulf %907, %639 : vector<2x256xf32>
    %909 = arith.addf %905, %908 : vector<2x256xf32>
    %c7_407 = arith.constant 7 : index
    %910 = memref.load %arg5[%c7_407] : memref<8xf32, #tpu.memory_space<smem>>
    %911 = vector.broadcast %910 : f32 to vector<2x256xf32>
    %912 = arith.addf %909, %911 : vector<2x256xf32>
    %913 = tpu.concatenate %810, %844, %878, %912 in 0 : vector<2x256xf32>, vector<2x256xf32>, vector<2x256xf32>, vector<2x256xf32> -> vector<8x256xf32>
    %914 = arith.truncf %776 : vector<8x256xf32> to vector<8x256xbf16>
    %c0_408 = arith.constant 0 : index
    %c0_409 = arith.constant 0 : index
    %915 = vector.load %arg10[%c0_408, %c0_409] : memref<256x256xbf16, #tpu.memory_space<vmem>>, vector<256x256xbf16>
    %cst_410 = arith.constant dense<0.000000e+00> : vector<8x256xf32>
    %916 = tpu.matmul %914, %915, %cst_410 {dimension_numbers = #tpu.dot_dimension_numbers<[1], [0], [0], [1], [0, 0, 1, 1], [], []>} : vector<8x256xbf16>, vector<256x256xbf16>, vector<8x256xf32> -> vector<8x256xf32>
    %917 = arith.truncf %913 : vector<8x256xf32> to vector<8x256xbf16>
    %c0_411 = arith.constant 0 : index
    %c0_412 = arith.constant 0 : index
    %918 = vector.load %arg11[%c0_411, %c0_412] : memref<256x256xbf16, #tpu.memory_space<vmem>>, vector<256x256xbf16>
    %cst_413 = arith.constant dense<0.000000e+00> : vector<8x256xf32>
    %919 = tpu.matmul %917, %918, %cst_413 {dimension_numbers = #tpu.dot_dimension_numbers<[1], [0], [0], [1], [0, 0, 1, 1], [], []>} : vector<8x256xbf16>, vector<256x256xbf16>, vector<8x256xf32> -> vector<8x256xf32>
    %920 = arith.subf %916, %919 : vector<8x256xf32>
    %921 = vector.extract_strided_slice %920 {offsets = [0, 0], sizes = [2, 256], strides = [1, 1]} : vector<8x256xf32> to vector<2x256xf32>
    %922 = vector.extract_strided_slice %920 {offsets = [2, 0], sizes = [2, 256], strides = [1, 1]} : vector<8x256xf32> to vector<2x256xf32>
    %923 = vector.extract_strided_slice %920 {offsets = [4, 0], sizes = [2, 256], strides = [1, 1]} : vector<8x256xf32> to vector<2x256xf32>
    %924 = vector.extract_strided_slice %920 {offsets = [6, 0], sizes = [2, 256], strides = [1, 1]} : vector<8x256xf32> to vector<2x256xf32>
    %c0_414 = arith.constant 0 : index
    %c0_415 = arith.constant 0 : index
    %925 = memref.load %arg6[%c0_414, %c0_415] : memref<4x4xf32, #tpu.memory_space<smem>>
    %926 = vector.broadcast %925 : f32 to vector<2x256xf32>
    %927 = arith.mulf %926, %921 : vector<2x256xf32>
    %c0_416 = arith.constant 0 : index
    %c1_417 = arith.constant 1 : index
    %928 = memref.load %arg6[%c0_416, %c1_417] : memref<4x4xf32, #tpu.memory_space<smem>>
    %929 = vector.broadcast %928 : f32 to vector<2x256xf32>
    %930 = arith.mulf %929, %922 : vector<2x256xf32>
    %931 = arith.addf %927, %930 : vector<2x256xf32>
    %c0_418 = arith.constant 0 : index
    %c2_419 = arith.constant 2 : index
    %932 = memref.load %arg6[%c0_418, %c2_419] : memref<4x4xf32, #tpu.memory_space<smem>>
    %933 = vector.broadcast %932 : f32 to vector<2x256xf32>
    %934 = arith.mulf %933, %923 : vector<2x256xf32>
    %935 = arith.addf %931, %934 : vector<2x256xf32>
    %c0_420 = arith.constant 0 : index
    %c3_421 = arith.constant 3 : index
    %936 = memref.load %arg6[%c0_420, %c3_421] : memref<4x4xf32, #tpu.memory_space<smem>>
    %937 = vector.broadcast %936 : f32 to vector<2x256xf32>
    %938 = arith.mulf %937, %924 : vector<2x256xf32>
    %939 = arith.addf %935, %938 : vector<2x256xf32>
    %c0_422 = arith.constant 0 : index
    %940 = memref.load %arg7[%c0_422] : memref<4xf32, #tpu.memory_space<smem>>
    %941 = vector.broadcast %940 : f32 to vector<2x256xf32>
    %942 = arith.addf %939, %941 : vector<2x256xf32>
    %cst_423 = arith.constant 0.000000e+00 : f32
    %943 = vector.broadcast %cst_423 : f32 to vector<2x256xf32>
    %944 = arith.subf %943, %942 : vector<2x256xf32>
    %945 = math.exp %944 : vector<2x256xf32>
    %cst_424 = arith.constant 1.000000e+00 : f32
    %946 = vector.broadcast %cst_424 : f32 to vector<2x256xf32>
    %947 = arith.addf %946, %945 : vector<2x256xf32>
    %cst_425 = arith.constant 1.000000e+00 : f32
    %948 = vector.broadcast %cst_425 : f32 to vector<2x256xf32>
    %949 = arith.divf %948, %947 : vector<2x256xf32>
    %c0_426 = arith.constant 0 : index
    %c0_427 = arith.constant 0 : index
    %950 = vector.load %arg12[%c0_426, %c0_427] : memref<8x256xf32, #tpu.memory_space<vmem>>, vector<2x256xf32>
    %951 = arith.mulf %950, %949 : vector<2x256xf32>
    %c0_428 = arith.constant 0 : index
    %c0_429 = arith.constant 0 : index
    %952 = vector.load %arg13[%c0_428, %c0_429] : memref<8x256xf32, #tpu.memory_space<vmem>>, vector<2x256xf32>
    tpu.vector_store %arg13[%c0_428, %c0_429], %951 {strides = array<i32>} : memref<8x256xf32, #tpu.memory_space<vmem>>, vector<2x256xf32>,
    %c1_430 = arith.constant 1 : index
    %c0_431 = arith.constant 0 : index
    %953 = memref.load %arg6[%c1_430, %c0_431] : memref<4x4xf32, #tpu.memory_space<smem>>
    %954 = vector.broadcast %953 : f32 to vector<2x256xf32>
    %955 = arith.mulf %954, %921 : vector<2x256xf32>
    %c1_432 = arith.constant 1 : index
    %c1_433 = arith.constant 1 : index
    %956 = memref.load %arg6[%c1_432, %c1_433] : memref<4x4xf32, #tpu.memory_space<smem>>
    %957 = vector.broadcast %956 : f32 to vector<2x256xf32>
    %958 = arith.mulf %957, %922 : vector<2x256xf32>
    %959 = arith.addf %955, %958 : vector<2x256xf32>
    %c1_434 = arith.constant 1 : index
    %c2_435 = arith.constant 2 : index
    %960 = memref.load %arg6[%c1_434, %c2_435] : memref<4x4xf32, #tpu.memory_space<smem>>
    %961 = vector.broadcast %960 : f32 to vector<2x256xf32>
    %962 = arith.mulf %961, %923 : vector<2x256xf32>
    %963 = arith.addf %959, %962 : vector<2x256xf32>
    %c1_436 = arith.constant 1 : index
    %c3_437 = arith.constant 3 : index
    %964 = memref.load %arg6[%c1_436, %c3_437] : memref<4x4xf32, #tpu.memory_space<smem>>
    %965 = vector.broadcast %964 : f32 to vector<2x256xf32>
    %966 = arith.mulf %965, %924 : vector<2x256xf32>
    %967 = arith.addf %963, %966 : vector<2x256xf32>
    %c1_438 = arith.constant 1 : index
    %968 = memref.load %arg7[%c1_438] : memref<4xf32, #tpu.memory_space<smem>>
    %969 = vector.broadcast %968 : f32 to vector<2x256xf32>
    %970 = arith.addf %967, %969 : vector<2x256xf32>
    %cst_439 = arith.constant 0.000000e+00 : f32
    %971 = vector.broadcast %cst_439 : f32 to vector<2x256xf32>
    %972 = arith.subf %971, %970 : vector<2x256xf32>
    %973 = math.exp %972 : vector<2x256xf32>
    %cst_440 = arith.constant 1.000000e+00 : f32
    %974 = vector.broadcast %cst_440 : f32 to vector<2x256xf32>
    %975 = arith.addf %974, %973 : vector<2x256xf32>
    %cst_441 = arith.constant 1.000000e+00 : f32
    %976 = vector.broadcast %cst_441 : f32 to vector<2x256xf32>
    %977 = arith.divf %976, %975 : vector<2x256xf32>
    %c2_442 = arith.constant 2 : index
    %c0_443 = arith.constant 0 : index
    %978 = vector.load %arg12[%c2_442, %c0_443] : memref<8x256xf32, #tpu.memory_space<vmem>>, vector<2x256xf32>
    %979 = arith.mulf %978, %977 : vector<2x256xf32>
    %c2_444 = arith.constant 2 : index
    %c0_445 = arith.constant 0 : index
    %980 = vector.load %arg13[%c2_444, %c0_445] : memref<8x256xf32, #tpu.memory_space<vmem>>, vector<2x256xf32>
    tpu.vector_store %arg13[%c2_444, %c0_445], %979 {strides = array<i32>} : memref<8x256xf32, #tpu.memory_space<vmem>>, vector<2x256xf32>,
    %c2_446 = arith.constant 2 : index
    %c0_447 = arith.constant 0 : index
    %981 = memref.load %arg6[%c2_446, %c0_447] : memref<4x4xf32, #tpu.memory_space<smem>>
    %982 = vector.broadcast %981 : f32 to vector<2x256xf32>
    %983 = arith.mulf %982, %921 : vector<2x256xf32>
    %c2_448 = arith.constant 2 : index
    %c1_449 = arith.constant 1 : index
    %984 = memref.load %arg6[%c2_448, %c1_449] : memref<4x4xf32, #tpu.memory_space<smem>>
    %985 = vector.broadcast %984 : f32 to vector<2x256xf32>
    %986 = arith.mulf %985, %922 : vector<2x256xf32>
    %987 = arith.addf %983, %986 : vector<2x256xf32>
    %c2_450 = arith.constant 2 : index
    %c2_451 = arith.constant 2 : index
    %988 = memref.load %arg6[%c2_450, %c2_451] : memref<4x4xf32, #tpu.memory_space<smem>>
    %989 = vector.broadcast %988 : f32 to vector<2x256xf32>
    %990 = arith.mulf %989, %923 : vector<2x256xf32>
    %991 = arith.addf %987, %990 : vector<2x256xf32>
    %c2_452 = arith.constant 2 : index
    %c3_453 = arith.constant 3 : index
    %992 = memref.load %arg6[%c2_452, %c3_453] : memref<4x4xf32, #tpu.memory_space<smem>>
    %993 = vector.broadcast %992 : f32 to vector<2x256xf32>
    %994 = arith.mulf %993, %924 : vector<2x256xf32>
    %995 = arith.addf %991, %994 : vector<2x256xf32>
    %c2_454 = arith.constant 2 : index
    %996 = memref.load %arg7[%c2_454] : memref<4xf32, #tpu.memory_space<smem>>
    %997 = vector.broadcast %996 : f32 to vector<2x256xf32>
    %998 = arith.addf %995, %997 : vector<2x256xf32>
    %cst_455 = arith.constant 0.000000e+00 : f32
    %999 = vector.broadcast %cst_455 : f32 to vector<2x256xf32>
    %1000 = arith.subf %999, %998 : vector<2x256xf32>
    %1001 = math.exp %1000 : vector<2x256xf32>
    %cst_456 = arith.constant 1.000000e+00 : f32
    %1002 = vector.broadcast %cst_456 : f32 to vector<2x256xf32>
    %1003 = arith.addf %1002, %1001 : vector<2x256xf32>
    %cst_457 = arith.constant 1.000000e+00 : f32
    %1004 = vector.broadcast %cst_457 : f32 to vector<2x256xf32>
    %1005 = arith.divf %1004, %1003 : vector<2x256xf32>
    %c4_458 = arith.constant 4 : index
    %c0_459 = arith.constant 0 : index
    %1006 = vector.load %arg12[%c4_458, %c0_459] : memref<8x256xf32, #tpu.memory_space<vmem>>, vector<2x256xf32>
    %1007 = arith.mulf %1006, %1005 : vector<2x256xf32>
    %c4_460 = arith.constant 4 : index
    %c0_461 = arith.constant 0 : index
    %1008 = vector.load %arg13[%c4_460, %c0_461] : memref<8x256xf32, #tpu.memory_space<vmem>>, vector<2x256xf32>
    tpu.vector_store %arg13[%c4_460, %c0_461], %1007 {strides = array<i32>} : memref<8x256xf32, #tpu.memory_space<vmem>>, vector<2x256xf32>,
    %c3_462 = arith.constant 3 : index
    %c0_463 = arith.constant 0 : index
    %1009 = memref.load %arg6[%c3_462, %c0_463] : memref<4x4xf32, #tpu.memory_space<smem>>
    %1010 = vector.broadcast %1009 : f32 to vector<2x256xf32>
    %1011 = arith.mulf %1010, %921 : vector<2x256xf32>
    %c3_464 = arith.constant 3 : index
    %c1_465 = arith.constant 1 : index
    %1012 = memref.load %arg6[%c3_464, %c1_465] : memref<4x4xf32, #tpu.memory_space<smem>>
    %1013 = vector.broadcast %1012 : f32 to vector<2x256xf32>
    %1014 = arith.mulf %1013, %922 : vector<2x256xf32>
    %1015 = arith.addf %1011, %1014 : vector<2x256xf32>
    %c3_466 = arith.constant 3 : index
    %c2_467 = arith.constant 2 : index
    %1016 = memref.load %arg6[%c3_466, %c2_467] : memref<4x4xf32, #tpu.memory_space<smem>>
    %1017 = vector.broadcast %1016 : f32 to vector<2x256xf32>
    %1018 = arith.mulf %1017, %923 : vector<2x256xf32>
    %1019 = arith.addf %1015, %1018 : vector<2x256xf32>
    %c3_468 = arith.constant 3 : index
    %c3_469 = arith.constant 3 : index
    %1020 = memref.load %arg6[%c3_468, %c3_469] : memref<4x4xf32, #tpu.memory_space<smem>>
    %1021 = vector.broadcast %1020 : f32 to vector<2x256xf32>
    %1022 = arith.mulf %1021, %924 : vector<2x256xf32>
    %1023 = arith.addf %1019, %1022 : vector<2x256xf32>
    %c3_470 = arith.constant 3 : index
    %1024 = memref.load %arg7[%c3_470] : memref<4xf32, #tpu.memory_space<smem>>
    %1025 = vector.broadcast %1024 : f32 to vector<2x256xf32>
    %1026 = arith.addf %1023, %1025 : vector<2x256xf32>
    %cst_471 = arith.constant 0.000000e+00 : f32
    %1027 = vector.broadcast %cst_471 : f32 to vector<2x256xf32>
    %1028 = arith.subf %1027, %1026 : vector<2x256xf32>
    %1029 = math.exp %1028 : vector<2x256xf32>
    %cst_472 = arith.constant 1.000000e+00 : f32
    %1030 = vector.broadcast %cst_472 : f32 to vector<2x256xf32>
    %1031 = arith.addf %1030, %1029 : vector<2x256xf32>
    %cst_473 = arith.constant 1.000000e+00 : f32
    %1032 = vector.broadcast %cst_473 : f32 to vector<2x256xf32>
    %1033 = arith.divf %1032, %1031 : vector<2x256xf32>
    %c6_474 = arith.constant 6 : index
    %c0_475 = arith.constant 0 : index
    %1034 = vector.load %arg12[%c6_474, %c0_475] : memref<8x256xf32, #tpu.memory_space<vmem>>, vector<2x256xf32>
    %1035 = arith.mulf %1034, %1033 : vector<2x256xf32>
    %c6_476 = arith.constant 6 : index
    %c0_477 = arith.constant 0 : index
    %1036 = vector.load %arg13[%c6_476, %c0_477] : memref<8x256xf32, #tpu.memory_space<vmem>>, vector<2x256xf32>
    tpu.vector_store %arg13[%c6_476, %c0_477], %1035 {strides = array<i32>} : memref<8x256xf32, #tpu.memory_space<vmem>>, vector<2x256xf32>,
    return
  }
  func.func @transform_0(%arg0: i32) -> i32 {
    %c0_i32 = arith.constant 0 : i32
    %c0_i32_0 = arith.constant 0 : i32
    return %c0_i32 : i32
  }
  func.func @transform_1(%arg0: i32) -> (i32, i32) {
    %c0_i32 = arith.constant 0 : i32
    %c0_i32_0 = arith.constant 0 : i32
    %c0_i32_1 = arith.constant 0 : i32
    return %c0_i32, %c0_i32_0 : i32, i32
  }
  func.func @transform_2(%arg0: i32) -> i32 {
    %c0_i32 = arith.constant 0 : i32
    %c0_i32_0 = arith.constant 0 : i32
    return %c0_i32 : i32
  }
  func.func @transform_3(%arg0: i32) -> (i32, i32) {
    %c0_i32 = arith.constant 0 : i32
    %c0_i32_0 = arith.constant 0 : i32
    %c0_i32_1 = arith.constant 0 : i32
    return %c0_i32, %c0_i32_0 : i32, i32
  }
  func.func @transform_4(%arg0: i32) -> i32 {
    %c0_i32 = arith.constant 0 : i32
    %c0_i32_0 = arith.constant 0 : i32
    return %c0_i32 : i32
  }
  func.func @transform_5(%arg0: i32) -> (i32, i32) {
    %c0_i32 = arith.constant 0 : i32
    %c0_i32_0 = arith.constant 0 : i32
    %c0_i32_1 = arith.constant 0 : i32
    return %c0_i32, %c0_i32_0 : i32, i32
  }
  func.func @transform_6(%arg0: i32) -> i32 {
    %c0_i32 = arith.constant 0 : i32
    %c0_i32_0 = arith.constant 0 : i32
    return %c0_i32 : i32
  }
  func.func @transform_7(%arg0: i32) -> (i32, i32) {
    %c0_i32 = arith.constant 0 : i32
    %c0_i32_0 = arith.constant 0 : i32
    %c0_i32_1 = arith.constant 0 : i32
    return %c0_i32, %c0_i32_0 : i32, i32
  }
  func.func @transform_8(%arg0: i32) -> (i32, i32) {
    %c0_i32 = arith.constant 0 : i32
    %c0_i32_0 = arith.constant 0 : i32
    %c0_i32_1 = arith.constant 0 : i32
    return %c0_i32, %c0_i32_0 : i32, i32
  }
  func.func @transform_9(%arg0: i32) -> (i32, i32) {
    %c0_i32 = arith.constant 0 : i32
    %c0_i32_0 = arith.constant 0 : i32
    %c0_i32_1 = arith.constant 0 : i32
    return %c0_i32, %c0_i32_0 : i32, i32
  }
  func.func @transform_10(%arg0: i32) -> (i32, i32) {
    %c0_i32 = arith.constant 0 : i32
    %c0_i32_0 = arith.constant 0 : i32
    %c0_i32_1 = arith.constant 0 : i32
    return %c0_i32, %c0_i32_0 : i32, i32
  }
  func.func @transform_11(%arg0: i32) -> (i32, i32) {
    %c0_i32 = arith.constant 0 : i32
    %c0_i32_0 = arith.constant 0 : i32
    return %arg0, %c0_i32 : i32, i32
  }
  func.func @transform_12(%arg0: i32) -> (i32, i32) {
    %c0_i32 = arith.constant 0 : i32
    %c0_i32_0 = arith.constant 0 : i32
    return %arg0, %c0_i32 : i32, i32
  }
}

</mosaic_0001>

<llo_original>
// kernel: tpu_custom_call.1
$region0: #{tpu_custom_call.1}
  #allocation0 [shape = 'u32[]', space=smem, size = 0x4, offset = 0x4, fixed_abs, tag = 'smem constant byte address 0x4 - core index']
  #allocation1 [shape = 'u32[144,128]{1,0:T(1,128)}', space=vmem, size = 0x12000, scoped, tag = 'internal scratch']
  %s0 = inlined_call_operand.hbm [shape: f32[2], index: 0, kind: input, shape index: {}]
  %s1 = inlined_call_operand.hbm [shape: f32[8,8], index: 1, kind: input, shape index: {}]
  %s2 = inlined_call_operand.hbm [shape: f32[8], index: 2, kind: input, shape index: {}]
  %s3 = inlined_call_operand.hbm [shape: f32[8,8], index: 3, kind: input, shape index: {}]
  %s4 = inlined_call_operand.hbm [shape: f32[8], index: 4, kind: input, shape index: {}]
  %s5 = inlined_call_operand.vmem [shape: f32[4,4], index: 5, kind: input, shape index: {}]
  %s6 = inlined_call_operand.hbm [shape: f32[4], index: 6, kind: input, shape index: {}]
  %s7 = inlined_call_operand.hbm [shape: f32[256,256], index: 7, kind: input, shape index: {}]
  %s8 = inlined_call_operand.hbm [shape: f32[256,256], index: 8, kind: input, shape index: {}]
  %s9 = inlined_call_operand.hbm [shape: bf16[256,256], index: 9, kind: input, shape index: {}]
  %s10 = inlined_call_operand.hbm [shape: bf16[256,256], index: 10, kind: input, shape index: {}]
  %s11 = inlined_call_operand.vmem [shape: f32[8,256], index: 11, kind: input, shape index: {}]
  %s12 = inlined_call_operand.hbm [shape: f32[8,256], index: 12, kind: output, shape index: {}]
  %s13 = sld [smem:[#allocation0]]
  $region102: #{tpu_custom_call.1} parent=0
    _
  %s15 = ssub.s32 1, %s13
  %s16 = scalar_select 0, %s15, %s13
  $region1: #{tpu_custom_call.1} parent=0
    #allocation2 [shape = 'u8[512]{0}', space=smem, size = 0x200, scoped, tag = 'input window, operand 0, single buffered']
    #allocation3 [shape = 's32[1]{0}', space=sflag, size = 0x4, scoped, tag = 'scoped memory for tpu_custom_call.1']
    #allocation4 [shape = 's32[1]{0}', space=sflag, size = 0x4, scoped, tag = 'scoped memory for tpu_custom_call.1']
    #allocation5 [shape = 's32[1]{0}', space=sflag, size = 0x4, scoped, tag = 'scoped memory for tpu_custom_call.1']
    #allocation6 [shape = 's32[1]{0}', space=sflag, size = 0x4, scoped, tag = 'scoped memory for tpu_custom_call.1']
    #allocation7 [shape = 'u8[4096]{0}', space=smem, size = 0x1000, scoped, tag = 'input window, operand 1, single buffered']
    #allocation8 [shape = 's32[1]{0}', space=sflag, size = 0x4, scoped, tag = 'scoped memory for tpu_custom_call.1']
    #allocation9 [shape = 'u8[512]{0}', space=smem, size = 0x200, scoped, tag = 'input window, operand 2, single buffered']
    #allocation10 [shape = 'u8[4096]{0}', space=smem, size = 0x1000, scoped, tag = 'input window, operand 3, single buffered']
    #allocation11 [shape = 's32[1]{0}', space=sflag, size = 0x4, scoped, tag = 'scoped memory for tpu_custom_call.1']
    #allocation12 [shape = 'u8[512]{0}', space=smem, size = 0x200, scoped, tag = 'input window, operand 4, single buffered']
    #allocation13 [shape = 'u8[2048]{0}', space=smem, size = 0x800, scoped, tag = 'input window, operand 5, single buffered']
    #allocation14 [shape = 'u8[512]{0}', space=smem, size = 0x200, scoped, tag = 'input window, operand 6, single buffered']
    #allocation15 [shape = 's32[1]{0}', space=sflag, size = 0x4, scoped, tag = 'scoped memory for tpu_custom_call.1']
    #allocation16 [shape = 'u8[262144]{0}', space=vmem, size = 0x40000, scoped, tag = 'input window, operand 7, single buffered']
    #allocation17 [shape = 'u8[262144]{0}', space=vmem, size = 0x40000, scoped, tag = 'input window, operand 8, single buffered']
    #allocation18 [shape = 's32[1]{0}', space=sflag, size = 0x4, scoped, tag = 'scoped memory for tpu_custom_call.1']
    #allocation19 [shape = 'u8[131072]{0}', space=vmem, size = 0x20000, scoped, tag = 'input window, operand 9, single buffered']
    #allocation20 [shape = 'u8[131072]{0}', space=vmem, size = 0x20000, scoped, tag = 'input window, operand 10, single buffered']
    #allocation21 [shape = 's32[1]{0}', space=sflag, size = 0x4, scoped, tag = 'scoped memory for tpu_custom_call.1']
    #allocation22 [shape = 'u8[8192]{0}', space=vmem, size = 0x2000, scoped, tag = 'output window, operand 0, single buffered']
    %17 = vsyncpa [#allocation5], 0
    %18 = vsyncpa [#allocation8], 0
    %19 = vsyncpa [#allocation11], 0
    %20 = vsyncpa [#allocation6], 0
    %21 = vsyncpa [#allocation15], 0
    %22 = vsyncpa [#allocation3], 0
    %23 = vsyncpa [#allocation18], 0
    %24 = vsyncpa [#allocation21], 0
    %25 = vsyncpa [#allocation4], 0
    // Predicated region
    $region2: #{tpu_custom_call.1} parent=1 // pred_check
      _
    $region3: #{tpu_custom_call.1} parent=1 // pred_check_branch
      %27 = sbr.rel (0) target = $region5
    $region4: #{tpu_custom_call.1} parent=1 // pred_region
      %s29 = ssub.s32 16, 16
      %30 = vsyncadd [#allocation5], %s29
      %33 = dma.hbm_to_smem %s0, 16, [#allocation2], [#allocation5]
    $region5: #{tpu_custom_call.1} parent=1 // pred_fallthru
      _
    // Predicated region
    $region6: #{tpu_custom_call.1} parent=1 // pred_check
      _
    $region7: #{tpu_custom_call.1} parent=1 // pred_check_branch
      %35 = sbr.rel (0) target = $region9
    $region8: #{tpu_custom_call.1} parent=1 // pred_region
      %s37 = ssub.s32 128, 128
      %38 = vsyncadd [#allocation8], %s37
      %41 = dma.hbm_to_smem %s1, 128, [#allocation7], [#allocation8]
    $region9: #{tpu_custom_call.1} parent=1 // pred_fallthru
      _
    // Predicated region
    $region10: #{tpu_custom_call.1} parent=1 // pred_check
      _
    $region11: #{tpu_custom_call.1} parent=1 // pred_check_branch
      %43 = sbr.rel (0) target = $region13
    $region12: #{tpu_custom_call.1} parent=1 // pred_region
      %s45 = ssub.s32 16, 16
      %46 = vsyncadd [#allocation8], %s45
      %49 = dma.hbm_to_smem %s2, 16, [#allocation9], [#allocation8]
    $region13: #{tpu_custom_call.1} parent=1 // pred_fallthru
      _
    // Predicated region
    $region14: #{tpu_custom_call.1} parent=1 // pred_check
      _
    $region15: #{tpu_custom_call.1} parent=1 // pred_check_branch
      %51 = sbr.rel (0) target = $region17
    $region16: #{tpu_custom_call.1} parent=1 // pred_region
      %s53 = ssub.s32 128, 128
      %54 = vsyncadd [#allocation11], %s53
      %57 = dma.hbm_to_smem %s3, 128, [#allocation10], [#allocation11]
    $region17: #{tpu_custom_call.1} parent=1 // pred_fallthru
      _
    // Predicated region
    $region18: #{tpu_custom_call.1} parent=1 // pred_check
      _
    $region19: #{tpu_custom_call.1} parent=1 // pred_check_branch
      %59 = sbr.rel (0) target = $region21
    $region20: #{tpu_custom_call.1} parent=1 // pred_region
      %s61 = ssub.s32 16, 16
      %62 = vsyncadd [#allocation11], %s61
      %65 = dma.hbm_to_smem %s4, 16, [#allocation12], [#allocation11]
    $region21: #{tpu_custom_call.1} parent=1 // pred_fallthru
      _
    // Predicated region
    $region22: #{tpu_custom_call.1} parent=1 // pred_check
      _
    $region23: #{tpu_custom_call.1} parent=1 // pred_check_branch
      %67 = sbr.rel (0) target = $region25
    $region24: #{tpu_custom_call.1} parent=1 // pred_region
      %s69 = ssub.s32 64, 64
      %70 = vsyncadd [#allocation6], %s69
      %s72 = sshll.u32 %s5, 4
      %s73 = int_to_ptr.vmem [resolvable:$true] %s72
      %75 = dma.vmem_to_smem %s73, 64, [#allocation13], [#allocation6]
    $region25: #{tpu_custom_call.1} parent=1 // pred_fallthru
      _
    // Predicated region
    $region26: #{tpu_custom_call.1} parent=1 // pred_check
      _
    $region27: #{tpu_custom_call.1} parent=1 // pred_check_branch
      %77 = sbr.rel (0) target = $region29
    $region28: #{tpu_custom_call.1} parent=1 // pred_region
      %s79 = ssub.s32 16, 16
      %80 = vsyncadd [#allocation15], %s79
      %83 = dma.hbm_to_smem %s6, 16, [#allocation14], [#allocation15]
    $region29: #{tpu_custom_call.1} parent=1 // pred_fallthru
      _
    // Predicated region
    $region30: #{tpu_custom_call.1} parent=1 // pred_check
      _
    $region31: #{tpu_custom_call.1} parent=1 // pred_check_branch
      %85 = sbr.rel (0) target = $region33
    $region32: #{tpu_custom_call.1} parent=1 // pred_region
      %s87 = ssub.s32 8192, 8192
      %88 = vsyncadd [#allocation3], %s87
      %s89 = sshll.u32 [#allocation16], 4
      %s90 = int_to_ptr.vmem [resolvable:$true] %s89
      %95 = dma.hbm_to_vmem [thread:$0]  %s7, 8192, %s90, [#allocation3], 256, 256, 16
    $region33: #{tpu_custom_call.1} parent=1 // pred_fallthru
      _
    // Predicated region
    $region34: #{tpu_custom_call.1} parent=1 // pred_check
      _
    $region35: #{tpu_custom_call.1} parent=1 // pred_check_branch
      %97 = sbr.rel (0) target = $region37
    $region36: #{tpu_custom_call.1} parent=1 // pred_region
      %s99 = ssub.s32 8192, 8192
      %100 = vsyncadd [#allocation18], %s99
      %s101 = sshll.u32 [#allocation17], 4
      %s102 = int_to_ptr.vmem [resolvable:$true] %s101
      %107 = dma.hbm_to_vmem [thread:$0]  %s8, 8192, %s102, [#allocation18], 256, 256, 16
    $region37: #{tpu_custom_call.1} parent=1 // pred_fallthru
      _
    // Predicated region
    $region38: #{tpu_custom_call.1} parent=1 // pred_check
      _
    $region39: #{tpu_custom_call.1} parent=1 // pred_check_branch
      %109 = sbr.rel (0) target = $region41
    $region40: #{tpu_custom_call.1} parent=1 // pred_region
      %s111 = ssub.s32 4096, 4096
      %112 = vsyncadd [#allocation18], %s111
      %s113 = sshll.u32 [#allocation19], 4
      %s114 = int_to_ptr.vmem [resolvable:$true] %s113
      %119 = dma.hbm_to_vmem [thread:$0]  %s9, 4096, %s114, [#allocation18], 128, 128, 8
    $region41: #{tpu_custom_call.1} parent=1 // pred_fallthru
      _
    // Predicated region
    $region42: #{tpu_custom_call.1} parent=1 // pred_check
      _
    $region43: #{tpu_custom_call.1} parent=1 // pred_check_branch
      %121 = sbr.rel (0) target = $region45
    $region44: #{tpu_custom_call.1} parent=1 // pred_region
      %s123 = ssub.s32 4096, 4096
      %124 = vsyncadd [#allocation21], %s123
      %s125 = sshll.u32 [#allocation20], 4
      %s126 = int_to_ptr.vmem [resolvable:$true] %s125
      %131 = dma.hbm_to_vmem [thread:$0]  %s10, 4096, %s126, [#allocation21], 128, 128, 8
    $region45: #{tpu_custom_call.1} parent=1 // pred_fallthru
      _
    // Predicated region
    $region46: #{tpu_custom_call.1} parent=1 // pred_check
      _
    $region47: #{tpu_custom_call.1} parent=1 // pred_check_branch
      %133 = sbr.rel (0) target = $region49
    $region48: #{tpu_custom_call.1} parent=1 // pred_region
      _
    $region49: #{tpu_custom_call.1} parent=1 // pred_fallthru
      _
    // Predicated region
    $region50: #{tpu_custom_call.1} parent=1 // pred_check
      _
    $region51: #{tpu_custom_call.1} parent=1 // pred_check_branch
      %135 = sbr.rel (0) target = $region53
    $region52: #{tpu_custom_call.1} parent=1 // pred_region
      %136 = dma.done [#allocation5], 16
    $region53: #{tpu_custom_call.1} parent=1 // pred_fallthru
      _
    // Predicated region
    $region54: #{tpu_custom_call.1} parent=1 // pred_check
      _
    $region55: #{tpu_custom_call.1} parent=1 // pred_check_branch
      %138 = sbr.rel (0) target = $region57
    $region56: #{tpu_custom_call.1} parent=1 // pred_region
      %139 = dma.done [#allocation8], 128
    $region57: #{tpu_custom_call.1} parent=1 // pred_fallthru
      _
    // Predicated region
    $region58: #{tpu_custom_call.1} parent=1 // pred_check
      _
    $region59: #{tpu_custom_call.1} parent=1 // pred_check_branch
      %141 = sbr.rel (0) target = $region61
    $region60: #{tpu_custom_call.1} parent=1 // pred_region
      %142 = dma.done [#allocation8], 16
    $region61: #{tpu_custom_call.1} parent=1 // pred_fallthru
      _
    // Predicated region
    $region62: #{tpu_custom_call.1} parent=1 // pred_check
      _
    $region63: #{tpu_custom_call.1} parent=1 // pred_check_branch
      %144 = sbr.rel (0) target = $region65
    $region64: #{tpu_custom_call.1} parent=1 // pred_region
      %145 = dma.done [#allocation11], 128
    $region65: #{tpu_custom_call.1} parent=1 // pred_fallthru
      _
    // Predicated region
    $region66: #{tpu_custom_call.1} parent=1 // pred_check
      _
    $region67: #{tpu_custom_call.1} parent=1 // pred_check_branch
      %147 = sbr.rel (0) target = $region69
    $region68: #{tpu_custom_call.1} parent=1 // pred_region
      %148 = dma.done [#allocation11], 16
    $region69: #{tpu_custom_call.1} parent=1 // pred_fallthru
      _
    // Predicated region
    $region70: #{tpu_custom_call.1} parent=1 // pred_check
      _
    $region71: #{tpu_custom_call.1} parent=1 // pred_check_branch
      %150 = sbr.rel (0) target = $region73
    $region72: #{tpu_custom_call.1} parent=1 // pred_region
      %151 = dma.done [#allocation6], 64
    $region73: #{tpu_custom_call.1} parent=1 // pred_fallthru
      _
    // Predicated region
    $region74: #{tpu_custom_call.1} parent=1 // pred_check
      _
    $region75: #{tpu_custom_call.1} parent=1 // pred_check_branch
      %153 = sbr.rel (0) target = $region77
    $region76: #{tpu_custom_call.1} parent=1 // pred_region
      %154 = dma.done [#allocation15], 16
    $region77: #{tpu_custom_call.1} parent=1 // pred_fallthru
      _
    // Predicated region
    $region78: #{tpu_custom_call.1} parent=1 // pred_check
      _
    $region79: #{tpu_custom_call.1} parent=1 // pred_check_branch
      %156 = sbr.rel (0) target = $region81
    $region80: #{tpu_custom_call.1} parent=1 // pred_region
      %157 = dma.done [#allocation3], 8192
    $region81: #{tpu_custom_call.1} parent=1 // pred_fallthru
      _
    // Predicated region
    $region82: #{tpu_custom_call.1} parent=1 // pred_check
      _
    $region83: #{tpu_custom_call.1} parent=1 // pred_check_branch
      %159 = sbr.rel (0) target = $region85
    $region84: #{tpu_custom_call.1} parent=1 // pred_region
      %160 = dma.done [#allocation18], 8192
    $region85: #{tpu_custom_call.1} parent=1 // pred_fallthru
      _
    // Predicated region
    $region86: #{tpu_custom_call.1} parent=1 // pred_check
      _
    $region87: #{tpu_custom_call.1} parent=1 // pred_check_branch
      %162 = sbr.rel (0) target = $region89
    $region88: #{tpu_custom_call.1} parent=1 // pred_region
      %163 = dma.done [#allocation18], 4096
    $region89: #{tpu_custom_call.1} parent=1 // pred_fallthru
      _
    // Predicated region
    $region90: #{tpu_custom_call.1} parent=1 // pred_check
      _
    $region91: #{tpu_custom_call.1} parent=1 // pred_check_branch
      %165 = sbr.rel (0) target = $region93
    $region92: #{tpu_custom_call.1} parent=1 // pred_region
      %166 = dma.done [#allocation21], 4096
    $region93: #{tpu_custom_call.1} parent=1 // pred_fallthru
      _
    %167 = sfence
    %s168 = sld [smem:[#allocation2]]
    %s169 = sld [smem:[#allocation2 + $0x1]]
    %v170 = vld [vmem:[%s11] sm:$0xff]
    %v171 = vld [vmem:[%s11 + $0x8] sm:$0xff]
    %v172 = vld [vmem:[#allocation16] sm:$0xff]
    %v173 = vld [vmem:[#allocation16 + $0x8] sm:$0xff]
    %v174 = vld [vmem:[#allocation16 + $0x10] sm:$0xff]
    %v175 = vld [vmem:[#allocation16 + $0x18] sm:$0xff]
    %v176 = vld [vmem:[#allocation16 + $0x20] sm:$0xff]
    %v177 = vld [vmem:[#allocation16 + $0x28] sm:$0xff]
    %v178 = vld [vmem:[#allocation16 + $0x30] sm:$0xff]
    %v179 = vld [vmem:[#allocation16 + $0x38] sm:$0xff]
    %v180 = vld [vmem:[#allocation16 + $0x40] sm:$0xff]
    %v181 = vld [vmem:[#allocation16 + $0x48] sm:$0xff]
    %v182 = vld [vmem:[#allocation16 + $0x50] sm:$0xff]
    %v183 = vld [vmem:[#allocation16 + $0x58] sm:$0xff]
    %v184 = vld [vmem:[#allocation16 + $0x60] sm:$0xff]
    %v185 = vld [vmem:[#allocation16 + $0x68] sm:$0xff]
    %v186 = vld [vmem:[#allocation16 + $0x70] sm:$0xff]
    %v187 = vld [vmem:[#allocation16 + $0x78] sm:$0xff]
    %v188 = vld [vmem:[#allocation16 + $0x80] sm:$0xff]
    %v189 = vld [vmem:[#allocation16 + $0x88] sm:$0xff]
    %v190 = vld [vmem:[#allocation16 + $0x90] sm:$0xff]
    %v191 = vld [vmem:[#allocation16 + $0x98] sm:$0xff]
    %v192 = vld [vmem:[#allocation16 + $0xa0] sm:$0xff]
    %v193 = vld [vmem:[#allocation16 + $0xa8] sm:$0xff]
    %v194 = vld [vmem:[#allocation16 + $0xb0] sm:$0xff]
    %v195 = vld [vmem:[#allocation16 + $0xb8] sm:$0xff]
    %v196 = vld [vmem:[#allocation16 + $0xc0] sm:$0xff]
    %v197 = vld [vmem:[#allocation16 + $0xc8] sm:$0xff]
    %v198 = vld [vmem:[#allocation16 + $0xd0] sm:$0xff]
    %v199 = vld [vmem:[#allocation16 + $0xd8] sm:$0xff]
    %v200 = vld [vmem:[#allocation16 + $0xe0] sm:$0xff]
    %v201 = vld [vmem:[#allocation16 + $0xe8] sm:$0xff]
    %v202 = vld [vmem:[#allocation16 + $0xf0] sm:$0xff]
    %v203 = vld [vmem:[#allocation16 + $0xf8] sm:$0xff]
    %v204 = vld [vmem:[#allocation16 + $0x100] sm:$0xff]
    %v205 = vld [vmem:[#allocation16 + $0x108] sm:$0xff]
    %v206 = vld [vmem:[#allocation16 + $0x110] sm:$0xff]
    %v207 = vld [vmem:[#allocation16 + $0x118] sm:$0xff]
    %v208 = vld [vmem:[#allocation16 + $0x120] sm:$0xff]
    %v209 = vld [vmem:[#allocation16 + $0x128] sm:$0xff]
    %v210 = vld [vmem:[#allocation16 + $0x130] sm:$0xff]
    %v211 = vld [vmem:[#allocation16 + $0x138] sm:$0xff]
    %v212 = vld [vmem:[#allocation16 + $0x140] sm:$0xff]
    %v213 = vld [vmem:[#allocation16 + $0x148] sm:$0xff]
    %v214 = vld [vmem:[#allocation16 + $0x150] sm:$0xff]
    %v215 = vld [vmem:[#allocation16 + $0x158] sm:$0xff]
    %v216 = vld [vmem:[#allocation16 + $0x160] sm:$0xff]
    %v217 = vld [vmem:[#allocation16 + $0x168] sm:$0xff]
    %v218 = vld [vmem:[#allocation16 + $0x170] sm:$0xff]
    %v219 = vld [vmem:[#allocation16 + $0x178] sm:$0xff]
    %v220 = vld [vmem:[#allocation16 + $0x180] sm:$0xff]
    %v221 = vld [vmem:[#allocation16 + $0x188] sm:$0xff]
    %v222 = vld [vmem:[#allocation16 + $0x190] sm:$0xff]
    %v223 = vld [vmem:[#allocation16 + $0x198] sm:$0xff]
    %v224 = vld [vmem:[#allocation16 + $0x1a0] sm:$0xff]
    %v225 = vld [vmem:[#allocation16 + $0x1a8] sm:$0xff]
    %v226 = vld [vmem:[#allocation16 + $0x1b0] sm:$0xff]
    %v227 = vld [vmem:[#allocation16 + $0x1b8] sm:$0xff]
    %v228 = vld [vmem:[#allocation16 + $0x1c0] sm:$0xff]
    %v229 = vld [vmem:[#allocation16 + $0x1c8] sm:$0xff]
    %v230 = vld [vmem:[#allocation16 + $0x1d0] sm:$0xff]
    %v231 = vld [vmem:[#allocation16 + $0x1d8] sm:$0xff]
    %v232 = vld [vmem:[#allocation16 + $0x1e0] sm:$0xff]
    %v233 = vld [vmem:[#allocation16 + $0x1e8] sm:$0xff]
    %v234 = vld [vmem:[#allocation16 + $0x1f0] sm:$0xff]
    %v235 = vld [vmem:[#allocation16 + $0x1f8] sm:$0xff]
    %236 = vmatprep.subr.mxu0 %v203
    %237 = vmatpush1.msra.mxu0 %v202
    %238 = vmatprep.subr.mxu0 %v201
    %239 = vmatpush1.msra.mxu0 %v200
    %240 = vmatprep.subr.mxu0 %v199
    %241 = vmatpush1.msra.mxu0 %v198
    %242 = vmatprep.subr.mxu0 %v197
    %243 = vmatpush1.msra.mxu0 %v196
    %244 = vmatprep.subr.mxu0 %v195
    %245 = vmatpush1.msra.mxu0 %v194
    %246 = vmatprep.subr.mxu0 %v193
    %247 = vmatpush1.msra.mxu0 %v192
    %248 = vmatprep.subr.mxu0 %v191
    %249 = vmatpush1.msra.mxu0 %v190
    %250 = vmatprep.subr.mxu0 %v189
    %251 = vmatpush1.msra.mxu0 %v188
    %252 = vmatprep.subr.mxu0 %v187
    %253 = vmatpush1.msra.mxu0 %v186
    %254 = vmatprep.subr.mxu0 %v185
    %255 = vmatpush1.msra.mxu0 %v184
    %256 = vmatprep.subr.mxu0 %v183
    %257 = vmatpush1.msra.mxu0 %v182
    %258 = vmatprep.subr.mxu0 %v181
    %259 = vmatpush1.msra.mxu0 %v180
    %260 = vmatprep.subr.mxu0 %v179
    %261 = vmatpush1.msra.mxu0 %v178
    %262 = vmatprep.subr.mxu0 %v177
    %263 = vmatpush1.msra.mxu0 %v176
    %264 = vmatprep.subr.mxu0 %v175
    %265 = vmatpush1.msra.mxu0 %v174
    %266 = vmatprep.subr.mxu0 %v173
    %267 = vmatpush1.msra.mxu0 %v172
    %268 = vmatprep.subr.mxu0 %v235
    %269 = vmatpush2.msra.mxu0 %v234
    %270 = vmatprep.subr.mxu0 %v233
    %271 = vmatpush2.msra.mxu0 %v232
    %272 = vmatprep.subr.mxu0 %v231
    %273 = vmatpush2.msra.mxu0 %v230
    %274 = vmatprep.subr.mxu0 %v229
    %275 = vmatpush2.msra.mxu0 %v228
    %276 = vmatprep.subr.mxu0 %v227
    %277 = vmatpush2.msra.mxu0 %v226
    %278 = vmatprep.subr.mxu0 %v225
    %279 = vmatpush2.msra.mxu0 %v224
    %280 = vmatprep.subr.mxu0 %v223
    %281 = vmatpush2.msra.mxu0 %v222
    %282 = vmatprep.subr.mxu0 %v221
    %283 = vmatpush2.msra.mxu0 %v220
    %284 = vmatprep.subr.mxu0 %v219
    %285 = vmatpush2.msra.mxu0 %v218
    %286 = vmatprep.subr.mxu0 %v217
    %287 = vmatpush2.msra.mxu0 %v216
    %288 = vmatprep.subr.mxu0 %v215
    %289 = vmatpush2.msra.mxu0 %v214
    %290 = vmatprep.subr.mxu0 %v213
    %291 = vmatpush2.msra.mxu0 %v212
    %292 = vmatprep.subr.mxu0 %v211
    %293 = vmatpush2.msra.mxu0 %v210
    %294 = vmatprep.subr.mxu0 %v209
    %295 = vmatpush2.msra.mxu0 %v208
    %296 = vmatprep.subr.mxu0 %v207
    %297 = vmatpush2.msra.mxu0 %v206
    %298 = vmatprep.subr.mxu0 %v205
    %299 = vmatpush2.msra.mxu0 %v204
    %300 = vmatprep.mubr.f32.mxu0 %v171
    %301 = vmatmul.mubr.f32.gmra.mxu0 %v170
    %v302 = vpop.f32.mrf.mxu0
    %v303 = vadd.f32 0.0, %v302
    %v304 = vpop.f32.mrf.mxu0
    %v305 = vadd.f32 0.0, %v304
    %306 = vdwg.mxu0
    %v307 = vld [vmem:[#allocation17] sm:$0xff]
    %v308 = vld [vmem:[#allocation17 + $0x8] sm:$0xff]
    %v309 = vld [vmem:[#allocation17 + $0x10] sm:$0xff]
    %v310 = vld [vmem:[#allocation17 + $0x18] sm:$0xff]
    %v311 = vld [vmem:[#allocation17 + $0x20] sm:$0xff]
    %v312 = vld [vmem:[#allocation17 + $0x28] sm:$0xff]
    %v313 = vld [vmem:[#allocation17 + $0x30] sm:$0xff]
    %v314 = vld [vmem:[#allocation17 + $0x38] sm:$0xff]
    %v315 = vld [vmem:[#allocation17 + $0x40] sm:$0xff]
    %v316 = vld [vmem:[#allocation17 + $0x48] sm:$0xff]
    %v317 = vld [vmem:[#allocation17 + $0x50] sm:$0xff]
    %v318 = vld [vmem:[#allocation17 + $0x58] sm:$0xff]
    %v319 = vld [vmem:[#allocation17 + $0x60] sm:$0xff]
    %v320 = vld [vmem:[#allocation17 + $0x68] sm:$0xff]
    %v321 = vld [vmem:[#allocation17 + $0x70] sm:$0xff]
    %v322 = vld [vmem:[#allocation17 + $0x78] sm:$0xff]
    %v323 = vld [vmem:[#allocation17 + $0x80] sm:$0xff]
    %v324 = vld [vmem:[#allocation17 + $0x88] sm:$0xff]
    %v325 = vld [vmem:[#allocation17 + $0x90] sm:$0xff]
    %v326 = vld [vmem:[#allocation17 + $0x98] sm:$0xff]
    %v327 = vld [vmem:[#allocation17 + $0xa0] sm:$0xff]
    %v328 = vld [vmem:[#allocation17 + $0xa8] sm:$0xff]
    %v329 = vld [vmem:[#allocation17 + $0xb0] sm:$0xff]
    %v330 = vld [vmem:[#allocation17 + $0xb8] sm:$0xff]
    %v331 = vld [vmem:[#allocation17 + $0xc0] sm:$0xff]
    %v332 = vld [vmem:[#allocation17 + $0xc8] sm:$0xff]
    %v333 = vld [vmem:[#allocation17 + $0xd0] sm:$0xff]
    %v334 = vld [vmem:[#allocation17 + $0xd8] sm:$0xff]
    %v335 = vld [vmem:[#allocation17 + $0xe0] sm:$0xff]
    %v336 = vld [vmem:[#allocation17 + $0xe8] sm:$0xff]
    %v337 = vld [vmem:[#allocation17 + $0xf0] sm:$0xff]
    %v338 = vld [vmem:[#allocation17 + $0xf8] sm:$0xff]
    %v339 = vld [vmem:[#allocation17 + $0x100] sm:$0xff]
    %v340 = vld [vmem:[#allocation17 + $0x108] sm:$0xff]
    %v341 = vld [vmem:[#allocation17 + $0x110] sm:$0xff]
    %v342 = vld [vmem:[#allocation17 + $0x118] sm:$0xff]
    %v343 = vld [vmem:[#allocation17 + $0x120] sm:$0xff]
    %v344 = vld [vmem:[#allocation17 + $0x128] sm:$0xff]
    %v345 = vld [vmem:[#allocation17 + $0x130] sm:$0xff]
    %v346 = vld [vmem:[#allocation17 + $0x138] sm:$0xff]
    %v347 = vld [vmem:[#allocation17 + $0x140] sm:$0xff]
    %v348 = vld [vmem:[#allocation17 + $0x148] sm:$0xff]
    %v349 = vld [vmem:[#allocation17 + $0x150] sm:$0xff]
    %v350 = vld [vmem:[#allocation17 + $0x158] sm:$0xff]
    %v351 = vld [vmem:[#allocation17 + $0x160] sm:$0xff]
    %v352 = vld [vmem:[#allocation17 + $0x168] sm:$0xff]
    %v353 = vld [vmem:[#allocation17 + $0x170] sm:$0xff]
    %v354 = vld [vmem:[#allocation17 + $0x178] sm:$0xff]
    %v355 = vld [vmem:[#allocation17 + $0x180] sm:$0xff]
    %v356 = vld [vmem:[#allocation17 + $0x188] sm:$0xff]
    %v357 = vld [vmem:[#allocation17 + $0x190] sm:$0xff]
    %v358 = vld [vmem:[#allocation17 + $0x198] sm:$0xff]
    %v359 = vld [vmem:[#allocation17 + $0x1a0] sm:$0xff]
    %v360 = vld [vmem:[#allocation17 + $0x1a8] sm:$0xff]
    %v361 = vld [vmem:[#allocation17 + $0x1b0] sm:$0xff]
    %v362 = vld [vmem:[#allocation17 + $0x1b8] sm:$0xff]
    %v363 = vld [vmem:[#allocation17 + $0x1c0] sm:$0xff]
    %v364 = vld [vmem:[#allocation17 + $0x1c8] sm:$0xff]
    %v365 = vld [vmem:[#allocation17 + $0x1d0] sm:$0xff]
    %v366 = vld [vmem:[#allocation17 + $0x1d8] sm:$0xff]
    %v367 = vld [vmem:[#allocation17 + $0x1e0] sm:$0xff]
    %v368 = vld [vmem:[#allocation17 + $0x1e8] sm:$0xff]
    %v369 = vld [vmem:[#allocation17 + $0x1f0] sm:$0xff]
    %v370 = vld [vmem:[#allocation17 + $0x1f8] sm:$0xff]
    %371 = vmatprep.subr.mxu0 %v338
    %372 = vmatpush1.msra.mxu0 %v337
    %373 = vmatprep.subr.mxu0 %v336
    %374 = vmatpush1.msra.mxu0 %v335
    %375 = vmatprep.subr.mxu0 %v334
    %376 = vmatpush1.msra.mxu0 %v333
    %377 = vmatprep.subr.mxu0 %v332
    %378 = vmatpush1.msra.mxu0 %v331
    %379 = vmatprep.subr.mxu0 %v330
    %380 = vmatpush1.msra.mxu0 %v329
    %381 = vmatprep.subr.mxu0 %v328
    %382 = vmatpush1.msra.mxu0 %v327
    %383 = vmatprep.subr.mxu0 %v326
    %384 = vmatpush1.msra.mxu0 %v325
    %385 = vmatprep.subr.mxu0 %v324
    %386 = vmatpush1.msra.mxu0 %v323
    %387 = vmatprep.subr.mxu0 %v322
    %388 = vmatpush1.msra.mxu0 %v321
    %389 = vmatprep.subr.mxu0 %v320
    %390 = vmatpush1.msra.mxu0 %v319
    %391 = vmatprep.subr.mxu0 %v318
    %392 = vmatpush1.msra.mxu0 %v317
    %393 = vmatprep.subr.mxu0 %v316
    %394 = vmatpush1.msra.mxu0 %v315
    %395 = vmatprep.subr.mxu0 %v314
    %396 = vmatpush1.msra.mxu0 %v313
    %397 = vmatprep.subr.mxu0 %v312
    %398 = vmatpush1.msra.mxu0 %v311
    %399 = vmatprep.subr.mxu0 %v310
    %400 = vmatpush1.msra.mxu0 %v309
    %401 = vmatprep.subr.mxu0 %v308
    %402 = vmatpush1.msra.mxu0 %v307
    %403 = vmatprep.subr.mxu0 %v370
    %404 = vmatpush2.msra.mxu0 %v369
    %405 = vmatprep.subr.mxu0 %v368
    %406 = vmatpush2.msra.mxu0 %v367
    %407 = vmatprep.subr.mxu0 %v366
    %408 = vmatpush2.msra.mxu0 %v365
    %409 = vmatprep.subr.mxu0 %v364
    %410 = vmatpush2.msra.mxu0 %v363
    %411 = vmatprep.subr.mxu0 %v362
    %412 = vmatpush2.msra.mxu0 %v361
    %413 = vmatprep.subr.mxu0 %v360
    %414 = vmatpush2.msra.mxu0 %v359
    %415 = vmatprep.subr.mxu0 %v358
    %416 = vmatpush2.msra.mxu0 %v357
    %417 = vmatprep.subr.mxu0 %v356
    %418 = vmatpush2.msra.mxu0 %v355
    %419 = vmatprep.subr.mxu0 %v354
    %420 = vmatpush2.msra.mxu0 %v353
    %421 = vmatprep.subr.mxu0 %v352
    %422 = vmatpush2.msra.mxu0 %v351
    %423 = vmatprep.subr.mxu0 %v350
    %424 = vmatpush2.msra.mxu0 %v349
    %425 = vmatprep.subr.mxu0 %v348
    %426 = vmatpush2.msra.mxu0 %v347
    %427 = vmatprep.subr.mxu0 %v346
    %428 = vmatpush2.msra.mxu0 %v345
    %429 = vmatprep.subr.mxu0 %v344
    %430 = vmatpush2.msra.mxu0 %v343
    %431 = vmatprep.subr.mxu0 %v342
    %432 = vmatpush2.msra.mxu0 %v341
    %433 = vmatprep.subr.mxu0 %v340
    %434 = vmatpush2.msra.mxu0 %v339
    %435 = vmatprep.mubr.f32.mxu0 %v171
    %436 = vmatmul.mubr.f32.gmra.mxu0 %v170
    %v437 = vpop.f32.mrf.mxu0
    %v438 = vadd.f32 0.0, %v437
    %v439 = vpop.f32.mrf.mxu0
    %v440 = vadd.f32 0.0, %v439
    %441 = vdwg.mxu0
    %v442 = vsub.f32 0.0, %v438
    %v443 = vsub.f32 0.0, %v440
    %v444 = vmul.f32 %v303, %v303
    %v445 = vmul.f32 %v305, %v305
    %v446 = vmul.f32 %v442, %v442
    %v447 = vmul.f32 %v443, %v443
    %v448 = vadd.f32 %v444, %v446
    %v449 = vadd.f32 %v445, %v447
    %v450 = vrsqrt.pop %v448
    %v451 = vmul.f32 %v448, %v450
    %vm452 = vcmp.eq.f32.partialorder %v448, inf
    %v453 = vsel %vm452, %v448, %v451
    %vm454 = vcmp.eq.f32.partialorder %v448, 0.0
    %v455 = vand.u32 %v448, 2147483648
    %v456 = vsel %vm454, %v455, %v453
    %v457 = vrsqrt.pop %v449
    %v458 = vmul.f32 %v449, %v457
    %vm459 = vcmp.eq.f32.partialorder %v449, inf
    %v460 = vsel %vm459, %v449, %v458
    %vm461 = vcmp.eq.f32.partialorder %v449, 0.0
    %v462 = vand.u32 %v449, 2147483648
    %v463 = vsel %vm461, %v462, %v460
    %v464 = vadd.f32 %v456, %v463
    %465 = vadd.xlane.f32.xlu0 %v464
    %v466 = vpop.xlane.xlu0 %465
    %v467 = vrcp.pop 256.0
    %v468 = vmul.f32 %v466, %v467
    %vm469 = vcmp.gt.f32.partialorder %v456, %v468
    %vm470 = vcmp.gt.f32.partialorder %v463, %v468
    %s471 = sadd.f32 %s169, 1.0
    %v472 = vmul.f32 %v468, 0.5
    %vm473 = vcmp.le.f32.partialorder %v456, %v472
    %vm474 = vcmp.le.f32.partialorder %v463, %v472
    %s475 = sadd.f32 %s168, 1.0
    %v476 = vstv %s475
    %v477 = vsel %vm473, %v476, 1.0
    %v478 = vsel %vm474, %v476, 1.0
    %v479 = vstv %s471
    %v480 = vsel %vm469, %v479, %v477
    %v481 = vsel %vm470, %v479, %v478
    %v482 = vmul.f32 %v303, %v480
    %v483 = vmul.f32 %v305, %v481
    %v484 = vmul.f32 %v442, %v480
    %v485 = vmul.f32 %v443, %v481
    %s486 = sld [smem:[#allocation7]]
    %v487 = vstv %s486
    %v488 = vmul.f32 %v487, %v482
    %v489 = vmul.f32 %v487, %v483
    %s490 = sld [smem:[#allocation7 + $0x1]]
    %v491 = vstv %s490
    %v492 = vmul.f32 %v491, %v482
    %v493 = vmul.f32 %v491, %v483
    %v496 = vrot.slane %v492, 2
    %v497 = vrot.slane %v493, 2
    %v500 = vadd.f32 %v488, %v496
    %v501 = vadd.f32 %v489, %v497
    %s502 = sld [smem:[#allocation7 + $0x2]]
    %v503 = vstv %s502
    %v504 = vmul.f32 %v503, %v482
    %v505 = vmul.f32 %v503, %v483
    %v508 = vrot.slane %v504, 4
    %v509 = vrot.slane %v505, 4
    %v512 = vadd.f32 %v500, %v508
    %v513 = vadd.f32 %v501, %v509
    %s514 = sld [smem:[#allocation7 + $0x3]]
    %v515 = vstv %s514
    %v516 = vmul.f32 %v515, %v482
    %v517 = vmul.f32 %v515, %v483
    %v520 = vrot.slane %v516, 6
    %v521 = vrot.slane %v517, 6
    %v524 = vadd.f32 %v512, %v520
    %v525 = vadd.f32 %v513, %v521
    %s526 = sld [smem:[#allocation7 + $0x4]]
    %v527 = vstv %s526
    %v528 = vmul.f32 %v527, %v484
    %v529 = vmul.f32 %v527, %v485
    %v530 = vadd.f32 %v524, %v528
    %v531 = vadd.f32 %v525, %v529
    %s532 = sld [smem:[#allocation7 + $0x5]]
    %v533 = vstv %s532
    %v534 = vmul.f32 %v533, %v484
    %v535 = vmul.f32 %v533, %v485
    %v538 = vrot.slane %v534, 2
    %v539 = vrot.slane %v535, 2
    %v542 = vadd.f32 %v530, %v538
    %v543 = vadd.f32 %v531, %v539
    %s544 = sld [smem:[#allocation7 + $0x6]]
    %v545 = vstv %s544
    %v546 = vmul.f32 %v545, %v484
    %v547 = vmul.f32 %v545, %v485
    %v550 = vrot.slane %v546, 4
    %v551 = vrot.slane %v547, 4
    %v554 = vadd.f32 %v542, %v550
    %v555 = vadd.f32 %v543, %v551
    %s556 = sld [smem:[#allocation7 + $0x7]]
    %v557 = vstv %s556
    %v558 = vmul.f32 %v557, %v484
    %v559 = vmul.f32 %v557, %v485
    %v562 = vrot.slane %v558, 6
    %v563 = vrot.slane %v559, 6
    %v566 = vadd.f32 %v554, %v562
    %v567 = vadd.f32 %v555, %v563
    %s568 = sld [smem:[#allocation9]]
    %v569 = vstv %s568
    %v570 = vadd.f32 %v566, %v569
    %v571 = vadd.f32 %v567, %v569
    %v572 = vmul.f32 %v570, 0.5
    %v573 = vmul.f32 %v571, 0.5
    %v574 = vmul.f32 %v570, 0.70710677
    %v575 = vmul.f32 %v571, 0.70710677
    %vm576 = vcmp.ge.f32.partialorder %v574, 0.0
    %vm577 = vcmp.ge.f32.partialorder %v575, 0.0
    %v578 = vsel %vm576, 1.0, -1.0
    %v579 = vsel %vm577, 1.0, -1.0
    %v580 = vand.u32 2147483647, %v574
    %v581 = vand.u32 2147483647, %v575
    %v582 = vmul.f32 %v580, 0.3275911
    %v583 = vmul.f32 %v581, 0.3275911
    %v584 = vadd.f32 %v582, 1.0
    %v585 = vadd.f32 %v583, 1.0
    %v586 = vrcp.pop %v584
    %v587 = vmul.f32 1.0, %v586
    %v588 = vrcp.pop %v585
    %v589 = vmul.f32 1.0, %v588
    %v590 = vmul.f32 %v587, 1.0614054
    %v591 = vmul.f32 %v589, 1.0614054
    %v592 = vadd.f32 %v590, -1.4531521
    %v593 = vadd.f32 %v591, -1.4531521
    %v594 = vmul.f32 %v592, %v587
    %v595 = vmul.f32 %v593, %v589
    %v596 = vadd.f32 %v594, 1.4214138
    %v597 = vadd.f32 %v595, 1.4214138
    %v598 = vmul.f32 %v596, %v587
    %v599 = vmul.f32 %v597, %v589
    %v600 = vadd.f32 %v598, -0.28449672
    %v601 = vadd.f32 %v599, -0.28449672
    %v602 = vmul.f32 %v600, %v587
    %v603 = vmul.f32 %v601, %v589
    %v604 = vadd.f32 %v602, 0.2548296
    %v605 = vadd.f32 %v603, 0.2548296
    %v606 = vmul.f32 %v604, %v587
    %v607 = vmul.f32 %v605, %v589
    %v608 = vsub.f32 0.0, %v580
    %v609 = vsub.f32 0.0, %v581
    %v610 = vmul.f32 %v608, %v580
    %v611 = vmul.f32 %v609, %v581
    %v612 = vmul.f32 %v610, 1.442695
    %v613 = vpow.pop %v612
    %v614 = vmul.f32 %v611, 1.442695
    %v615 = vpow.pop %v614
    %v616 = vmul.f32 %v606, %v613
    %v617 = vmul.f32 %v607, %v615
    %v618 = vsub.f32 1.0, %v616
    %v619 = vsub.f32 1.0, %v617
    %v620 = vmul.f32 %v578, %v618
    %v621 = vmul.f32 %v579, %v619
    %v622 = vadd.f32 %v620, 1.0
    %v623 = vadd.f32 %v621, 1.0
    %v624 = vmul.f32 %v572, %v622
    %v625 = vmul.f32 %v573, %v623
    %s626 = sld [smem:[#allocation7 + $0x80]]
    %v627 = vstv %s626
    %v628 = vmul.f32 %v627, %v482
    %v629 = vmul.f32 %v627, %v483
    %s630 = sld [smem:[#allocation7 + $0x81]]
    %v631 = vstv %s630
    %v632 = vmul.f32 %v631, %v482
    %v633 = vmul.f32 %v631, %v483
    %v636 = vrot.slane %v632, 2
    %v637 = vrot.slane %v633, 2
    %v640 = vadd.f32 %v628, %v636
    %v641 = vadd.f32 %v629, %v637
    %s642 = sld [smem:[#allocation7 + $0x82]]
    %v643 = vstv %s642
    %v644 = vmul.f32 %v643, %v482
    %v645 = vmul.f32 %v643, %v483
    %v648 = vrot.slane %v644, 4
    %v649 = vrot.slane %v645, 4
    %v652 = vadd.f32 %v640, %v648
    %v653 = vadd.f32 %v641, %v649
    %s654 = sld [smem:[#allocation7 + $0x83]]
    %v655 = vstv %s654
    %v656 = vmul.f32 %v655, %v482
    %v657 = vmul.f32 %v655, %v483
    %v660 = vrot.slane %v656, 6
    %v661 = vrot.slane %v657, 6
    %v664 = vadd.f32 %v652, %v660
    %v665 = vadd.f32 %v653, %v661
    %s666 = sld [smem:[#allocation7 + $0x84]]
    %v667 = vstv %s666
    %v668 = vmul.f32 %v667, %v484
    %v669 = vmul.f32 %v667, %v485
    %v670 = vadd.f32 %v664, %v668
    %v671 = vadd.f32 %v665, %v669
    %s672 = sld [smem:[#allocation7 + $0x85]]
    %v673 = vstv %s672
    %v674 = vmul.f32 %v673, %v484
    %v675 = vmul.f32 %v673, %v485
    %v678 = vrot.slane %v674, 2
    %v679 = vrot.slane %v675, 2
    %v682 = vadd.f32 %v670, %v678
    %v683 = vadd.f32 %v671, %v679
    %s684 = sld [smem:[#allocation7 + $0x86]]
    %v685 = vstv %s684
    %v686 = vmul.f32 %v685, %v484
    %v687 = vmul.f32 %v685, %v485
    %v690 = vrot.slane %v686, 4
    %v691 = vrot.slane %v687, 4
    %v694 = vadd.f32 %v682, %v690
    %v695 = vadd.f32 %v683, %v691
    %s696 = sld [smem:[#allocation7 + $0x87]]
    %v697 = vstv %s696
    %v698 = vmul.f32 %v697, %v484
    %v699 = vmul.f32 %v697, %v485
    %v702 = vrot.slane %v698, 6
    %v703 = vrot.slane %v699, 6
    %v706 = vadd.f32 %v694, %v702
    %v707 = vadd.f32 %v695, %v703
    %s708 = sld [smem:[#allocation9 + $0x1]]
    %v709 = vstv %s708
    %v710 = vadd.f32 %v706, %v709
    %v711 = vadd.f32 %v707, %v709
    %v712 = vmul.f32 %v710, 0.5
    %v713 = vmul.f32 %v711, 0.5
    %v714 = vmul.f32 %v710, 0.70710677
    %v715 = vmul.f32 %v711, 0.70710677
    %vm716 = vcmp.ge.f32.partialorder %v714, 0.0
    %vm717 = vcmp.ge.f32.partialorder %v715, 0.0
    %v718 = vsel %vm716, 1.0, -1.0
    %v719 = vsel %vm717, 1.0, -1.0
    %v720 = vand.u32 2147483647, %v714
    %v721 = vand.u32 2147483647, %v715
    %v722 = vmul.f32 %v720, 0.3275911
    %v723 = vmul.f32 %v721, 0.3275911
    %v724 = vadd.f32 %v722, 1.0
    %v725 = vadd.f32 %v723, 1.0
    %v726 = vrcp.pop %v724
    %v727 = vmul.f32 1.0, %v726
    %v728 = vrcp.pop %v725
    %v729 = vmul.f32 1.0, %v728
    %v730 = vmul.f32 %v727, 1.0614054
    %v731 = vmul.f32 %v729, 1.0614054
    %v732 = vadd.f32 %v730, -1.4531521
    %v733 = vadd.f32 %v731, -1.4531521
    %v734 = vmul.f32 %v732, %v727
    %v735 = vmul.f32 %v733, %v729
    %v736 = vadd.f32 %v734, 1.4214138
    %v737 = vadd.f32 %v735, 1.4214138
    %v738 = vmul.f32 %v736, %v727
    %v739 = vmul.f32 %v737, %v729
    %v740 = vadd.f32 %v738, -0.28449672
    %v741 = vadd.f32 %v739, -0.28449672
    %v742 = vmul.f32 %v740, %v727
    %v743 = vmul.f32 %v741, %v729
    %v744 = vadd.f32 %v742, 0.2548296
    %v745 = vadd.f32 %v743, 0.2548296
    %v746 = vmul.f32 %v744, %v727
    %v747 = vmul.f32 %v745, %v729
    %v748 = vsub.f32 0.0, %v720
    %v749 = vsub.f32 0.0, %v721
    %v750 = vmul.f32 %v748, %v720
    %v751 = vmul.f32 %v749, %v721
    %v752 = vmul.f32 %v750, 1.442695
    %v753 = vpow.pop %v752
    %v754 = vmul.f32 %v751, 1.442695
    %v755 = vpow.pop %v754
    %v756 = vmul.f32 %v746, %v753
    %v757 = vmul.f32 %v747, %v755
    %v758 = vsub.f32 1.0, %v756
    %v759 = vsub.f32 1.0, %v757
    %v760 = vmul.f32 %v718, %v758
    %v761 = vmul.f32 %v719, %v759
    %v762 = vadd.f32 %v760, 1.0
    %v763 = vadd.f32 %v761, 1.0
    %v764 = vmul.f32 %v712, %v762
    %v765 = vmul.f32 %v713, %v763
    %s766 = sld [smem:[#allocation7 + $0x100]]
    %v767 = vstv %s766
    %v768 = vmul.f32 %v767, %v482
    %v769 = vmul.f32 %v767, %v483
    %s770 = sld [smem:[#allocation7 + $0x101]]
    %v771 = vstv %s770
    %v772 = vmul.f32 %v771, %v482
    %v773 = vmul.f32 %v771, %v483
    %v776 = vrot.slane %v772, 2
    %v777 = vrot.slane %v773, 2
    %v780 = vadd.f32 %v768, %v776
    %v781 = vadd.f32 %v769, %v777
    %s782 = sld [smem:[#allocation7 + $0x102]]
    %v783 = vstv %s782
    %v784 = vmul.f32 %v783, %v482
    %v785 = vmul.f32 %v783, %v483
    %v788 = vrot.slane %v784, 4
    %v789 = vrot.slane %v785, 4
    %v792 = vadd.f32 %v780, %v788
    %v793 = vadd.f32 %v781, %v789
    %s794 = sld [smem:[#allocation7 + $0x103]]
    %v795 = vstv %s794
    %v796 = vmul.f32 %v795, %v482
    %v797 = vmul.f32 %v795, %v483
    %v800 = vrot.slane %v796, 6
    %v801 = vrot.slane %v797, 6
    %v804 = vadd.f32 %v792, %v800
    %v805 = vadd.f32 %v793, %v801
    %s806 = sld [smem:[#allocation7 + $0x104]]
    %v807 = vstv %s806
    %v808 = vmul.f32 %v807, %v484
    %v809 = vmul.f32 %v807, %v485
    %v810 = vadd.f32 %v804, %v808
    %v811 = vadd.f32 %v805, %v809
    %s812 = sld [smem:[#allocation7 + $0x105]]
    %v813 = vstv %s812
    %v814 = vmul.f32 %v813, %v484
    %v815 = vmul.f32 %v813, %v485
    %v818 = vrot.slane %v814, 2
    %v819 = vrot.slane %v815, 2
    %v822 = vadd.f32 %v810, %v818
    %v823 = vadd.f32 %v811, %v819
    %s824 = sld [smem:[#allocation7 + $0x106]]
    %v825 = vstv %s824
    %v826 = vmul.f32 %v825, %v484
    %v827 = vmul.f32 %v825, %v485
    %v830 = vrot.slane %v826, 4
    %v831 = vrot.slane %v827, 4
    %v834 = vadd.f32 %v822, %v830
    %v835 = vadd.f32 %v823, %v831
    %s836 = sld [smem:[#allocation7 + $0x107]]
    %v837 = vstv %s836
    %v838 = vmul.f32 %v837, %v484
    %v839 = vmul.f32 %v837, %v485
    %v842 = vrot.slane %v838, 6
    %v843 = vrot.slane %v839, 6
    %v846 = vadd.f32 %v834, %v842
    %v847 = vadd.f32 %v835, %v843
    %s848 = sld [smem:[#allocation9 + $0x2]]
    %v849 = vstv %s848
    %v850 = vadd.f32 %v846, %v849
    %v851 = vadd.f32 %v847, %v849
    %v852 = vmul.f32 %v850, 0.5
    %v853 = vmul.f32 %v851, 0.5
    %v854 = vmul.f32 %v850, 0.70710677
    %v855 = vmul.f32 %v851, 0.70710677
    %vm856 = vcmp.ge.f32.partialorder %v854, 0.0
    %vm857 = vcmp.ge.f32.partialorder %v855, 0.0
    %v858 = vsel %vm856, 1.0, -1.0
    %v859 = vsel %vm857, 1.0, -1.0
    %v860 = vand.u32 2147483647, %v854
    %v861 = vand.u32 2147483647, %v855
    %v862 = vmul.f32 %v860, 0.3275911
    %v863 = vmul.f32 %v861, 0.3275911
    %v864 = vadd.f32 %v862, 1.0
    %v865 = vadd.f32 %v863, 1.0
    %v866 = vrcp.pop %v864
    %v867 = vmul.f32 1.0, %v866
    %v868 = vrcp.pop %v865
    %v869 = vmul.f32 1.0, %v868
    %v870 = vmul.f32 %v867, 1.0614054
    %v871 = vmul.f32 %v869, 1.0614054
    %v872 = vadd.f32 %v870, -1.4531521
    %v873 = vadd.f32 %v871, -1.4531521
    %v874 = vmul.f32 %v872, %v867
    %v875 = vmul.f32 %v873, %v869
    %v876 = vadd.f32 %v874, 1.4214138
    %v877 = vadd.f32 %v875, 1.4214138
    %v878 = vmul.f32 %v876, %v867
    %v879 = vmul.f32 %v877, %v869
    %v880 = vadd.f32 %v878, -0.28449672
    %v881 = vadd.f32 %v879, -0.28449672
    %v882 = vmul.f32 %v880, %v867
    %v883 = vmul.f32 %v881, %v869
    %v884 = vadd.f32 %v882, 0.2548296
    %v885 = vadd.f32 %v883, 0.2548296
    %v886 = vmul.f32 %v884, %v867
    %v887 = vmul.f32 %v885, %v869
    %v888 = vsub.f32 0.0, %v860
    %v889 = vsub.f32 0.0, %v861
    %v890 = vmul.f32 %v888, %v860
    %v891 = vmul.f32 %v889, %v861
    %v892 = vmul.f32 %v890, 1.442695
    %v893 = vpow.pop %v892
    %v894 = vmul.f32 %v891, 1.442695
    %v895 = vpow.pop %v894
    %v896 = vmul.f32 %v886, %v893
    %v897 = vmul.f32 %v887, %v895
    %v898 = vsub.f32 1.0, %v896
    %v899 = vsub.f32 1.0, %v897
    %v900 = vmul.f32 %v858, %v898
    %v901 = vmul.f32 %v859, %v899
    %v902 = vadd.f32 %v900, 1.0
    %v903 = vadd.f32 %v901, 1.0
    %v904 = vmul.f32 %v852, %v902
    %v905 = vmul.f32 %v853, %v903
    %s906 = sld [smem:[#allocation7 + $0x180]]
    %v907 = vstv %s906
    %v908 = vmul.f32 %v907, %v482
    %v909 = vmul.f32 %v907, %v483
    %s910 = sld [smem:[#allocation7 + $0x181]]
    %v911 = vstv %s910
    %v912 = vmul.f32 %v911, %v482
    %v913 = vmul.f32 %v911, %v483
    %v916 = vrot.slane %v912, 2
    %v917 = vrot.slane %v913, 2
    %v920 = vadd.f32 %v908, %v916
    %v921 = vadd.f32 %v909, %v917
    %s922 = sld [smem:[#allocation7 + $0x182]]
    %v923 = vstv %s922
    %v924 = vmul.f32 %v923, %v482
    %v925 = vmul.f32 %v923, %v483
    %v928 = vrot.slane %v924, 4
    %v929 = vrot.slane %v925, 4
    %v932 = vadd.f32 %v920, %v928
    %v933 = vadd.f32 %v921, %v929
    %s934 = sld [smem:[#allocation7 + $0x183]]
    %v935 = vstv %s934
    %v936 = vmul.f32 %v935, %v482
    %v937 = vmul.f32 %v935, %v483
    %v940 = vrot.slane %v936, 6
    %v941 = vrot.slane %v937, 6
    %v944 = vadd.f32 %v932, %v940
    %v945 = vadd.f32 %v933, %v941
    %s946 = sld [smem:[#allocation7 + $0x184]]
    %v947 = vstv %s946
    %v948 = vmul.f32 %v947, %v484
    %v949 = vmul.f32 %v947, %v485
    %v950 = vadd.f32 %v944, %v948
    %v951 = vadd.f32 %v945, %v949
    %s952 = sld [smem:[#allocation7 + $0x185]]
    %v953 = vstv %s952
    %v954 = vmul.f32 %v953, %v484
    %v955 = vmul.f32 %v953, %v485
    %v958 = vrot.slane %v954, 2
    %v959 = vrot.slane %v955, 2
    %v962 = vadd.f32 %v950, %v958
    %v963 = vadd.f32 %v951, %v959
    %s964 = sld [smem:[#allocation7 + $0x186]]
    %v965 = vstv %s964
    %v966 = vmul.f32 %v965, %v484
    %v967 = vmul.f32 %v965, %v485
    %v970 = vrot.slane %v966, 4
    %v971 = vrot.slane %v967, 4
    %v974 = vadd.f32 %v962, %v970
    %v975 = vadd.f32 %v963, %v971
    %s976 = sld [smem:[#allocation7 + $0x187]]
    %v977 = vstv %s976
    %v978 = vmul.f32 %v977, %v484
    %v979 = vmul.f32 %v977, %v485
    %v982 = vrot.slane %v978, 6
    %v983 = vrot.slane %v979, 6
    %v986 = vadd.f32 %v974, %v982
    %v987 = vadd.f32 %v975, %v983
    %s988 = sld [smem:[#allocation9 + $0x3]]
    %v989 = vstv %s988
    %v990 = vadd.f32 %v986, %v989
    %v991 = vadd.f32 %v987, %v989
    %v992 = vmul.f32 %v990, 0.5
    %v993 = vmul.f32 %v991, 0.5
    %v994 = vmul.f32 %v990, 0.70710677
    %v995 = vmul.f32 %v991, 0.70710677
    %vm996 = vcmp.ge.f32.partialorder %v994, 0.0
    %vm997 = vcmp.ge.f32.partialorder %v995, 0.0
    %v998 = vsel %vm996, 1.0, -1.0
    %v999 = vsel %vm997, 1.0, -1.0
    %v1000 = vand.u32 2147483647, %v994
    %v1001 = vand.u32 2147483647, %v995
    %v1002 = vmul.f32 %v1000, 0.3275911
    %v1003 = vmul.f32 %v1001, 0.3275911
    %v1004 = vadd.f32 %v1002, 1.0
    %v1005 = vadd.f32 %v1003, 1.0
    %v1006 = vrcp.pop %v1004
    %v1007 = vmul.f32 1.0, %v1006
    %v1008 = vrcp.pop %v1005
    %v1009 = vmul.f32 1.0, %v1008
    %v1010 = vmul.f32 %v1007, 1.0614054
    %v1011 = vmul.f32 %v1009, 1.0614054
    %v1012 = vadd.f32 %v1010, -1.4531521
    %v1013 = vadd.f32 %v1011, -1.4531521
    %v1014 = vmul.f32 %v1012, %v1007
    %v1015 = vmul.f32 %v1013, %v1009
    %v1016 = vadd.f32 %v1014, 1.4214138
    %v1017 = vadd.f32 %v1015, 1.4214138
    %v1018 = vmul.f32 %v1016, %v1007
    %v1019 = vmul.f32 %v1017, %v1009
    %v1020 = vadd.f32 %v1018, -0.28449672
    %v1021 = vadd.f32 %v1019, -0.28449672
    %v1022 = vmul.f32 %v1020, %v1007
    %v1023 = vmul.f32 %v1021, %v1009
    %v1024 = vadd.f32 %v1022, 0.2548296
    %v1025 = vadd.f32 %v1023, 0.2548296
    %v1026 = vmul.f32 %v1024, %v1007
    %v1027 = vmul.f32 %v1025, %v1009
    %v1028 = vsub.f32 0.0, %v1000
    %v1029 = vsub.f32 0.0, %v1001
    %v1030 = vmul.f32 %v1028, %v1000
    %v1031 = vmul.f32 %v1029, %v1001
    %v1032 = vmul.f32 %v1030, 1.442695
    %v1033 = vpow.pop %v1032
    %v1034 = vmul.f32 %v1031, 1.442695
    %v1035 = vpow.pop %v1034
    %v1036 = vmul.f32 %v1026, %v1033
    %v1037 = vmul.f32 %v1027, %v1035
    %v1038 = vsub.f32 1.0, %v1036
    %v1039 = vsub.f32 1.0, %v1037
    %v1040 = vmul.f32 %v998, %v1038
    %v1041 = vmul.f32 %v999, %v1039
    %v1042 = vadd.f32 %v1040, 1.0
    %v1043 = vadd.f32 %v1041, 1.0
    %v1044 = vmul.f32 %v992, %v1042
    %v1045 = vmul.f32 %v993, %v1043
    %s1046 = sld [smem:[#allocation7 + $0x200]]
    %v1047 = vstv %s1046
    %v1048 = vmul.f32 %v1047, %v482
    %v1049 = vmul.f32 %v1047, %v483
    %s1050 = sld [smem:[#allocation7 + $0x201]]
    %v1051 = vstv %s1050
    %v1052 = vmul.f32 %v1051, %v482
    %v1053 = vmul.f32 %v1051, %v483
    %v1056 = vrot.slane %v1052, 2
    %v1057 = vrot.slane %v1053, 2
    %v1060 = vadd.f32 %v1048, %v1056
    %v1061 = vadd.f32 %v1049, %v1057
    %s1062 = sld [smem:[#allocation7 + $0x202]]
    %v1063 = vstv %s1062
    %v1064 = vmul.f32 %v1063, %v482
    %v1065 = vmul.f32 %v1063, %v483
    %v1068 = vrot.slane %v1064, 4
    %v1069 = vrot.slane %v1065, 4
    %v1072 = vadd.f32 %v1060, %v1068
    %v1073 = vadd.f32 %v1061, %v1069
    %s1074 = sld [smem:[#allocation7 + $0x203]]
    %v1075 = vstv %s1074
    %v1076 = vmul.f32 %v1075, %v482
    %v1077 = vmul.f32 %v1075, %v483
    %v1080 = vrot.slane %v1076, 6
    %v1081 = vrot.slane %v1077, 6
    %v1084 = vadd.f32 %v1072, %v1080
    %v1085 = vadd.f32 %v1073, %v1081
    %s1086 = sld [smem:[#allocation7 + $0x204]]
    %v1087 = vstv %s1086
    %v1088 = vmul.f32 %v1087, %v484
    %v1089 = vmul.f32 %v1087, %v485
    %v1090 = vadd.f32 %v1084, %v1088
    %v1091 = vadd.f32 %v1085, %v1089
    %s1092 = sld [smem:[#allocation7 + $0x205]]
    %v1093 = vstv %s1092
    %v1094 = vmul.f32 %v1093, %v484
    %v1095 = vmul.f32 %v1093, %v485
    %v1098 = vrot.slane %v1094, 2
    %v1099 = vrot.slane %v1095, 2
    %v1102 = vadd.f32 %v1090, %v1098
    %v1103 = vadd.f32 %v1091, %v1099
    %s1104 = sld [smem:[#allocation7 + $0x206]]
    %v1105 = vstv %s1104
    %v1106 = vmul.f32 %v1105, %v484
    %v1107 = vmul.f32 %v1105, %v485
    %v1110 = vrot.slane %v1106, 4
    %v1111 = vrot.slane %v1107, 4
    %v1114 = vadd.f32 %v1102, %v1110
    %v1115 = vadd.f32 %v1103, %v1111
    %s1116 = sld [smem:[#allocation7 + $0x207]]
    %v1117 = vstv %s1116
    %v1118 = vmul.f32 %v1117, %v484
    %v1119 = vmul.f32 %v1117, %v485
    %v1122 = vrot.slane %v1118, 6
    %v1123 = vrot.slane %v1119, 6
    %v1126 = vadd.f32 %v1114, %v1122
    %v1127 = vadd.f32 %v1115, %v1123
    %s1128 = sld [smem:[#allocation9 + $0x4]]
    %v1129 = vstv %s1128
    %v1130 = vadd.f32 %v1126, %v1129
    %v1131 = vadd.f32 %v1127, %v1129
    %v1132 = vmul.f32 %v1130, 0.5
    %v1133 = vmul.f32 %v1131, 0.5
    %v1134 = vmul.f32 %v1130, 0.70710677
    %v1135 = vmul.f32 %v1131, 0.70710677
    %vm1136 = vcmp.ge.f32.partialorder %v1134, 0.0
    %vm1137 = vcmp.ge.f32.partialorder %v1135, 0.0
    %v1138 = vsel %vm1136, 1.0, -1.0
    %v1139 = vsel %vm1137, 1.0, -1.0
    %v1140 = vand.u32 2147483647, %v1134
    %v1141 = vand.u32 2147483647, %v1135
    %v1142 = vmul.f32 %v1140, 0.3275911
    %v1143 = vmul.f32 %v1141, 0.3275911
    %v1144 = vadd.f32 %v1142, 1.0
    %v1145 = vadd.f32 %v1143, 1.0
    %v1146 = vrcp.pop %v1144
    %v1147 = vmul.f32 1.0, %v1146
    %v1148 = vrcp.pop %v1145
    %v1149 = vmul.f32 1.0, %v1148
    %v1150 = vmul.f32 %v1147, 1.0614054
    %v1151 = vmul.f32 %v1149, 1.0614054
    %v1152 = vadd.f32 %v1150, -1.4531521
    %v1153 = vadd.f32 %v1151, -1.4531521
    %v1154 = vmul.f32 %v1152, %v1147
    %v1155 = vmul.f32 %v1153, %v1149
    %v1156 = vadd.f32 %v1154, 1.4214138
    %v1157 = vadd.f32 %v1155, 1.4214138
    %v1158 = vmul.f32 %v1156, %v1147
    %v1159 = vmul.f32 %v1157, %v1149
    %v1160 = vadd.f32 %v1158, -0.28449672
    %v1161 = vadd.f32 %v1159, -0.28449672
    %v1162 = vmul.f32 %v1160, %v1147
    %v1163 = vmul.f32 %v1161, %v1149
    %v1164 = vadd.f32 %v1162, 0.2548296
    %v1165 = vadd.f32 %v1163, 0.2548296
    %v1166 = vmul.f32 %v1164, %v1147
    %v1167 = vmul.f32 %v1165, %v1149
    %v1168 = vsub.f32 0.0, %v1140
    %v1169 = vsub.f32 0.0, %v1141
    %v1170 = vmul.f32 %v1168, %v1140
    %v1171 = vmul.f32 %v1169, %v1141
    %v1172 = vmul.f32 %v1170, 1.442695
    %v1173 = vpow.pop %v1172
    %v1174 = vmul.f32 %v1171, 1.442695
    %v1175 = vpow.pop %v1174
    %v1176 = vmul.f32 %v1166, %v1173
    %v1177 = vmul.f32 %v1167, %v1175
    %v1178 = vsub.f32 1.0, %v1176
    %v1179 = vsub.f32 1.0, %v1177
    %v1180 = vmul.f32 %v1138, %v1178
    %v1181 = vmul.f32 %v1139, %v1179
    %v1182 = vadd.f32 %v1180, 1.0
    %v1183 = vadd.f32 %v1181, 1.0
    %v1184 = vmul.f32 %v1132, %v1182
    %v1185 = vmul.f32 %v1133, %v1183
    %s1186 = sld [smem:[#allocation7 + $0x280]]
    %v1187 = vstv %s1186
    %v1188 = vmul.f32 %v1187, %v482
    %v1189 = vmul.f32 %v1187, %v483
    %s1190 = sld [smem:[#allocation7 + $0x281]]
    %v1191 = vstv %s1190
    %v1192 = vmul.f32 %v1191, %v482
    %v1193 = vmul.f32 %v1191, %v483
    %v1196 = vrot.slane %v1192, 2
    %v1197 = vrot.slane %v1193, 2
    %v1200 = vadd.f32 %v1188, %v1196
    %v1201 = vadd.f32 %v1189, %v1197
    %s1202 = sld [smem:[#allocation7 + $0x282]]
    %v1203 = vstv %s1202
    %v1204 = vmul.f32 %v1203, %v482
    %v1205 = vmul.f32 %v1203, %v483
    %v1208 = vrot.slane %v1204, 4
    %v1209 = vrot.slane %v1205, 4
    %v1212 = vadd.f32 %v1200, %v1208
    %v1213 = vadd.f32 %v1201, %v1209
    %s1214 = sld [smem:[#allocation7 + $0x283]]
    %v1215 = vstv %s1214
    %v1216 = vmul.f32 %v1215, %v482
    %v1217 = vmul.f32 %v1215, %v483
    %v1220 = vrot.slane %v1216, 6
    %v1221 = vrot.slane %v1217, 6
    %v1224 = vadd.f32 %v1212, %v1220
    %v1225 = vadd.f32 %v1213, %v1221
    %s1226 = sld [smem:[#allocation7 + $0x284]]
    %v1227 = vstv %s1226
    %v1228 = vmul.f32 %v1227, %v484
    %v1229 = vmul.f32 %v1227, %v485
    %v1230 = vadd.f32 %v1224, %v1228
    %v1231 = vadd.f32 %v1225, %v1229
    %s1232 = sld [smem:[#allocation7 + $0x285]]
    %v1233 = vstv %s1232
    %v1234 = vmul.f32 %v1233, %v484
    %v1235 = vmul.f32 %v1233, %v485
    %v1238 = vrot.slane %v1234, 2
    %v1239 = vrot.slane %v1235, 2
    %v1242 = vadd.f32 %v1230, %v1238
    %v1243 = vadd.f32 %v1231, %v1239
    %s1244 = sld [smem:[#allocation7 + $0x286]]
    %v1245 = vstv %s1244
    %v1246 = vmul.f32 %v1245, %v484
    %v1247 = vmul.f32 %v1245, %v485
    %v1250 = vrot.slane %v1246, 4
    %v1251 = vrot.slane %v1247, 4
    %v1254 = vadd.f32 %v1242, %v1250
    %v1255 = vadd.f32 %v1243, %v1251
    %s1256 = sld [smem:[#allocation7 + $0x287]]
    %v1257 = vstv %s1256
    %v1258 = vmul.f32 %v1257, %v484
    %v1259 = vmul.f32 %v1257, %v485
    %v1262 = vrot.slane %v1258, 6
    %v1263 = vrot.slane %v1259, 6
    %v1266 = vadd.f32 %v1254, %v1262
    %v1267 = vadd.f32 %v1255, %v1263
    %s1268 = sld [smem:[#allocation9 + $0x5]]
    %v1269 = vstv %s1268
    %v1270 = vadd.f32 %v1266, %v1269
    %v1271 = vadd.f32 %v1267, %v1269
    %v1272 = vmul.f32 %v1270, 0.5
    %v1273 = vmul.f32 %v1271, 0.5
    %v1274 = vmul.f32 %v1270, 0.70710677
    %v1275 = vmul.f32 %v1271, 0.70710677
    %vm1276 = vcmp.ge.f32.partialorder %v1274, 0.0
    %vm1277 = vcmp.ge.f32.partialorder %v1275, 0.0
    %v1278 = vsel %vm1276, 1.0, -1.0
    %v1279 = vsel %vm1277, 1.0, -1.0
    %v1280 = vand.u32 2147483647, %v1274
    %v1281 = vand.u32 2147483647, %v1275
    %v1282 = vmul.f32 %v1280, 0.3275911
    %v1283 = vmul.f32 %v1281, 0.3275911
    %v1284 = vadd.f32 %v1282, 1.0
    %v1285 = vadd.f32 %v1283, 1.0
    %v1286 = vrcp.pop %v1284
    %v1287 = vmul.f32 1.0, %v1286
    %v1288 = vrcp.pop %v1285
    %v1289 = vmul.f32 1.0, %v1288
    %v1290 = vmul.f32 %v1287, 1.0614054
    %v1291 = vmul.f32 %v1289, 1.0614054
    %v1292 = vadd.f32 %v1290, -1.4531521
    %v1293 = vadd.f32 %v1291, -1.4531521
    %v1294 = vmul.f32 %v1292, %v1287
    %v1295 = vmul.f32 %v1293, %v1289
    %v1296 = vadd.f32 %v1294, 1.4214138
    %v1297 = vadd.f32 %v1295, 1.4214138
    %v1298 = vmul.f32 %v1296, %v1287
    %v1299 = vmul.f32 %v1297, %v1289
    %v1300 = vadd.f32 %v1298, -0.28449672
    %v1301 = vadd.f32 %v1299, -0.28449672
    %v1302 = vmul.f32 %v1300, %v1287
    %v1303 = vmul.f32 %v1301, %v1289
    %v1304 = vadd.f32 %v1302, 0.2548296
    %v1305 = vadd.f32 %v1303, 0.2548296
    %v1306 = vmul.f32 %v1304, %v1287
    %v1307 = vmul.f32 %v1305, %v1289
    %v1308 = vsub.f32 0.0, %v1280
    %v1309 = vsub.f32 0.0, %v1281
    %v1310 = vmul.f32 %v1308, %v1280
    %v1311 = vmul.f32 %v1309, %v1281
    %v1312 = vmul.f32 %v1310, 1.442695
    %v1313 = vpow.pop %v1312
    %v1314 = vmul.f32 %v1311, 1.442695
    %v1315 = vpow.pop %v1314
    %v1316 = vmul.f32 %v1306, %v1313
    %v1317 = vmul.f32 %v1307, %v1315
    %v1318 = vsub.f32 1.0, %v1316
    %v1319 = vsub.f32 1.0, %v1317
    %v1320 = vmul.f32 %v1278, %v1318
    %v1321 = vmul.f32 %v1279, %v1319
    %v1322 = vadd.f32 %v1320, 1.0
    %v1323 = vadd.f32 %v1321, 1.0
    %v1324 = vmul.f32 %v1272, %v1322
    %v1325 = vmul.f32 %v1273, %v1323
    %s1326 = sld [smem:[#allocation7 + $0x300]]
    %v1327 = vstv %s1326
    %v1328 = vmul.f32 %v1327, %v482
    %v1329 = vmul.f32 %v1327, %v483
    %s1330 = sld [smem:[#allocation7 + $0x301]]
    %v1331 = vstv %s1330
    %v1332 = vmul.f32 %v1331, %v482
    %v1333 = vmul.f32 %v1331, %v483
    %v1336 = vrot.slane %v1332, 2
    %v1337 = vrot.slane %v1333, 2
    %v1340 = vadd.f32 %v1328, %v1336
    %v1341 = vadd.f32 %v1329, %v1337
    %s1342 = sld [smem:[#allocation7 + $0x302]]
    %v1343 = vstv %s1342
    %v1344 = vmul.f32 %v1343, %v482
    %v1345 = vmul.f32 %v1343, %v483
    %v1348 = vrot.slane %v1344, 4
    %v1349 = vrot.slane %v1345, 4
    %v1352 = vadd.f32 %v1340, %v1348
    %v1353 = vadd.f32 %v1341, %v1349
    %s1354 = sld [smem:[#allocation7 + $0x303]]
    %v1355 = vstv %s1354
    %v1356 = vmul.f32 %v1355, %v482
    %v1357 = vmul.f32 %v1355, %v483
    %v1360 = vrot.slane %v1356, 6
    %v1361 = vrot.slane %v1357, 6
    %v1364 = vadd.f32 %v1352, %v1360
    %v1365 = vadd.f32 %v1353, %v1361
    %s1366 = sld [smem:[#allocation7 + $0x304]]
    %v1367 = vstv %s1366
    %v1368 = vmul.f32 %v1367, %v484
    %v1369 = vmul.f32 %v1367, %v485
    %v1370 = vadd.f32 %v1364, %v1368
    %v1371 = vadd.f32 %v1365, %v1369
    %s1372 = sld [smem:[#allocation7 + $0x305]]
    %v1373 = vstv %s1372
    %v1374 = vmul.f32 %v1373, %v484
    %v1375 = vmul.f32 %v1373, %v485
    %v1378 = vrot.slane %v1374, 2
    %v1379 = vrot.slane %v1375, 2
    %v1382 = vadd.f32 %v1370, %v1378
    %v1383 = vadd.f32 %v1371, %v1379
    %s1384 = sld [smem:[#allocation7 + $0x306]]
    %v1385 = vstv %s1384
    %v1386 = vmul.f32 %v1385, %v484
    %v1387 = vmul.f32 %v1385, %v485
    %v1390 = vrot.slane %v1386, 4
    %v1391 = vrot.slane %v1387, 4
    %v1394 = vadd.f32 %v1382, %v1390
    %v1395 = vadd.f32 %v1383, %v1391
    %s1396 = sld [smem:[#allocation7 + $0x307]]
    %v1397 = vstv %s1396
    %v1398 = vmul.f32 %v1397, %v484
    %v1399 = vmul.f32 %v1397, %v485
    %v1402 = vrot.slane %v1398, 6
    %v1403 = vrot.slane %v1399, 6
    %v1406 = vadd.f32 %v1394, %v1402
    %v1407 = vadd.f32 %v1395, %v1403
    %s1408 = sld [smem:[#allocation9 + $0x6]]
    %v1409 = vstv %s1408
    %v1410 = vadd.f32 %v1406, %v1409
    %v1411 = vadd.f32 %v1407, %v1409
    %v1412 = vmul.f32 %v1410, 0.5
    %v1413 = vmul.f32 %v1411, 0.5
    %v1414 = vmul.f32 %v1410, 0.70710677
    %v1415 = vmul.f32 %v1411, 0.70710677
    %vm1416 = vcmp.ge.f32.partialorder %v1414, 0.0
    %vm1417 = vcmp.ge.f32.partialorder %v1415, 0.0
    %v1418 = vsel %vm1416, 1.0, -1.0
    %v1419 = vsel %vm1417, 1.0, -1.0
    %v1420 = vand.u32 2147483647, %v1414
    %v1421 = vand.u32 2147483647, %v1415
    %v1422 = vmul.f32 %v1420, 0.3275911
    %v1423 = vmul.f32 %v1421, 0.3275911
    %v1424 = vadd.f32 %v1422, 1.0
    %v1425 = vadd.f32 %v1423, 1.0
    %v1426 = vrcp.pop %v1424
    %v1427 = vmul.f32 1.0, %v1426
    %v1428 = vrcp.pop %v1425
    %v1429 = vmul.f32 1.0, %v1428
    %v1430 = vmul.f32 %v1427, 1.0614054
    %v1431 = vmul.f32 %v1429, 1.0614054
    %v1432 = vadd.f32 %v1430, -1.4531521
    %v1433 = vadd.f32 %v1431, -1.4531521
    %v1434 = vmul.f32 %v1432, %v1427
    %v1435 = vmul.f32 %v1433, %v1429
    %v1436 = vadd.f32 %v1434, 1.4214138
    %v1437 = vadd.f32 %v1435, 1.4214138
    %v1438 = vmul.f32 %v1436, %v1427
    %v1439 = vmul.f32 %v1437, %v1429
    %v1440 = vadd.f32 %v1438, -0.28449672
    %v1441 = vadd.f32 %v1439, -0.28449672
    %v1442 = vmul.f32 %v1440, %v1427
    %v1443 = vmul.f32 %v1441, %v1429
    %v1444 = vadd.f32 %v1442, 0.2548296
    %v1445 = vadd.f32 %v1443, 0.2548296
    %v1446 = vmul.f32 %v1444, %v1427
    %v1447 = vmul.f32 %v1445, %v1429
    %v1448 = vsub.f32 0.0, %v1420
    %v1449 = vsub.f32 0.0, %v1421
    %v1450 = vmul.f32 %v1448, %v1420
    %v1451 = vmul.f32 %v1449, %v1421
    %v1452 = vmul.f32 %v1450, 1.442695
    %v1453 = vpow.pop %v1452
    %v1454 = vmul.f32 %v1451, 1.442695
    %v1455 = vpow.pop %v1454
    %v1456 = vmul.f32 %v1446, %v1453
    %v1457 = vmul.f32 %v1447, %v1455
    %v1458 = vsub.f32 1.0, %v1456
    %v1459 = vsub.f32 1.0, %v1457
    %v1460 = vmul.f32 %v1418, %v1458
    %v1461 = vmul.f32 %v1419, %v1459
    %v1462 = vadd.f32 %v1460, 1.0
    %v1463 = vadd.f32 %v1461, 1.0
    %v1464 = vmul.f32 %v1412, %v1462
    %v1465 = vmul.f32 %v1413, %v1463
    %s1466 = sld [smem:[#allocation7 + $0x380]]
    %v1467 = vstv %s1466
    %v1468 = vmul.f32 %v1467, %v482
    %v1469 = vmul.f32 %v1467, %v483
    %s1470 = sld [smem:[#allocation7 + $0x381]]
    %v1471 = vstv %s1470
    %v1472 = vmul.f32 %v1471, %v482
    %v1473 = vmul.f32 %v1471, %v483
    %v1476 = vrot.slane %v1472, 2
    %v1477 = vrot.slane %v1473, 2
    %v1480 = vadd.f32 %v1468, %v1476
    %v1481 = vadd.f32 %v1469, %v1477
    %s1482 = sld [smem:[#allocation7 + $0x382]]
    %v1483 = vstv %s1482
    %v1484 = vmul.f32 %v1483, %v482
    %v1485 = vmul.f32 %v1483, %v483
    %v1488 = vrot.slane %v1484, 4
    %v1489 = vrot.slane %v1485, 4
    %v1492 = vadd.f32 %v1480, %v1488
    %v1493 = vadd.f32 %v1481, %v1489
    %s1494 = sld [smem:[#allocation7 + $0x383]]
    %v1495 = vstv %s1494
    %v1496 = vmul.f32 %v1495, %v482
    %v1497 = vmul.f32 %v1495, %v483
    %v1500 = vrot.slane %v1496, 6
    %v1501 = vrot.slane %v1497, 6
    %v1504 = vadd.f32 %v1492, %v1500
    %v1505 = vadd.f32 %v1493, %v1501
    %s1506 = sld [smem:[#allocation7 + $0x384]]
    %v1507 = vstv %s1506
    %v1508 = vmul.f32 %v1507, %v484
    %v1509 = vmul.f32 %v1507, %v485
    %v1510 = vadd.f32 %v1504, %v1508
    %v1511 = vadd.f32 %v1505, %v1509
    %s1512 = sld [smem:[#allocation7 + $0x385]]
    %v1513 = vstv %s1512
    %v1514 = vmul.f32 %v1513, %v484
    %v1515 = vmul.f32 %v1513, %v485
    %v1518 = vrot.slane %v1514, 2
    %v1519 = vrot.slane %v1515, 2
    %v1522 = vadd.f32 %v1510, %v1518
    %v1523 = vadd.f32 %v1511, %v1519
    %s1524 = sld [smem:[#allocation7 + $0x386]]
    %v1525 = vstv %s1524
    %v1526 = vmul.f32 %v1525, %v484
    %v1527 = vmul.f32 %v1525, %v485
    %v1530 = vrot.slane %v1526, 4
    %v1531 = vrot.slane %v1527, 4
    %v1534 = vadd.f32 %v1522, %v1530
    %v1535 = vadd.f32 %v1523, %v1531
    %s1536 = sld [smem:[#allocation7 + $0x387]]
    %v1537 = vstv %s1536
    %v1538 = vmul.f32 %v1537, %v484
    %v1539 = vmul.f32 %v1537, %v485
    %v1542 = vrot.slane %v1538, 6
    %v1543 = vrot.slane %v1539, 6
    %v1546 = vadd.f32 %v1534, %v1542
    %v1547 = vadd.f32 %v1535, %v1543
    %s1548 = sld [smem:[#allocation9 + $0x7]]
    %v1549 = vstv %s1548
    %v1550 = vadd.f32 %v1546, %v1549
    %v1551 = vadd.f32 %v1547, %v1549
    %v1552 = vmul.f32 %v1550, 0.5
    %v1553 = vmul.f32 %v1551, 0.5
    %v1554 = vmul.f32 %v1550, 0.70710677
    %v1555 = vmul.f32 %v1551, 0.70710677
    %vm1556 = vcmp.ge.f32.partialorder %v1554, 0.0
    %vm1557 = vcmp.ge.f32.partialorder %v1555, 0.0
    %v1558 = vsel %vm1556, 1.0, -1.0
    %v1559 = vsel %vm1557, 1.0, -1.0
    %v1560 = vand.u32 2147483647, %v1554
    %v1561 = vand.u32 2147483647, %v1555
    %v1562 = vmul.f32 %v1560, 0.3275911
    %v1563 = vmul.f32 %v1561, 0.3275911
    %v1564 = vadd.f32 %v1562, 1.0
    %v1565 = vadd.f32 %v1563, 1.0
    %v1566 = vrcp.pop %v1564
    %v1567 = vmul.f32 1.0, %v1566
    %v1568 = vrcp.pop %v1565
    %v1569 = vmul.f32 1.0, %v1568
    %v1570 = vmul.f32 %v1567, 1.0614054
    %v1571 = vmul.f32 %v1569, 1.0614054
    %v1572 = vadd.f32 %v1570, -1.4531521
    %v1573 = vadd.f32 %v1571, -1.4531521
    %v1574 = vmul.f32 %v1572, %v1567
    %v1575 = vmul.f32 %v1573, %v1569
    %v1576 = vadd.f32 %v1574, 1.4214138
    %v1577 = vadd.f32 %v1575, 1.4214138
    %v1578 = vmul.f32 %v1576, %v1567
    %v1579 = vmul.f32 %v1577, %v1569
    %v1580 = vadd.f32 %v1578, -0.28449672
    %v1581 = vadd.f32 %v1579, -0.28449672
    %v1582 = vmul.f32 %v1580, %v1567
    %v1583 = vmul.f32 %v1581, %v1569
    %v1584 = vadd.f32 %v1582, 0.2548296
    %v1585 = vadd.f32 %v1583, 0.2548296
    %v1586 = vmul.f32 %v1584, %v1567
    %v1587 = vmul.f32 %v1585, %v1569
    %v1588 = vsub.f32 0.0, %v1560
    %v1589 = vsub.f32 0.0, %v1561
    %v1590 = vmul.f32 %v1588, %v1560
    %v1591 = vmul.f32 %v1589, %v1561
    %v1592 = vmul.f32 %v1590, 1.442695
    %v1593 = vpow.pop %v1592
    %v1594 = vmul.f32 %v1591, 1.442695
    %v1595 = vpow.pop %v1594
    %v1596 = vmul.f32 %v1586, %v1593
    %v1597 = vmul.f32 %v1587, %v1595
    %v1598 = vsub.f32 1.0, %v1596
    %v1599 = vsub.f32 1.0, %v1597
    %v1600 = vmul.f32 %v1558, %v1598
    %v1601 = vmul.f32 %v1559, %v1599
    %v1602 = vadd.f32 %v1600, 1.0
    %v1603 = vadd.f32 %v1601, 1.0
    %v1604 = vmul.f32 %v1552, %v1602
    %v1605 = vmul.f32 %v1553, %v1603
    %s1606 = sld [smem:[#allocation10]]
    %v1607 = vstv %s1606
    %v1608 = vmul.f32 %v1607, %v624
    %v1609 = vmul.f32 %v1607, %v625
    %s1610 = sld [smem:[#allocation10 + $0x1]]
    %v1611 = vstv %s1610
    %v1612 = vmul.f32 %v1611, %v764
    %v1613 = vmul.f32 %v1611, %v765
    %v1614 = vadd.f32 %v1608, %v1612
    %v1615 = vadd.f32 %v1609, %v1613
    %s1616 = sld [smem:[#allocation10 + $0x2]]
    %v1617 = vstv %s1616
    %v1618 = vmul.f32 %v1617, %v904
    %v1619 = vmul.f32 %v1617, %v905
    %v1620 = vadd.f32 %v1614, %v1618
    %v1621 = vadd.f32 %v1615, %v1619
    %s1622 = sld [smem:[#allocation10 + $0x3]]
    %v1623 = vstv %s1622
    %v1624 = vmul.f32 %v1623, %v1044
    %v1625 = vmul.f32 %v1623, %v1045
    %v1626 = vadd.f32 %v1620, %v1624
    %v1627 = vadd.f32 %v1621, %v1625
    %s1628 = sld [smem:[#allocation10 + $0x4]]
    %v1629 = vstv %s1628
    %v1630 = vmul.f32 %v1629, %v1184
    %v1631 = vmul.f32 %v1629, %v1185
    %v1632 = vadd.f32 %v1626, %v1630
    %v1633 = vadd.f32 %v1627, %v1631
    %s1634 = sld [smem:[#allocation10 + $0x5]]
    %v1635 = vstv %s1634
    %v1636 = vmul.f32 %v1635, %v1324
    %v1637 = vmul.f32 %v1635, %v1325
    %v1638 = vadd.f32 %v1632, %v1636
    %v1639 = vadd.f32 %v1633, %v1637
    %s1640 = sld [smem:[#allocation10 + $0x6]]
    %v1641 = vstv %s1640
    %v1642 = vmul.f32 %v1641, %v1464
    %v1643 = vmul.f32 %v1641, %v1465
    %v1644 = vadd.f32 %v1638, %v1642
    %v1645 = vadd.f32 %v1639, %v1643
    %s1646 = sld [smem:[#allocation10 + $0x7]]
    %v1647 = vstv %s1646
    %v1648 = vmul.f32 %v1647, %v1604
    %v1649 = vmul.f32 %v1647, %v1605
    %v1650 = vadd.f32 %v1644, %v1648
    %v1651 = vadd.f32 %v1645, %v1649
    %s1652 = sld [smem:[#allocation12]]
    %v1653 = vstv %s1652
    %v1654 = vadd.f32 %v1650, %v1653
    %v1655 = vadd.f32 %v1651, %v1653
    %s1656 = sld [smem:[#allocation10 + $0x80]]
    %v1657 = vstv %s1656
    %v1658 = vmul.f32 %v1657, %v624
    %v1659 = vmul.f32 %v1657, %v625
    %s1660 = sld [smem:[#allocation10 + $0x81]]
    %v1661 = vstv %s1660
    %v1662 = vmul.f32 %v1661, %v764
    %v1663 = vmul.f32 %v1661, %v765
    %v1664 = vadd.f32 %v1658, %v1662
    %v1665 = vadd.f32 %v1659, %v1663
    %s1666 = sld [smem:[#allocation10 + $0x82]]
    %v1667 = vstv %s1666
    %v1668 = vmul.f32 %v1667, %v904
    %v1669 = vmul.f32 %v1667, %v905
    %v1670 = vadd.f32 %v1664, %v1668
    %v1671 = vadd.f32 %v1665, %v1669
    %s1672 = sld [smem:[#allocation10 + $0x83]]
    %v1673 = vstv %s1672
    %v1674 = vmul.f32 %v1673, %v1044
    %v1675 = vmul.f32 %v1673, %v1045
    %v1676 = vadd.f32 %v1670, %v1674
    %v1677 = vadd.f32 %v1671, %v1675
    %s1678 = sld [smem:[#allocation10 + $0x84]]
    %v1679 = vstv %s1678
    %v1680 = vmul.f32 %v1679, %v1184
    %v1681 = vmul.f32 %v1679, %v1185
    %v1682 = vadd.f32 %v1676, %v1680
    %v1683 = vadd.f32 %v1677, %v1681
    %s1684 = sld [smem:[#allocation10 + $0x85]]
    %v1685 = vstv %s1684
    %v1686 = vmul.f32 %v1685, %v1324
    %v1687 = vmul.f32 %v1685, %v1325
    %v1688 = vadd.f32 %v1682, %v1686
    %v1689 = vadd.f32 %v1683, %v1687
    %s1690 = sld [smem:[#allocation10 + $0x86]]
    %v1691 = vstv %s1690
    %v1692 = vmul.f32 %v1691, %v1464
    %v1693 = vmul.f32 %v1691, %v1465
    %v1694 = vadd.f32 %v1688, %v1692
    %v1695 = vadd.f32 %v1689, %v1693
    %s1696 = sld [smem:[#allocation10 + $0x87]]
    %v1697 = vstv %s1696
    %v1698 = vmul.f32 %v1697, %v1604
    %v1699 = vmul.f32 %v1697, %v1605
    %v1700 = vadd.f32 %v1694, %v1698
    %v1701 = vadd.f32 %v1695, %v1699
    %s1702 = sld [smem:[#allocation12 + $0x1]]
    %v1703 = vstv %s1702
    %v1704 = vadd.f32 %v1700, %v1703
    %v1705 = vadd.f32 %v1701, %v1703
    %s1706 = sld [smem:[#allocation10 + $0x100]]
    %v1707 = vstv %s1706
    %v1708 = vmul.f32 %v1707, %v624
    %v1709 = vmul.f32 %v1707, %v625
    %s1710 = sld [smem:[#allocation10 + $0x101]]
    %v1711 = vstv %s1710
    %v1712 = vmul.f32 %v1711, %v764
    %v1713 = vmul.f32 %v1711, %v765
    %v1714 = vadd.f32 %v1708, %v1712
    %v1715 = vadd.f32 %v1709, %v1713
    %s1716 = sld [smem:[#allocation10 + $0x102]]
    %v1717 = vstv %s1716
    %v1718 = vmul.f32 %v1717, %v904
    %v1719 = vmul.f32 %v1717, %v905
    %v1720 = vadd.f32 %v1714, %v1718
    %v1721 = vadd.f32 %v1715, %v1719
    %s1722 = sld [smem:[#allocation10 + $0x103]]
    %v1723 = vstv %s1722
    %v1724 = vmul.f32 %v1723, %v1044
    %v1725 = vmul.f32 %v1723, %v1045
    %v1726 = vadd.f32 %v1720, %v1724
    %v1727 = vadd.f32 %v1721, %v1725
    %s1728 = sld [smem:[#allocation10 + $0x104]]
    %v1729 = vstv %s1728
    %v1730 = vmul.f32 %v1729, %v1184
    %v1731 = vmul.f32 %v1729, %v1185
    %v1732 = vadd.f32 %v1726, %v1730
    %v1733 = vadd.f32 %v1727, %v1731
    %s1734 = sld [smem:[#allocation10 + $0x105]]
    %v1735 = vstv %s1734
    %v1736 = vmul.f32 %v1735, %v1324
    %v1737 = vmul.f32 %v1735, %v1325
    %v1738 = vadd.f32 %v1732, %v1736
    %v1739 = vadd.f32 %v1733, %v1737
    %s1740 = sld [smem:[#allocation10 + $0x106]]
    %v1741 = vstv %s1740
    %v1742 = vmul.f32 %v1741, %v1464
    %v1743 = vmul.f32 %v1741, %v1465
    %v1744 = vadd.f32 %v1738, %v1742
    %v1745 = vadd.f32 %v1739, %v1743
    %s1746 = sld [smem:[#allocation10 + $0x107]]
    %v1747 = vstv %s1746
    %v1748 = vmul.f32 %v1747, %v1604
    %v1749 = vmul.f32 %v1747, %v1605
    %v1750 = vadd.f32 %v1744, %v1748
    %v1751 = vadd.f32 %v1745, %v1749
    %s1752 = sld [smem:[#allocation12 + $0x2]]
    %v1753 = vstv %s1752
    %v1754 = vadd.f32 %v1750, %v1753
    %v1755 = vadd.f32 %v1751, %v1753
    %s1756 = sld [smem:[#allocation10 + $0x180]]
    %v1757 = vstv %s1756
    %v1758 = vmul.f32 %v1757, %v624
    %v1759 = vmul.f32 %v1757, %v625
    %s1760 = sld [smem:[#allocation10 + $0x181]]
    %v1761 = vstv %s1760
    %v1762 = vmul.f32 %v1761, %v764
    %v1763 = vmul.f32 %v1761, %v765
    %v1764 = vadd.f32 %v1758, %v1762
    %v1765 = vadd.f32 %v1759, %v1763
    %s1766 = sld [smem:[#allocation10 + $0x182]]
    %v1767 = vstv %s1766
    %v1768 = vmul.f32 %v1767, %v904
    %v1769 = vmul.f32 %v1767, %v905
    %v1770 = vadd.f32 %v1764, %v1768
    %v1771 = vadd.f32 %v1765, %v1769
    %s1772 = sld [smem:[#allocation10 + $0x183]]
    %v1773 = vstv %s1772
    %v1774 = vmul.f32 %v1773, %v1044
    %v1775 = vmul.f32 %v1773, %v1045
    %v1776 = vadd.f32 %v1770, %v1774
    %v1777 = vadd.f32 %v1771, %v1775
    %s1778 = sld [smem:[#allocation10 + $0x184]]
    %v1779 = vstv %s1778
    %v1780 = vmul.f32 %v1779, %v1184
    %v1781 = vmul.f32 %v1779, %v1185
    %v1782 = vadd.f32 %v1776, %v1780
    %v1783 = vadd.f32 %v1777, %v1781
    %s1784 = sld [smem:[#allocation10 + $0x185]]
    %v1785 = vstv %s1784
    %v1786 = vmul.f32 %v1785, %v1324
    %v1787 = vmul.f32 %v1785, %v1325
    %v1788 = vadd.f32 %v1782, %v1786
    %v1789 = vadd.f32 %v1783, %v1787
    %s1790 = sld [smem:[#allocation10 + $0x186]]
    %v1791 = vstv %s1790
    %v1792 = vmul.f32 %v1791, %v1464
    %v1793 = vmul.f32 %v1791, %v1465
    %v1794 = vadd.f32 %v1788, %v1792
    %v1795 = vadd.f32 %v1789, %v1793
    %s1796 = sld [smem:[#allocation10 + $0x187]]
    %v1797 = vstv %s1796
    %v1798 = vmul.f32 %v1797, %v1604
    %v1799 = vmul.f32 %v1797, %v1605
    %v1800 = vadd.f32 %v1794, %v1798
    %v1801 = vadd.f32 %v1795, %v1799
    %s1802 = sld [smem:[#allocation12 + $0x3]]
    %v1803 = vstv %s1802
    %v1804 = vadd.f32 %v1800, %v1803
    %v1805 = vadd.f32 %v1801, %v1803
    %v1808 = vrot.slane %v1704, 6
    %v1809 = vrot.slane %v1705, 6
    %v1814 = vrot.slane %v1754, 4
    %v1815 = vrot.slane %v1755, 4
    %v1820 = vrot.slane %v1804, 2
    %v1821 = vrot.slane %v1805, 2
    %vm1824 = vcmask 1041408
    %v1825 = vsel %vm1824, %v1654, %v1808
    %v1826 = vsel %vm1824, %v1655, %v1809
    %vm1827 = vcmask 1043456
    %v1828 = vsel %vm1827, %v1825, %v1814
    %v1829 = vsel %vm1827, %v1826, %v1815
    %vm1830 = vcmask 1045504
    %v1831 = vsel %vm1830, %v1828, %v1820
    %v1832 = vsel %vm1830, %v1829, %v1821
    %s1833 = sld [smem:[#allocation10 + $0x200]]
    %v1834 = vstv %s1833
    %v1835 = vmul.f32 %v1834, %v624
    %v1836 = vmul.f32 %v1834, %v625
    %s1837 = sld [smem:[#allocation10 + $0x201]]
    %v1838 = vstv %s1837
    %v1839 = vmul.f32 %v1838, %v764
    %v1840 = vmul.f32 %v1838, %v765
    %v1841 = vadd.f32 %v1835, %v1839
    %v1842 = vadd.f32 %v1836, %v1840
    %s1843 = sld [smem:[#allocation10 + $0x202]]
    %v1844 = vstv %s1843
    %v1845 = vmul.f32 %v1844, %v904
    %v1846 = vmul.f32 %v1844, %v905
    %v1847 = vadd.f32 %v1841, %v1845
    %v1848 = vadd.f32 %v1842, %v1846
    %s1849 = sld [smem:[#allocation10 + $0x203]]
    %v1850 = vstv %s1849
    %v1851 = vmul.f32 %v1850, %v1044
    %v1852 = vmul.f32 %v1850, %v1045
    %v1853 = vadd.f32 %v1847, %v1851
    %v1854 = vadd.f32 %v1848, %v1852
    %s1855 = sld [smem:[#allocation10 + $0x204]]
    %v1856 = vstv %s1855
    %v1857 = vmul.f32 %v1856, %v1184
    %v1858 = vmul.f32 %v1856, %v1185
    %v1859 = vadd.f32 %v1853, %v1857
    %v1860 = vadd.f32 %v1854, %v1858
    %s1861 = sld [smem:[#allocation10 + $0x205]]
    %v1862 = vstv %s1861
    %v1863 = vmul.f32 %v1862, %v1324
    %v1864 = vmul.f32 %v1862, %v1325
    %v1865 = vadd.f32 %v1859, %v1863
    %v1866 = vadd.f32 %v1860, %v1864
    %s1867 = sld [smem:[#allocation10 + $0x206]]
    %v1868 = vstv %s1867
    %v1869 = vmul.f32 %v1868, %v1464
    %v1870 = vmul.f32 %v1868, %v1465
    %v1871 = vadd.f32 %v1865, %v1869
    %v1872 = vadd.f32 %v1866, %v1870
    %s1873 = sld [smem:[#allocation10 + $0x207]]
    %v1874 = vstv %s1873
    %v1875 = vmul.f32 %v1874, %v1604
    %v1876 = vmul.f32 %v1874, %v1605
    %v1877 = vadd.f32 %v1871, %v1875
    %v1878 = vadd.f32 %v1872, %v1876
    %s1879 = sld [smem:[#allocation12 + $0x4]]
    %v1880 = vstv %s1879
    %v1881 = vadd.f32 %v1877, %v1880
    %v1882 = vadd.f32 %v1878, %v1880
    %s1883 = sld [smem:[#allocation10 + $0x280]]
    %v1884 = vstv %s1883
    %v1885 = vmul.f32 %v1884, %v624
    %v1886 = vmul.f32 %v1884, %v625
    %s1887 = sld [smem:[#allocation10 + $0x281]]
    %v1888 = vstv %s1887
    %v1889 = vmul.f32 %v1888, %v764
    %v1890 = vmul.f32 %v1888, %v765
    %v1891 = vadd.f32 %v1885, %v1889
    %v1892 = vadd.f32 %v1886, %v1890
    %s1893 = sld [smem:[#allocation10 + $0x282]]
    %v1894 = vstv %s1893
    %v1895 = vmul.f32 %v1894, %v904
    %v1896 = vmul.f32 %v1894, %v905
    %v1897 = vadd.f32 %v1891, %v1895
    %v1898 = vadd.f32 %v1892, %v1896
    %s1899 = sld [smem:[#allocation10 + $0x283]]
    %v1900 = vstv %s1899
    %v1901 = vmul.f32 %v1900, %v1044
    %v1902 = vmul.f32 %v1900, %v1045
    %v1903 = vadd.f32 %v1897, %v1901
    %v1904 = vadd.f32 %v1898, %v1902
    %s1905 = sld [smem:[#allocation10 + $0x284]]
    %v1906 = vstv %s1905
    %v1907 = vmul.f32 %v1906, %v1184
    %v1908 = vmul.f32 %v1906, %v1185
    %v1909 = vadd.f32 %v1903, %v1907
    %v1910 = vadd.f32 %v1904, %v1908
    %s1911 = sld [smem:[#allocation10 + $0x285]]
    %v1912 = vstv %s1911
    %v1913 = vmul.f32 %v1912, %v1324
    %v1914 = vmul.f32 %v1912, %v1325
    %v1915 = vadd.f32 %v1909, %v1913
    %v1916 = vadd.f32 %v1910, %v1914
    %s1917 = sld [smem:[#allocation10 + $0x286]]
    %v1918 = vstv %s1917
    %v1919 = vmul.f32 %v1918, %v1464
    %v1920 = vmul.f32 %v1918, %v1465
    %v1921 = vadd.f32 %v1915, %v1919
    %v1922 = vadd.f32 %v1916, %v1920
    %s1923 = sld [smem:[#allocation10 + $0x287]]
    %v1924 = vstv %s1923
    %v1925 = vmul.f32 %v1924, %v1604
    %v1926 = vmul.f32 %v1924, %v1605
    %v1927 = vadd.f32 %v1921, %v1925
    %v1928 = vadd.f32 %v1922, %v1926
    %s1929 = sld [smem:[#allocation12 + $0x5]]
    %v1930 = vstv %s1929
    %v1931 = vadd.f32 %v1927, %v1930
    %v1932 = vadd.f32 %v1928, %v1930
    %s1933 = sld [smem:[#allocation10 + $0x300]]
    %v1934 = vstv %s1933
    %v1935 = vmul.f32 %v1934, %v624
    %v1936 = vmul.f32 %v1934, %v625
    %s1937 = sld [smem:[#allocation10 + $0x301]]
    %v1938 = vstv %s1937
    %v1939 = vmul.f32 %v1938, %v764
    %v1940 = vmul.f32 %v1938, %v765
    %v1941 = vadd.f32 %v1935, %v1939
    %v1942 = vadd.f32 %v1936, %v1940
    %s1943 = sld [smem:[#allocation10 + $0x302]]
    %v1944 = vstv %s1943
    %v1945 = vmul.f32 %v1944, %v904
    %v1946 = vmul.f32 %v1944, %v905
    %v1947 = vadd.f32 %v1941, %v1945
    %v1948 = vadd.f32 %v1942, %v1946
    %s1949 = sld [smem:[#allocation10 + $0x303]]
    %v1950 = vstv %s1949
    %v1951 = vmul.f32 %v1950, %v1044
    %v1952 = vmul.f32 %v1950, %v1045
    %v1953 = vadd.f32 %v1947, %v1951
    %v1954 = vadd.f32 %v1948, %v1952
    %s1955 = sld [smem:[#allocation10 + $0x304]]
    %v1956 = vstv %s1955
    %v1957 = vmul.f32 %v1956, %v1184
    %v1958 = vmul.f32 %v1956, %v1185
    %v1959 = vadd.f32 %v1953, %v1957
    %v1960 = vadd.f32 %v1954, %v1958
    %s1961 = sld [smem:[#allocation10 + $0x305]]
    %v1962 = vstv %s1961
    %v1963 = vmul.f32 %v1962, %v1324
    %v1964 = vmul.f32 %v1962, %v1325
    %v1965 = vadd.f32 %v1959, %v1963
    %v1966 = vadd.f32 %v1960, %v1964
    %s1967 = sld [smem:[#allocation10 + $0x306]]
    %v1968 = vstv %s1967
    %v1969 = vmul.f32 %v1968, %v1464
    %v1970 = vmul.f32 %v1968, %v1465
    %v1971 = vadd.f32 %v1965, %v1969
    %v1972 = vadd.f32 %v1966, %v1970
    %s1973 = sld [smem:[#allocation10 + $0x307]]
    %v1974 = vstv %s1973
    %v1975 = vmul.f32 %v1974, %v1604
    %v1976 = vmul.f32 %v1974, %v1605
    %v1977 = vadd.f32 %v1971, %v1975
    %v1978 = vadd.f32 %v1972, %v1976
    %s1979 = sld [smem:[#allocation12 + $0x6]]
    %v1980 = vstv %s1979
    %v1981 = vadd.f32 %v1977, %v1980
    %v1982 = vadd.f32 %v1978, %v1980
    %s1983 = sld [smem:[#allocation10 + $0x380]]
    %v1984 = vstv %s1983
    %v1985 = vmul.f32 %v1984, %v624
    %v1986 = vmul.f32 %v1984, %v625
    %s1987 = sld [smem:[#allocation10 + $0x381]]
    %v1988 = vstv %s1987
    %v1989 = vmul.f32 %v1988, %v764
    %v1990 = vmul.f32 %v1988, %v765
    %v1991 = vadd.f32 %v1985, %v1989
    %v1992 = vadd.f32 %v1986, %v1990
    %s1993 = sld [smem:[#allocation10 + $0x382]]
    %v1994 = vstv %s1993
    %v1995 = vmul.f32 %v1994, %v904
    %v1996 = vmul.f32 %v1994, %v905
    %v1997 = vadd.f32 %v1991, %v1995
    %v1998 = vadd.f32 %v1992, %v1996
    %s1999 = sld [smem:[#allocation10 + $0x383]]
    %v2000 = vstv %s1999
    %v2001 = vmul.f32 %v2000, %v1044
    %v2002 = vmul.f32 %v2000, %v1045
    %v2003 = vadd.f32 %v1997, %v2001
    %v2004 = vadd.f32 %v1998, %v2002
    %s2005 = sld [smem:[#allocation10 + $0x384]]
    %v2006 = vstv %s2005
    %v2007 = vmul.f32 %v2006, %v1184
    %v2008 = vmul.f32 %v2006, %v1185
    %v2009 = vadd.f32 %v2003, %v2007
    %v2010 = vadd.f32 %v2004, %v2008
    %s2011 = sld [smem:[#allocation10 + $0x385]]
    %v2012 = vstv %s2011
    %v2013 = vmul.f32 %v2012, %v1324
    %v2014 = vmul.f32 %v2012, %v1325
    %v2015 = vadd.f32 %v2009, %v2013
    %v2016 = vadd.f32 %v2010, %v2014
    %s2017 = sld [smem:[#allocation10 + $0x386]]
    %v2018 = vstv %s2017
    %v2019 = vmul.f32 %v2018, %v1464
    %v2020 = vmul.f32 %v2018, %v1465
    %v2021 = vadd.f32 %v2015, %v2019
    %v2022 = vadd.f32 %v2016, %v2020
    %s2023 = sld [smem:[#allocation10 + $0x387]]
    %v2024 = vstv %s2023
    %v2025 = vmul.f32 %v2024, %v1604
    %v2026 = vmul.f32 %v2024, %v1605
    %v2027 = vadd.f32 %v2021, %v2025
    %v2028 = vadd.f32 %v2022, %v2026
    %s2029 = sld [smem:[#allocation12 + $0x7]]
    %v2030 = vstv %s2029
    %v2031 = vadd.f32 %v2027, %v2030
    %v2032 = vadd.f32 %v2028, %v2030
    %v2035 = vrot.slane %v1931, 6
    %v2036 = vrot.slane %v1932, 6
    %v2041 = vrot.slane %v1981, 4
    %v2042 = vrot.slane %v1982, 4
    %v2047 = vrot.slane %v2031, 2
    %v2048 = vrot.slane %v2032, 2
    %v2051 = vsel %vm1824, %v1881, %v2035
    %v2052 = vsel %vm1824, %v1882, %v2036
    %v2053 = vsel %vm1827, %v2051, %v2041
    %v2054 = vsel %vm1827, %v2052, %v2042
    %v2055 = vsel %vm1830, %v2053, %v2047
    %v2056 = vsel %vm1830, %v2054, %v2048
    %v2057 = vpack.c.bf16 %v1831, %v1831
    %v2058 = vpack.c.bf16 %v1832, %v1832
    %v2059 = vld [vmem:[#allocation19] sm:$0xff]
    %v2060 = vld [vmem:[#allocation19 + $0x8] sm:$0xff]
    %v2061 = vld [vmem:[#allocation19 + $0x10] sm:$0xff]
    %v2062 = vld [vmem:[#allocation19 + $0x18] sm:$0xff]
    %v2063 = vld [vmem:[#allocation19 + $0x20] sm:$0xff]
    %v2064 = vld [vmem:[#allocation19 + $0x28] sm:$0xff]
    %v2065 = vld [vmem:[#allocation19 + $0x30] sm:$0xff]
    %v2066 = vld [vmem:[#allocation19 + $0x38] sm:$0xff]
    %v2067 = vld [vmem:[#allocation19 + $0x40] sm:$0xff]
    %v2068 = vld [vmem:[#allocation19 + $0x48] sm:$0xff]
    %v2069 = vld [vmem:[#allocation19 + $0x50] sm:$0xff]
    %v2070 = vld [vmem:[#allocation19 + $0x58] sm:$0xff]
    %v2071 = vld [vmem:[#allocation19 + $0x60] sm:$0xff]
    %v2072 = vld [vmem:[#allocation19 + $0x68] sm:$0xff]
    %v2073 = vld [vmem:[#allocation19 + $0x70] sm:$0xff]
    %v2074 = vld [vmem:[#allocation19 + $0x78] sm:$0xff]
    %v2075 = vld [vmem:[#allocation19 + $0x80] sm:$0xff]
    %v2076 = vld [vmem:[#allocation19 + $0x88] sm:$0xff]
    %v2077 = vld [vmem:[#allocation19 + $0x90] sm:$0xff]
    %v2078 = vld [vmem:[#allocation19 + $0x98] sm:$0xff]
    %v2079 = vld [vmem:[#allocation19 + $0xa0] sm:$0xff]
    %v2080 = vld [vmem:[#allocation19 + $0xa8] sm:$0xff]
    %v2081 = vld [vmem:[#allocation19 + $0xb0] sm:$0xff]
    %v2082 = vld [vmem:[#allocation19 + $0xb8] sm:$0xff]
    %v2083 = vld [vmem:[#allocation19 + $0xc0] sm:$0xff]
    %v2084 = vld [vmem:[#allocation19 + $0xc8] sm:$0xff]
    %v2085 = vld [vmem:[#allocation19 + $0xd0] sm:$0xff]
    %v2086 = vld [vmem:[#allocation19 + $0xd8] sm:$0xff]
    %v2087 = vld [vmem:[#allocation19 + $0xe0] sm:$0xff]
    %v2088 = vld [vmem:[#allocation19 + $0xe8] sm:$0xff]
    %v2089 = vld [vmem:[#allocation19 + $0xf0] sm:$0xff]
    %v2090 = vld [vmem:[#allocation19 + $0xf8] sm:$0xff]
    %v2123 = vunpack.c.l.b16 %v2059
    %v2124 = vunpack.c.h.b16 %v2059
    %v2125 = vunpack.c.l.b16 %v2060
    %v2126 = vunpack.c.h.b16 %v2060
    %v2127 = vunpack.c.l.b16 %v2061
    %v2128 = vunpack.c.h.b16 %v2061
    %v2129 = vunpack.c.l.b16 %v2062
    %v2130 = vunpack.c.h.b16 %v2062
    %v2131 = vunpack.c.l.b16 %v2063
    %v2132 = vunpack.c.h.b16 %v2063
    %v2133 = vunpack.c.l.b16 %v2064
    %v2134 = vunpack.c.h.b16 %v2064
    %v2135 = vunpack.c.l.b16 %v2065
    %v2136 = vunpack.c.h.b16 %v2065
    %v2137 = vunpack.c.l.b16 %v2066
    %v2138 = vunpack.c.h.b16 %v2066
    %v2139 = vunpack.c.l.b16 %v2067
    %v2140 = vunpack.c.h.b16 %v2067
    %v2141 = vunpack.c.l.b16 %v2068
    %v2142 = vunpack.c.h.b16 %v2068
    %v2143 = vunpack.c.l.b16 %v2069
    %v2144 = vunpack.c.h.b16 %v2069
    %v2145 = vunpack.c.l.b16 %v2070
    %v2146 = vunpack.c.h.b16 %v2070
    %v2147 = vunpack.c.l.b16 %v2071
    %v2148 = vunpack.c.h.b16 %v2071
    %v2149 = vunpack.c.l.b16 %v2072
    %v2150 = vunpack.c.h.b16 %v2072
    %v2151 = vunpack.c.l.b16 %v2073
    %v2152 = vunpack.c.h.b16 %v2073
    %v2153 = vunpack.c.l.b16 %v2074
    %v2154 = vunpack.c.h.b16 %v2074
    %v2155 = vunpack.c.l.b16 %v2075
    %v2156 = vunpack.c.h.b16 %v2075
    %v2157 = vunpack.c.l.b16 %v2076
    %v2158 = vunpack.c.h.b16 %v2076
    %v2159 = vunpack.c.l.b16 %v2077
    %v2160 = vunpack.c.h.b16 %v2077
    %v2161 = vunpack.c.l.b16 %v2078
    %v2162 = vunpack.c.h.b16 %v2078
    %v2163 = vunpack.c.l.b16 %v2079
    %v2164 = vunpack.c.h.b16 %v2079
    %v2165 = vunpack.c.l.b16 %v2080
    %v2166 = vunpack.c.h.b16 %v2080
    %v2167 = vunpack.c.l.b16 %v2081
    %v2168 = vunpack.c.h.b16 %v2081
    %v2169 = vunpack.c.l.b16 %v2082
    %v2170 = vunpack.c.h.b16 %v2082
    %v2171 = vunpack.c.l.b16 %v2083
    %v2172 = vunpack.c.h.b16 %v2083
    %v2173 = vunpack.c.l.b16 %v2084
    %v2174 = vunpack.c.h.b16 %v2084
    %v2175 = vunpack.c.l.b16 %v2085
    %v2176 = vunpack.c.h.b16 %v2085
    %v2177 = vunpack.c.l.b16 %v2086
    %v2178 = vunpack.c.h.b16 %v2086
    %v2179 = vunpack.c.l.b16 %v2087
    %v2180 = vunpack.c.h.b16 %v2087
    %v2181 = vunpack.c.l.b16 %v2088
    %v2182 = vunpack.c.h.b16 %v2088
    %v2183 = vunpack.c.l.b16 %v2089
    %v2184 = vunpack.c.h.b16 %v2089
    %v2185 = vunpack.c.l.b16 %v2090
    %v2186 = vunpack.c.h.b16 %v2090
    %v2187 = vpack.c.b16 %v2125, %v2123
    %v2188 = vpack.c.b16 %v2126, %v2124
    %v2189 = vpack.c.b16 %v2129, %v2127
    %v2190 = vpack.c.b16 %v2130, %v2128
    %v2191 = vpack.c.b16 %v2133, %v2131
    %v2192 = vpack.c.b16 %v2134, %v2132
    %v2193 = vpack.c.b16 %v2137, %v2135
    %v2194 = vpack.c.b16 %v2138, %v2136
    %v2195 = vpack.c.b16 %v2141, %v2139
    %v2196 = vpack.c.b16 %v2142, %v2140
    %v2197 = vpack.c.b16 %v2145, %v2143
    %v2198 = vpack.c.b16 %v2146, %v2144
    %v2199 = vpack.c.b16 %v2149, %v2147
    %v2200 = vpack.c.b16 %v2150, %v2148
    %v2201 = vpack.c.b16 %v2153, %v2151
    %v2202 = vpack.c.b16 %v2154, %v2152
    %v2203 = vpack.c.b16 %v2157, %v2155
    %v2204 = vpack.c.b16 %v2158, %v2156
    %v2205 = vpack.c.b16 %v2161, %v2159
    %v2206 = vpack.c.b16 %v2162, %v2160
    %v2207 = vpack.c.b16 %v2165, %v2163
    %v2208 = vpack.c.b16 %v2166, %v2164
    %v2209 = vpack.c.b16 %v2169, %v2167
    %v2210 = vpack.c.b16 %v2170, %v2168
    %v2211 = vpack.c.b16 %v2173, %v2171
    %v2212 = vpack.c.b16 %v2174, %v2172
    %v2213 = vpack.c.b16 %v2177, %v2175
    %v2214 = vpack.c.b16 %v2178, %v2176
    %v2215 = vpack.c.b16 %v2181, %v2179
    %v2216 = vpack.c.b16 %v2182, %v2180
    %v2217 = vpack.c.b16 %v2185, %v2183
    %v2218 = vpack.c.b16 %v2186, %v2184
    %2251 = vmatprep.subr.bf16.mxu0 %v2202
    %2252 = vmatpush1.bf16.msra.mxu0 %v2201
    %2253 = vmatprep.subr.bf16.mxu0 %v2200
    %2254 = vmatpush1.bf16.msra.mxu0 %v2199
    %2255 = vmatprep.subr.bf16.mxu0 %v2198
    %2256 = vmatpush1.bf16.msra.mxu0 %v2197
    %2257 = vmatprep.subr.bf16.mxu0 %v2196
    %2258 = vmatpush1.bf16.msra.mxu0 %v2195
    %2259 = vmatprep.subr.bf16.mxu0 %v2194
    %2260 = vmatpush1.bf16.msra.mxu0 %v2193
    %2261 = vmatprep.subr.bf16.mxu0 %v2192
    %2262 = vmatpush1.bf16.msra.mxu0 %v2191
    %2263 = vmatprep.subr.bf16.mxu0 %v2190
    %2264 = vmatpush1.bf16.msra.mxu0 %v2189
    %2265 = vmatprep.subr.bf16.mxu0 %v2188
    %2266 = vmatpush1.bf16.msra.mxu0 %v2187
    %2267 = vmatprep.subr.bf16.mxu0 %v2218
    %2268 = vmatpush2.bf16.msra.mxu0 %v2217
    %2269 = vmatprep.subr.bf16.mxu0 %v2216
    %2270 = vmatpush2.bf16.msra.mxu0 %v2215
    %2271 = vmatprep.subr.bf16.mxu0 %v2214
    %2272 = vmatpush2.bf16.msra.mxu0 %v2213
    %2273 = vmatprep.subr.bf16.mxu0 %v2212
    %2274 = vmatpush2.bf16.msra.mxu0 %v2211
    %2275 = vmatprep.subr.bf16.mxu0 %v2210
    %2276 = vmatpush2.bf16.msra.mxu0 %v2209
    %2277 = vmatprep.subr.bf16.mxu0 %v2208
    %2278 = vmatpush2.bf16.msra.mxu0 %v2207
    %2279 = vmatprep.subr.bf16.mxu0 %v2206
    %2280 = vmatpush2.bf16.msra.mxu0 %v2205
    %2281 = vmatprep.subr.bf16.mxu0 %v2204
    %2282 = vmatpush2.bf16.msra.mxu0 %v2203
    %2283 = vmatprep.mubr.bf16.mxu0 %v2058
    %2284 = vmatmul.mubr.bf16.gmra.mxu0 %v2057
    %v2285 = vpop.f32.mrf.mxu0
    %v2286 = vadd.f32 0.0, %v2285
    %v2287 = vpop.f32.mrf.mxu0
    %v2288 = vadd.f32 0.0, %v2287
    %v2289 = vpop.f32.mrf.mxu0
    %v2290 = vpop.f32.mrf.mxu0
    %2291 = vdwg.mxu0
    %v2292 = vpack.c.bf16 %v2055, %v2055
    %v2293 = vpack.c.bf16 %v2056, %v2056
    %v2294 = vld [vmem:[#allocation20] sm:$0xff]
    %v2295 = vld [vmem:[#allocation20 + $0x8] sm:$0xff]
    %v2296 = vld [vmem:[#allocation20 + $0x10] sm:$0xff]
    %v2297 = vld [vmem:[#allocation20 + $0x18] sm:$0xff]
    %v2298 = vld [vmem:[#allocation20 + $0x20] sm:$0xff]
    %v2299 = vld [vmem:[#allocation20 + $0x28] sm:$0xff]
    %v2300 = vld [vmem:[#allocation20 + $0x30] sm:$0xff]
    %v2301 = vld [vmem:[#allocation20 + $0x38] sm:$0xff]
    %v2302 = vld [vmem:[#allocation20 + $0x40] sm:$0xff]
    %v2303 = vld [vmem:[#allocation20 + $0x48] sm:$0xff]
    %v2304 = vld [vmem:[#allocation20 + $0x50] sm:$0xff]
    %v2305 = vld [vmem:[#allocation20 + $0x58] sm:$0xff]
    %v2306 = vld [vmem:[#allocation20 + $0x60] sm:$0xff]
    %v2307 = vld [vmem:[#allocation20 + $0x68] sm:$0xff]
    %v2308 = vld [vmem:[#allocation20 + $0x70] sm:$0xff]
    %v2309 = vld [vmem:[#allocation20 + $0x78] sm:$0xff]
    %v2310 = vld [vmem:[#allocation20 + $0x80] sm:$0xff]
    %v2311 = vld [vmem:[#allocation20 + $0x88] sm:$0xff]
    %v2312 = vld [vmem:[#allocation20 + $0x90] sm:$0xff]
    %v2313 = vld [vmem:[#allocation20 + $0x98] sm:$0xff]
    %v2314 = vld [vmem:[#allocation20 + $0xa0] sm:$0xff]
    %v2315 = vld [vmem:[#allocation20 + $0xa8] sm:$0xff]
    %v2316 = vld [vmem:[#allocation20 + $0xb0] sm:$0xff]
    %v2317 = vld [vmem:[#allocation20 + $0xb8] sm:$0xff]
    %v2318 = vld [vmem:[#allocation20 + $0xc0] sm:$0xff]
    %v2319 = vld [vmem:[#allocation20 + $0xc8] sm:$0xff]
    %v2320 = vld [vmem:[#allocation20 + $0xd0] sm:$0xff]
    %v2321 = vld [vmem:[#allocation20 + $0xd8] sm:$0xff]
    %v2322 = vld [vmem:[#allocation20 + $0xe0] sm:$0xff]
    %v2323 = vld [vmem:[#allocation20 + $0xe8] sm:$0xff]
    %v2324 = vld [vmem:[#allocation20 + $0xf0] sm:$0xff]
    %v2325 = vld [vmem:[#allocation20 + $0xf8] sm:$0xff]
    %v2358 = vunpack.c.l.b16 %v2294
    %v2359 = vunpack.c.h.b16 %v2294
    %v2360 = vunpack.c.l.b16 %v2295
    %v2361 = vunpack.c.h.b16 %v2295
    %v2362 = vunpack.c.l.b16 %v2296
    %v2363 = vunpack.c.h.b16 %v2296
    %v2364 = vunpack.c.l.b16 %v2297
    %v2365 = vunpack.c.h.b16 %v2297
    %v2366 = vunpack.c.l.b16 %v2298
    %v2367 = vunpack.c.h.b16 %v2298
    %v2368 = vunpack.c.l.b16 %v2299
    %v2369 = vunpack.c.h.b16 %v2299
    %v2370 = vunpack.c.l.b16 %v2300
    %v2371 = vunpack.c.h.b16 %v2300
    %v2372 = vunpack.c.l.b16 %v2301
    %v2373 = vunpack.c.h.b16 %v2301
    %v2374 = vunpack.c.l.b16 %v2302
    %v2375 = vunpack.c.h.b16 %v2302
    %v2376 = vunpack.c.l.b16 %v2303
    %v2377 = vunpack.c.h.b16 %v2303
    %v2378 = vunpack.c.l.b16 %v2304
    %v2379 = vunpack.c.h.b16 %v2304
    %v2380 = vunpack.c.l.b16 %v2305
    %v2381 = vunpack.c.h.b16 %v2305
    %v2382 = vunpack.c.l.b16 %v2306
    %v2383 = vunpack.c.h.b16 %v2306
    %v2384 = vunpack.c.l.b16 %v2307
    %v2385 = vunpack.c.h.b16 %v2307
    %v2386 = vunpack.c.l.b16 %v2308
    %v2387 = vunpack.c.h.b16 %v2308
    %v2388 = vunpack.c.l.b16 %v2309
    %v2389 = vunpack.c.h.b16 %v2309
    %v2390 = vunpack.c.l.b16 %v2310
    %v2391 = vunpack.c.h.b16 %v2310
    %v2392 = vunpack.c.l.b16 %v2311
    %v2393 = vunpack.c.h.b16 %v2311
    %v2394 = vunpack.c.l.b16 %v2312
    %v2395 = vunpack.c.h.b16 %v2312
    %v2396 = vunpack.c.l.b16 %v2313
    %v2397 = vunpack.c.h.b16 %v2313
    %v2398 = vunpack.c.l.b16 %v2314
    %v2399 = vunpack.c.h.b16 %v2314
    %v2400 = vunpack.c.l.b16 %v2315
    %v2401 = vunpack.c.h.b16 %v2315
    %v2402 = vunpack.c.l.b16 %v2316
    %v2403 = vunpack.c.h.b16 %v2316
    %v2404 = vunpack.c.l.b16 %v2317
    %v2405 = vunpack.c.h.b16 %v2317
    %v2406 = vunpack.c.l.b16 %v2318
    %v2407 = vunpack.c.h.b16 %v2318
    %v2408 = vunpack.c.l.b16 %v2319
    %v2409 = vunpack.c.h.b16 %v2319
    %v2410 = vunpack.c.l.b16 %v2320
    %v2411 = vunpack.c.h.b16 %v2320
    %v2412 = vunpack.c.l.b16 %v2321
    %v2413 = vunpack.c.h.b16 %v2321
    %v2414 = vunpack.c.l.b16 %v2322
    %v2415 = vunpack.c.h.b16 %v2322
    %v2416 = vunpack.c.l.b16 %v2323
    %v2417 = vunpack.c.h.b16 %v2323
    %v2418 = vunpack.c.l.b16 %v2324
    %v2419 = vunpack.c.h.b16 %v2324
    %v2420 = vunpack.c.l.b16 %v2325
    %v2421 = vunpack.c.h.b16 %v2325
    %v2422 = vpack.c.b16 %v2360, %v2358
    %v2423 = vpack.c.b16 %v2361, %v2359
    %v2424 = vpack.c.b16 %v2364, %v2362
    %v2425 = vpack.c.b16 %v2365, %v2363
    %v2426 = vpack.c.b16 %v2368, %v2366
    %v2427 = vpack.c.b16 %v2369, %v2367
    %v2428 = vpack.c.b16 %v2372, %v2370
    %v2429 = vpack.c.b16 %v2373, %v2371
    %v2430 = vpack.c.b16 %v2376, %v2374
    %v2431 = vpack.c.b16 %v2377, %v2375
    %v2432 = vpack.c.b16 %v2380, %v2378
    %v2433 = vpack.c.b16 %v2381, %v2379
    %v2434 = vpack.c.b16 %v2384, %v2382
    %v2435 = vpack.c.b16 %v2385, %v2383
    %v2436 = vpack.c.b16 %v2388, %v2386
    %v2437 = vpack.c.b16 %v2389, %v2387
    %v2438 = vpack.c.b16 %v2392, %v2390
    %v2439 = vpack.c.b16 %v2393, %v2391
    %v2440 = vpack.c.b16 %v2396, %v2394
    %v2441 = vpack.c.b16 %v2397, %v2395
    %v2442 = vpack.c.b16 %v2400, %v2398
    %v2443 = vpack.c.b16 %v2401, %v2399
    %v2444 = vpack.c.b16 %v2404, %v2402
    %v2445 = vpack.c.b16 %v2405, %v2403
    %v2446 = vpack.c.b16 %v2408, %v2406
    %v2447 = vpack.c.b16 %v2409, %v2407
    %v2448 = vpack.c.b16 %v2412, %v2410
    %v2449 = vpack.c.b16 %v2413, %v2411
    %v2450 = vpack.c.b16 %v2416, %v2414
    %v2451 = vpack.c.b16 %v2417, %v2415
    %v2452 = vpack.c.b16 %v2420, %v2418
    %v2453 = vpack.c.b16 %v2421, %v2419
    %2486 = vmatprep.subr.bf16.mxu0 %v2437
    %2487 = vmatpush1.bf16.msra.mxu0 %v2436
    %2488 = vmatprep.subr.bf16.mxu0 %v2435
    %2489 = vmatpush1.bf16.msra.mxu0 %v2434
    %2490 = vmatprep.subr.bf16.mxu0 %v2433
    %2491 = vmatpush1.bf16.msra.mxu0 %v2432
    %2492 = vmatprep.subr.bf16.mxu0 %v2431
    %2493 = vmatpush1.bf16.msra.mxu0 %v2430
    %2494 = vmatprep.subr.bf16.mxu0 %v2429
    %2495 = vmatpush1.bf16.msra.mxu0 %v2428
    %2496 = vmatprep.subr.bf16.mxu0 %v2427
    %2497 = vmatpush1.bf16.msra.mxu0 %v2426
    %2498 = vmatprep.subr.bf16.mxu0 %v2425
    %2499 = vmatpush1.bf16.msra.mxu0 %v2424
    %2500 = vmatprep.subr.bf16.mxu0 %v2423
    %2501 = vmatpush1.bf16.msra.mxu0 %v2422
    %2502 = vmatprep.subr.bf16.mxu0 %v2453
    %2503 = vmatpush2.bf16.msra.mxu0 %v2452
    %2504 = vmatprep.subr.bf16.mxu0 %v2451
    %2505 = vmatpush2.bf16.msra.mxu0 %v2450
    %2506 = vmatprep.subr.bf16.mxu0 %v2449
    %2507 = vmatpush2.bf16.msra.mxu0 %v2448
    %2508 = vmatprep.subr.bf16.mxu0 %v2447
    %2509 = vmatpush2.bf16.msra.mxu0 %v2446
    %2510 = vmatprep.subr.bf16.mxu0 %v2445
    %2511 = vmatpush2.bf16.msra.mxu0 %v2444
    %2512 = vmatprep.subr.bf16.mxu0 %v2443
    %2513 = vmatpush2.bf16.msra.mxu0 %v2442
    %2514 = vmatprep.subr.bf16.mxu0 %v2441
    %2515 = vmatpush2.bf16.msra.mxu0 %v2440
    %2516 = vmatprep.subr.bf16.mxu0 %v2439
    %2517 = vmatpush2.bf16.msra.mxu0 %v2438
    %2518 = vmatprep.mubr.bf16.mxu0 %v2293
    %2519 = vmatmul.mubr.bf16.gmra.mxu0 %v2292
    %v2520 = vpop.f32.mrf.mxu0
    %v2521 = vadd.f32 0.0, %v2520
    %v2522 = vpop.f32.mrf.mxu0
    %v2523 = vadd.f32 0.0, %v2522
    %v2524 = vpop.f32.mrf.mxu0
    %v2525 = vpop.f32.mrf.mxu0
    %2526 = vdwg.mxu0
    %v2527 = vsub.f32 %v2286, %v2521
    %v2528 = vsub.f32 %v2288, %v2523
    %s2529 = sld [smem:[#allocation13]]
    %v2530 = vstv %s2529
    %v2531 = vmul.f32 %v2530, %v2527
    %v2532 = vmul.f32 %v2530, %v2528
    %s2533 = sld [smem:[#allocation13 + $0x1]]
    %v2534 = vstv %s2533
    %v2535 = vmul.f32 %v2534, %v2527
    %v2536 = vmul.f32 %v2534, %v2528
    %v2539 = vrot.slane %v2535, 2
    %v2540 = vrot.slane %v2536, 2
    %v2543 = vadd.f32 %v2531, %v2539
    %v2544 = vadd.f32 %v2532, %v2540
    %s2545 = sld [smem:[#allocation13 + $0x2]]
    %v2546 = vstv %s2545
    %v2547 = vmul.f32 %v2546, %v2527
    %v2548 = vmul.f32 %v2546, %v2528
    %v2551 = vrot.slane %v2547, 4
    %v2552 = vrot.slane %v2548, 4
    %v2555 = vadd.f32 %v2543, %v2551
    %v2556 = vadd.f32 %v2544, %v2552
    %s2557 = sld [smem:[#allocation13 + $0x3]]
    %v2558 = vstv %s2557
    %v2559 = vmul.f32 %v2558, %v2527
    %v2560 = vmul.f32 %v2558, %v2528
    %v2563 = vrot.slane %v2559, 6
    %v2564 = vrot.slane %v2560, 6
    %v2567 = vadd.f32 %v2555, %v2563
    %v2568 = vadd.f32 %v2556, %v2564
    %s2569 = sld [smem:[#allocation14]]
    %v2570 = vstv %s2569
    %v2571 = vadd.f32 %v2567, %v2570
    %v2572 = vadd.f32 %v2568, %v2570
    %v2573 = vsub.f32 0.0, %v2571
    %v2574 = vsub.f32 0.0, %v2572
    %v2575 = vmul.f32 %v2573, 1.442695
    %v2576 = vpow.pop %v2575
    %v2577 = vmul.f32 %v2574, 1.442695
    %v2578 = vpow.pop %v2577
    %v2579 = vadd.f32 %v2576, 1.0
    %v2580 = vadd.f32 %v2578, 1.0
    %v2581 = vrcp.pop %v2579
    %v2582 = vmul.f32 1.0, %v2581
    %v2583 = vrcp.pop %v2580
    %v2584 = vmul.f32 1.0, %v2583
    %v2585 = vld [vmem:[%s11] sm:$0x3]
    %v2586 = vld [vmem:[%s11 + $0x8] sm:$0x3]
    %v2587 = vmul.f32 %v2585, %v2582
    %v2588 = vmul.f32 %v2586, %v2584
    %2589 = vst [vmem:[#allocation22] sm:$0x3] %v2587
    %2590 = vst [vmem:[#allocation22 + $0x8] sm:$0x3] %v2588
    %s2591 = sld [smem:[#allocation13 + $0x80]]
    %v2592 = vstv %s2591
    %v2593 = vmul.f32 %v2592, %v2527
    %v2594 = vmul.f32 %v2592, %v2528
    %s2595 = sld [smem:[#allocation13 + $0x81]]
    %v2596 = vstv %s2595
    %v2597 = vmul.f32 %v2596, %v2527
    %v2598 = vmul.f32 %v2596, %v2528
    %v2601 = vrot.slane %v2597, 2
    %v2602 = vrot.slane %v2598, 2
    %v2605 = vadd.f32 %v2593, %v2601
    %v2606 = vadd.f32 %v2594, %v2602
    %s2607 = sld [smem:[#allocation13 + $0x82]]
    %v2608 = vstv %s2607
    %v2609 = vmul.f32 %v2608, %v2527
    %v2610 = vmul.f32 %v2608, %v2528
    %v2613 = vrot.slane %v2609, 4
    %v2614 = vrot.slane %v2610, 4
    %v2617 = vadd.f32 %v2605, %v2613
    %v2618 = vadd.f32 %v2606, %v2614
    %s2619 = sld [smem:[#allocation13 + $0x83]]
    %v2620 = vstv %s2619
    %v2621 = vmul.f32 %v2620, %v2527
    %v2622 = vmul.f32 %v2620, %v2528
    %v2625 = vrot.slane %v2621, 6
    %v2626 = vrot.slane %v2622, 6
    %v2629 = vadd.f32 %v2617, %v2625
    %v2630 = vadd.f32 %v2618, %v2626
    %s2631 = sld [smem:[#allocation14 + $0x1]]
    %v2632 = vstv %s2631
    %v2633 = vadd.f32 %v2629, %v2632
    %v2634 = vadd.f32 %v2630, %v2632
    %v2635 = vsub.f32 0.0, %v2633
    %v2636 = vsub.f32 0.0, %v2634
    %v2637 = vmul.f32 %v2635, 1.442695
    %v2638 = vpow.pop %v2637
    %v2639 = vmul.f32 %v2636, 1.442695
    %v2640 = vpow.pop %v2639
    %v2641 = vadd.f32 %v2638, 1.0
    %v2642 = vadd.f32 %v2640, 1.0
    %v2643 = vrcp.pop %v2641
    %v2644 = vmul.f32 1.0, %v2643
    %v2645 = vrcp.pop %v2642
    %v2646 = vmul.f32 1.0, %v2645
    %v2647 = vld [vmem:[%s11] sm:$0xc]
    %v2648 = vld [vmem:[%s11 + $0x8] sm:$0xc]
    %v2651 = vrot.slane %v2644, 6
    %v2652 = vrot.slane %v2646, 6
    %v2655 = vmul.f32 %v2647, %v2651
    %v2656 = vmul.f32 %v2648, %v2652
    %2657 = vst [vmem:[#allocation22] sm:$0xc] %v2655
    %2658 = vst [vmem:[#allocation22 + $0x8] sm:$0xc] %v2656
    %s2659 = sld [smem:[#allocation13 + $0x100]]
    %v2660 = vstv %s2659
    %v2661 = vmul.f32 %v2660, %v2527
    %v2662 = vmul.f32 %v2660, %v2528
    %s2663 = sld [smem:[#allocation13 + $0x101]]
    %v2664 = vstv %s2663
    %v2665 = vmul.f32 %v2664, %v2527
    %v2666 = vmul.f32 %v2664, %v2528
    %v2669 = vrot.slane %v2665, 2
    %v2670 = vrot.slane %v2666, 2
    %v2673 = vadd.f32 %v2661, %v2669
    %v2674 = vadd.f32 %v2662, %v2670
    %s2675 = sld [smem:[#allocation13 + $0x102]]
    %v2676 = vstv %s2675
    %v2677 = vmul.f32 %v2676, %v2527
    %v2678 = vmul.f32 %v2676, %v2528
    %v2681 = vrot.slane %v2677, 4
    %v2682 = vrot.slane %v2678, 4
    %v2685 = vadd.f32 %v2673, %v2681
    %v2686 = vadd.f32 %v2674, %v2682
    %s2687 = sld [smem:[#allocation13 + $0x103]]
    %v2688 = vstv %s2687
    %v2689 = vmul.f32 %v2688, %v2527
    %v2690 = vmul.f32 %v2688, %v2528
    %v2693 = vrot.slane %v2689, 6
    %v2694 = vrot.slane %v2690, 6
    %v2697 = vadd.f32 %v2685, %v2693
    %v2698 = vadd.f32 %v2686, %v2694
    %s2699 = sld [smem:[#allocation14 + $0x2]]
    %v2700 = vstv %s2699
    %v2701 = vadd.f32 %v2697, %v2700
    %v2702 = vadd.f32 %v2698, %v2700
    %v2703 = vsub.f32 0.0, %v2701
    %v2704 = vsub.f32 0.0, %v2702
    %v2705 = vmul.f32 %v2703, 1.442695
    %v2706 = vpow.pop %v2705
    %v2707 = vmul.f32 %v2704, 1.442695
    %v2708 = vpow.pop %v2707
    %v2709 = vadd.f32 %v2706, 1.0
    %v2710 = vadd.f32 %v2708, 1.0
    %v2711 = vrcp.pop %v2709
    %v2712 = vmul.f32 1.0, %v2711
    %v2713 = vrcp.pop %v2710
    %v2714 = vmul.f32 1.0, %v2713
    %v2715 = vld [vmem:[%s11] sm:$0x30]
    %v2716 = vld [vmem:[%s11 + $0x8] sm:$0x30]
    %v2719 = vrot.slane %v2712, 4
    %v2720 = vrot.slane %v2714, 4
    %v2723 = vmul.f32 %v2715, %v2719
    %v2724 = vmul.f32 %v2716, %v2720
    %2725 = vst [vmem:[#allocation22] sm:$0x30] %v2723
    %2726 = vst [vmem:[#allocation22 + $0x8] sm:$0x30] %v2724
    %s2727 = sld [smem:[#allocation13 + $0x180]]
    %v2728 = vstv %s2727
    %v2729 = vmul.f32 %v2728, %v2527
    %v2730 = vmul.f32 %v2728, %v2528
    %s2731 = sld [smem:[#allocation13 + $0x181]]
    %v2732 = vstv %s2731
    %v2733 = vmul.f32 %v2732, %v2527
    %v2734 = vmul.f32 %v2732, %v2528
    %v2737 = vrot.slane %v2733, 2
    %v2738 = vrot.slane %v2734, 2
    %v2741 = vadd.f32 %v2729, %v2737
    %v2742 = vadd.f32 %v2730, %v2738
    %s2743 = sld [smem:[#allocation13 + $0x182]]
    %v2744 = vstv %s2743
    %v2745 = vmul.f32 %v2744, %v2527
    %v2746 = vmul.f32 %v2744, %v2528
    %v2749 = vrot.slane %v2745, 4
    %v2750 = vrot.slane %v2746, 4
    %v2753 = vadd.f32 %v2741, %v2749
    %v2754 = vadd.f32 %v2742, %v2750
    %s2755 = sld [smem:[#allocation13 + $0x183]]
    %v2756 = vstv %s2755
    %v2757 = vmul.f32 %v2756, %v2527
    %v2758 = vmul.f32 %v2756, %v2528
    %v2761 = vrot.slane %v2757, 6
    %v2762 = vrot.slane %v2758, 6
    %v2765 = vadd.f32 %v2753, %v2761
    %v2766 = vadd.f32 %v2754, %v2762
    %s2767 = sld [smem:[#allocation14 + $0x3]]
    %v2768 = vstv %s2767
    %v2769 = vadd.f32 %v2765, %v2768
    %v2770 = vadd.f32 %v2766, %v2768
    %v2771 = vsub.f32 0.0, %v2769
    %v2772 = vsub.f32 0.0, %v2770
    %v2773 = vmul.f32 %v2771, 1.442695
    %v2774 = vpow.pop %v2773
    %v2775 = vmul.f32 %v2772, 1.442695
    %v2776 = vpow.pop %v2775
    %v2777 = vadd.f32 %v2774, 1.0
    %v2778 = vadd.f32 %v2776, 1.0
    %v2779 = vrcp.pop %v2777
    %v2780 = vmul.f32 1.0, %v2779
    %v2781 = vrcp.pop %v2778
    %v2782 = vmul.f32 1.0, %v2781
    %v2783 = vld [vmem:[%s11] sm:$0xc0]
    %v2784 = vld [vmem:[%s11 + $0x8] sm:$0xc0]
    %v2787 = vrot.slane %v2780, 2
    %v2788 = vrot.slane %v2782, 2
    %v2791 = vmul.f32 %v2783, %v2787
    %v2792 = vmul.f32 %v2784, %v2788
    %2793 = vst [vmem:[#allocation22] sm:$0xc0] %v2791
    %2794 = vst [vmem:[#allocation22 + $0x8] sm:$0xc0] %v2792
    // Predicated region
    $region94: #{tpu_custom_call.1} parent=1 // pred_check
      _
    $region95: #{tpu_custom_call.1} parent=1 // pred_check_branch
      %2796 = sbr.rel (0) target = $region97
    $region96: #{tpu_custom_call.1} parent=1 // pred_region
      %s2798 = ssub.s32 256, 256
      %2799 = vsyncadd [#allocation4], %s2798
      %s2801 = sshll.u32 [#allocation22], 4
      %s2802 = int_to_ptr.vmem [resolvable:$true] %s2801
      %2804 = dma.vmem_to_hbm [thread:$0]  %s2802, 256, %s12, [#allocation4]
    $region97: #{tpu_custom_call.1} parent=1 // pred_fallthru
      _
    // Predicated region
    $region98: #{tpu_custom_call.1} parent=1 // pred_check
      _
    $region99: #{tpu_custom_call.1} parent=1 // pred_check_branch
      %2806 = sbr.rel (0) target = $region101
    $region100: #{tpu_custom_call.1} parent=1 // pred_region
      %2807 = dma.done [#allocation4], 256
    $region101: #{tpu_custom_call.1} parent=1 // pred_fallthru
      _
    %2808 = vsyncpa [#allocation3], 1
    %2809 = vsyncpa [#allocation18], 1
    %2810 = vsyncpa [#allocation21], 1
    %2811 = vsyncpa [#allocation4], 1
    %2812 = vsyncpa [#allocation5], 1
    %2813 = vsyncpa [#allocation8], 1
    %2814 = vsyncpa [#allocation11], 1
    %2815 = vsyncpa [#allocation15], 1
    %2816 = vsyncpa [#allocation6], 1

</llo_original>
